<compile_context>
chip_gen: v7x
topology: tpu7x:2x2x1
jax: 0.10.0
libtpu: 0.0.40
codegen_flags: <defaults>
</compile_context>

<pallas_src>
import jax
import jax.numpy as jnp
from jax import lax
from jax.experimental import pallas as pl
from jax.experimental.pallas import tpu as pltpu


def _round_up(x, m):
    return (x + m - 1) // m * m


def fused_conv_block_kernel(x_ref, w1_ref, b1_ref, w2_ref, b2_ref, o_ref,
                            xpad1, xpad2, col1, col2):
    """One batch element per grid step.

    x_ref  : (1, H, W, Cin)        unpadded NHWC input tile
    w1_ref : (9*Cin, C1p)          conv1 weights, taps folded into K, Cout padded
    b1_ref : (1, C1p)
    w2_ref : (9*C1p, C2p)          conv2 weights, taps folded into K, I/O padded
    b2_ref : (1, C2p)
    o_ref  : (1, H, W, C2p)        lane-dense output tile (ReLU applied)
    xpad1  : VMEM (H+2, W+2, Cin)  replication-padded stage-1 input
    xpad2  : VMEM (H+2, W+2, C1p)  replication-padded stage-2 input
    col1   : VMEM (H*W, 9*Cin)     im2col patch, stage 1
    col2   : VMEM (H*W, 9*C1p)     im2col patch, stage 2
    """
    _, H, W, Cin = x_ref.shape
    C1p = w1_ref.shape[1]
    C2p = w2_ref.shape[1]

    def replicate_pad(src, pad_ref):
        # src: (H, W, C) value -> pad_ref: (H+2, W+2, C), edge replication.
        pad_ref[1:H + 1, 1:W + 1, :] = src
        pad_ref[0:1, 1:W + 1, :] = src[0:1, :, :]
        pad_ref[H + 1:H + 2, 1:W + 1, :] = src[H - 1:H, :, :]
        # Column replication (reads rows just written -> corners correct).
        pad_ref[:, 0:1, :] = pad_ref[:, 1:2, :]
        pad_ref[:, W + 1:W + 2, :] = pad_ref[:, W:W + 1, :]

    def conv3x3_relu(pad_ref, col_ref, w_ref, b_ref, cin):
        # Fold the 9 taps into one matmul: build (H*W, 9*cin) im2col patch,
        # then a single (H*W, 9*cin) @ (9*cin, Cout) MXU pass.
        for t in range(9):
            dy, dx = t // 3, t % 3
            piece = pad_ref[dy:dy + H, dx:dx + W, :].reshape(H * W, cin)
            col_ref[:, t * cin:(t + 1) * cin] = piece
        acc = jnp.dot(col_ref[...], w_ref[...],
                      preferred_element_type=jnp.float32)
        acc = acc + b_ref[...].astype(jnp.float32)   # (1, C) broadcast
        return jnp.maximum(acc, 0.0)                 # (H*W, C) float32

    # Stage 1: replication pad + conv1 + ReLU (result stays in VMEM).
    replicate_pad(x_ref[0].astype(jnp.float32), xpad1)
    h1 = conv3x3_relu(xpad1, col1, w1_ref, b1_ref, Cin)          # (H*W, C1p)

    # Stage 2: replication pad + conv2 + ReLU, straight from VMEM.
    replicate_pad(h1.reshape(H, W, C1p), xpad2)
    h2 = conv3x3_relu(xpad2, col2, w2_ref, b2_ref, C1p)          # (H*W, C2p)

    o_ref[...] = h2.reshape(1, H, W, C2p).astype(o_ref.dtype)


def conv_block_up_forward(x_nchw, params):
    """Full _ConvBlockUp forward. Input/output layout: NCHW (PyTorch)."""
    (w1, b1), (w2, b2) = params          # HWIO weights: (3,3,I,O)
    N, Cin, H, W = x_nchw.shape
    C1 = w1.shape[-1]
    C2 = w2.shape[-1]
    C1p = _round_up(C1, 128)             # lane-dense intermediate channels
    C2p = _round_up(C2, 128)             # lane-dense output channels

    x = jnp.transpose(x_nchw, (0, 2, 3, 1))              # NCHW -> NHWC

    # Fold taps into the matmul K dim and zero-pad channel dims to 128.
    w1f = jnp.pad(w1.reshape(9 * Cin, C1), ((0, 0), (0, C1p - C1)))
    b1p = jnp.pad(b1, (0, C1p - C1)).reshape(1, C1p)
    w2p = jnp.pad(w2, ((0, 0), (0, 0), (0, C1p - C1), (0, C2p - C2)))
    w2f = w2p.reshape(9 * C1p, C2p)
    b2p = jnp.pad(b2, (0, C2p - C2)).reshape(1, C2p)

    out = pl.pallas_call(
        fused_conv_block_kernel,
        out_shape=jax.ShapeDtypeStruct((N, H, W, C2p), x.dtype),
        grid_spec=pltpu.PrefetchScalarGridSpec(
            num_scalar_prefetch=0,
            grid=(N,),
            in_specs=[
                pl.BlockSpec((1, H, W, Cin), lambda n: (n, 0, 0, 0)),
                pl.BlockSpec((9 * Cin, C1p), lambda n: (0, 0)),
                pl.BlockSpec((1, C1p), lambda n: (0, 0)),
                pl.BlockSpec((9 * C1p, C2p), lambda n: (0, 0)),
                pl.BlockSpec((1, C2p), lambda n: (0, 0)),
            ],
            out_specs=pl.BlockSpec((1, H, W, C2p), lambda n: (n, 0, 0, 0)),
            scratch_shapes=[
                pltpu.VMEM((H + 2, W + 2, Cin), jnp.float32),
                pltpu.VMEM((H + 2, W + 2, C1p), jnp.float32),
                pltpu.VMEM((H * W, 9 * Cin), jnp.float32),
                pltpu.VMEM((H * W, 9 * C1p), jnp.float32),
            ]),
        compiler_params=pltpu.CompilerParams(
            dimension_semantics=("parallel",)),
    )(x, w1f, b1p, w2f, b2p)

    out = out[..., :C2]                                  # drop channel padding
    return jnp.transpose(out, (0, 3, 1, 2))              # NHWC -> NCHW


def init_params(key, in_channels, out_channels, dtype=jnp.float32):
    """Deterministic synthetic init (shapes match nn.Conv2d, stored as HWIO)."""
    k1, k2, k3, k4 = jax.random.split(key, 4)
    w1 = jax.random.normal(k1, (3, 3, in_channels, out_channels), dtype) * 0.1
    b1 = jax.random.normal(k2, (out_channels,), dtype) * 0.1
    w2 = jax.random.normal(k3, (3, 3, out_channels, out_channels), dtype) * 0.1
    b2 = jax.random.normal(k4, (out_channels,), dtype) * 0.1
    return ((w1, b1), (w2, b2))


def _reference_forward(x_nchw, params):
    """Pure-JAX reference (lax.conv) for correctness checking."""
    (w1, b1), (w2, b2) = params
    x = jnp.transpose(x_nchw, (0, 2, 3, 1))
    dn = ("NHWC", "HWIO", "NHWC")
    for w, b in ((w1, b1), (w2, b2)):
        xp = jnp.pad(x, ((0, 0), (1, 1), (1, 1), (0, 0)), mode="edge")
        x = lax.conv_general_dilated(xp, w, window_strides=(1, 1),
                                     padding="VALID", dimension_numbers=dn)
        x = jnp.maximum(x + b, 0.0)
    return jnp.transpose(x, (0, 3, 1, 2))


if __name__ == "__main__":
    key = jax.random.PRNGKey(0)
    kx, kp = jax.random.split(key)

    # Small shapes consistent with the module: NCHW input.
    N, Cin, H, W = 2, 4, 16, 16
    Cout = 8
    x = jax.random.normal(kx, (N, Cin, H, W), jnp.float32)
    params = init_params(kp, Cin, Cout)

    out = jax.block_until_ready(conv_block_up_forward(x, params))
    ref = jax.block_until_ready(_reference_forward(x, params))

    assert out.shape == (N, Cout, H, W), out.shape
    assert jnp.allclose(out, ref, atol=1e-4, rtol=1e-4), "mismatch vs reference"

    print("KERNEL_OK")
</pallas_src>

<mosaic_0001>
module attributes {stable_mosaic.version = 11 : i64} {
  func.func @fused_conv_block_kernel(%arg0: i32, %arg1: memref<1x16x16x4xf32, #tpu.memory_space<vmem>>, %arg2: memref<36x128xf32, #tpu.memory_space<vmem>>, %arg3: memref<1x128xf32, #tpu.memory_space<vmem>>, %arg4: memref<1152x128xf32, #tpu.memory_space<vmem>>, %arg5: memref<1x128xf32, #tpu.memory_space<vmem>>, %arg6: memref<1x16x16x128xf32, #tpu.memory_space<vmem>>, %arg7: memref<18x18x4xf32, #tpu.memory_space<vmem>>, %arg8: memref<18x18x128xf32, #tpu.memory_space<vmem>>, %arg9: memref<256x36xf32, #tpu.memory_space<vmem>>, %arg10: memref<256x1152xf32, #tpu.memory_space<vmem>>) attributes {dimension_semantics = [#tpu.dimension_semantics<parallel>], iteration_bounds = array<i64: 2>, scalar_prefetch = 0 : i64, scratch_operands = 4 : i64, tpu.core_type = #tpu.core_type<tc>, window_params = [{transform_indices = @transform_0, window_bounds = array<i64: 1, 16, 16, 4>}, {pipeline_mode = #tpu.pipeline_mode<synchronous>, transform_indices = @transform_1, window_bounds = array<i64: 36, 128>}, {pipeline_mode = #tpu.pipeline_mode<synchronous>, transform_indices = @transform_2, window_bounds = array<i64: 1, 128>}, {pipeline_mode = #tpu.pipeline_mode<synchronous>, transform_indices = @transform_3, window_bounds = array<i64: 1152, 128>}, {pipeline_mode = #tpu.pipeline_mode<synchronous>, transform_indices = @transform_4, window_bounds = array<i64: 1, 128>}, {transform_indices = @transform_5, window_bounds = array<i64: 1, 16, 16, 128>}]} {
    %c0 = arith.constant 0 : index
    %c0_0 = arith.constant 0 : index
    %c0_1 = arith.constant 0 : index
    %c0_2 = arith.constant 0 : index
    %0 = vector.load %arg1[%c0, %c0_0, %c0_1, %c0_2] : memref<1x16x16x4xf32, #tpu.memory_space<vmem>>, vector<1x16x16x4xf32>
    %1 = vector.shape_cast %0 : vector<1x16x16x4xf32> to vector<16x16x4xf32>
    %c1 = arith.constant 1 : index
    %c1_3 = arith.constant 1 : index
    %c0_4 = arith.constant 0 : index
    %2 = vector.load %arg7[%c1, %c1_3, %c0_4] : memref<18x18x4xf32, #tpu.memory_space<vmem>>, vector<16x16x4xf32>
    tpu.vector_store %arg7[%c1, %c1_3, %c0_4], %1 {strides = array<i32>} : memref<18x18x4xf32, #tpu.memory_space<vmem>>, vector<16x16x4xf32>,
    %3 = vector.extract_strided_slice %1 {offsets = [0, 0, 0], sizes = [1, 16, 4], strides = [1, 1, 1]} : vector<16x16x4xf32> to vector<1x16x4xf32>
    %c0_5 = arith.constant 0 : index
    %c1_6 = arith.constant 1 : index
    %c0_7 = arith.constant 0 : index
    %4 = vector.load %arg7[%c0_5, %c1_6, %c0_7] : memref<18x18x4xf32, #tpu.memory_space<vmem>>, vector<1x16x4xf32>
    tpu.vector_store %arg7[%c0_5, %c1_6, %c0_7], %3 {strides = array<i32>} : memref<18x18x4xf32, #tpu.memory_space<vmem>>, vector<1x16x4xf32>,
    %5 = vector.extract_strided_slice %1 {offsets = [15, 0, 0], sizes = [1, 16, 4], strides = [1, 1, 1]} : vector<16x16x4xf32> to vector<1x16x4xf32>
    %c17 = arith.constant 17 : index
    %c1_8 = arith.constant 1 : index
    %c0_9 = arith.constant 0 : index
    %6 = vector.load %arg7[%c17, %c1_8, %c0_9] : memref<18x18x4xf32, #tpu.memory_space<vmem>>, vector<1x16x4xf32>
    tpu.vector_store %arg7[%c17, %c1_8, %c0_9], %5 {strides = array<i32>} : memref<18x18x4xf32, #tpu.memory_space<vmem>>, vector<1x16x4xf32>,
    %c0_10 = arith.constant 0 : index
    %c1_11 = arith.constant 1 : index
    %c0_12 = arith.constant 0 : index
    %7 = vector.load %arg7[%c0_10, %c1_11, %c0_12] : memref<18x18x4xf32, #tpu.memory_space<vmem>>, vector<18x1x4xf32>
    %c0_13 = arith.constant 0 : index
    %c0_14 = arith.constant 0 : index
    %c0_15 = arith.constant 0 : index
    %8 = vector.load %arg7[%c0_13, %c0_14, %c0_15] : memref<18x18x4xf32, #tpu.memory_space<vmem>>, vector<18x1x4xf32>
    tpu.vector_store %arg7[%c0_13, %c0_14, %c0_15], %7 {strides = array<i32>} : memref<18x18x4xf32, #tpu.memory_space<vmem>>, vector<18x1x4xf32>,
    %c0_16 = arith.constant 0 : index
    %c16 = arith.constant 16 : index
    %c0_17 = arith.constant 0 : index
    %9 = vector.load %arg7[%c0_16, %c16, %c0_17] : memref<18x18x4xf32, #tpu.memory_space<vmem>>, vector<18x1x4xf32>
    %c0_18 = arith.constant 0 : index
    %c17_19 = arith.constant 17 : index
    %c0_20 = arith.constant 0 : index
    %10 = vector.load %arg7[%c0_18, %c17_19, %c0_20] : memref<18x18x4xf32, #tpu.memory_space<vmem>>, vector<18x1x4xf32>
    tpu.vector_store %arg7[%c0_18, %c17_19, %c0_20], %9 {strides = array<i32>} : memref<18x18x4xf32, #tpu.memory_space<vmem>>, vector<18x1x4xf32>,
    %c0_21 = arith.constant 0 : index
    %c0_22 = arith.constant 0 : index
    %c0_23 = arith.constant 0 : index
    %11 = vector.load %arg7[%c0_21, %c0_22, %c0_23] : memref<18x18x4xf32, #tpu.memory_space<vmem>>, vector<16x16x4xf32>
    %12 = vector.shape_cast %11 : vector<16x16x4xf32> to vector<256x4xf32>
    %c0_24 = arith.constant 0 : index
    %c0_25 = arith.constant 0 : index
    %13 = vector.load %arg9[%c0_24, %c0_25] : memref<256x36xf32, #tpu.memory_space<vmem>>, vector<256x4xf32>
    tpu.vector_store %arg9[%c0_24, %c0_25], %12 {strides = array<i32>} : memref<256x36xf32, #tpu.memory_space<vmem>>, vector<256x4xf32>,
    %c0_26 = arith.constant 0 : index
    %c1_27 = arith.constant 1 : index
    %c0_28 = arith.constant 0 : index
    %14 = vector.load %arg7[%c0_26, %c1_27, %c0_28] : memref<18x18x4xf32, #tpu.memory_space<vmem>>, vector<16x16x4xf32>
    %15 = vector.shape_cast %14 : vector<16x16x4xf32> to vector<256x4xf32>
    %c0_29 = arith.constant 0 : index
    %c4 = arith.constant 4 : index
    %16 = vector.load %arg9[%c0_29, %c4] : memref<256x36xf32, #tpu.memory_space<vmem>>, vector<256x4xf32>
    tpu.vector_store %arg9[%c0_29, %c4], %15 {strides = array<i32>} : memref<256x36xf32, #tpu.memory_space<vmem>>, vector<256x4xf32>,
    %c0_30 = arith.constant 0 : index
    %c2 = arith.constant 2 : index
    %c0_31 = arith.constant 0 : index
    %17 = vector.load %arg7[%c0_30, %c2, %c0_31] : memref<18x18x4xf32, #tpu.memory_space<vmem>>, vector<16x16x4xf32>
    %18 = vector.shape_cast %17 : vector<16x16x4xf32> to vector<256x4xf32>
    %c0_32 = arith.constant 0 : index
    %c8 = arith.constant 8 : index
    %19 = vector.load %arg9[%c0_32, %c8] : memref<256x36xf32, #tpu.memory_space<vmem>>, vector<256x4xf32>
    tpu.vector_store %arg9[%c0_32, %c8], %18 {strides = array<i32>} : memref<256x36xf32, #tpu.memory_space<vmem>>, vector<256x4xf32>,
    %c1_33 = arith.constant 1 : index
    %c0_34 = arith.constant 0 : index
    %c0_35 = arith.constant 0 : index
    %20 = vector.load %arg7[%c1_33, %c0_34, %c0_35] : memref<18x18x4xf32, #tpu.memory_space<vmem>>, vector<16x16x4xf32>
    %21 = vector.shape_cast %20 : vector<16x16x4xf32> to vector<256x4xf32>
    %c0_36 = arith.constant 0 : index
    %c12 = arith.constant 12 : index
    %22 = vector.load %arg9[%c0_36, %c12] : memref<256x36xf32, #tpu.memory_space<vmem>>, vector<256x4xf32>
    tpu.vector_store %arg9[%c0_36, %c12], %21 {strides = array<i32>} : memref<256x36xf32, #tpu.memory_space<vmem>>, vector<256x4xf32>,
    %c1_37 = arith.constant 1 : index
    %c1_38 = arith.constant 1 : index
    %c0_39 = arith.constant 0 : index
    %23 = vector.load %arg7[%c1_37, %c1_38, %c0_39] : memref<18x18x4xf32, #tpu.memory_space<vmem>>, vector<16x16x4xf32>
    %24 = vector.shape_cast %23 : vector<16x16x4xf32> to vector<256x4xf32>
    %c0_40 = arith.constant 0 : index
    %c16_41 = arith.constant 16 : index
    %25 = vector.load %arg9[%c0_40, %c16_41] : memref<256x36xf32, #tpu.memory_space<vmem>>, vector<256x4xf32>
    tpu.vector_store %arg9[%c0_40, %c16_41], %24 {strides = array<i32>} : memref<256x36xf32, #tpu.memory_space<vmem>>, vector<256x4xf32>,
    %c1_42 = arith.constant 1 : index
    %c2_43 = arith.constant 2 : index
    %c0_44 = arith.constant 0 : index
    %26 = vector.load %arg7[%c1_42, %c2_43, %c0_44] : memref<18x18x4xf32, #tpu.memory_space<vmem>>, vector<16x16x4xf32>
    %27 = vector.shape_cast %26 : vector<16x16x4xf32> to vector<256x4xf32>
    %c0_45 = arith.constant 0 : index
    %c20 = arith.constant 20 : index
    %28 = vector.load %arg9[%c0_45, %c20] : memref<256x36xf32, #tpu.memory_space<vmem>>, vector<256x4xf32>
    tpu.vector_store %arg9[%c0_45, %c20], %27 {strides = array<i32>} : memref<256x36xf32, #tpu.memory_space<vmem>>, vector<256x4xf32>,
    %c2_46 = arith.constant 2 : index
    %c0_47 = arith.constant 0 : index
    %c0_48 = arith.constant 0 : index
    %29 = vector.load %arg7[%c2_46, %c0_47, %c0_48] : memref<18x18x4xf32, #tpu.memory_space<vmem>>, vector<16x16x4xf32>
    %30 = vector.shape_cast %29 : vector<16x16x4xf32> to vector<256x4xf32>
    %c0_49 = arith.constant 0 : index
    %c24 = arith.constant 24 : index
    %31 = vector.load %arg9[%c0_49, %c24] : memref<256x36xf32, #tpu.memory_space<vmem>>, vector<256x4xf32>
    tpu.vector_store %arg9[%c0_49, %c24], %30 {strides = array<i32>} : memref<256x36xf32, #tpu.memory_space<vmem>>, vector<256x4xf32>,
    %c2_50 = arith.constant 2 : index
    %c1_51 = arith.constant 1 : index
    %c0_52 = arith.constant 0 : index
    %32 = vector.load %arg7[%c2_50, %c1_51, %c0_52] : memref<18x18x4xf32, #tpu.memory_space<vmem>>, vector<16x16x4xf32>
    %33 = vector.shape_cast %32 : vector<16x16x4xf32> to vector<256x4xf32>
    %c0_53 = arith.constant 0 : index
    %c28 = arith.constant 28 : index
    %34 = vector.load %arg9[%c0_53, %c28] : memref<256x36xf32, #tpu.memory_space<vmem>>, vector<256x4xf32>
    tpu.vector_store %arg9[%c0_53, %c28], %33 {strides = array<i32>} : memref<256x36xf32, #tpu.memory_space<vmem>>, vector<256x4xf32>,
    %c2_54 = arith.constant 2 : index
    %c2_55 = arith.constant 2 : index
    %c0_56 = arith.constant 0 : index
    %35 = vector.load %arg7[%c2_54, %c2_55, %c0_56] : memref<18x18x4xf32, #tpu.memory_space<vmem>>, vector<16x16x4xf32>
    %36 = vector.shape_cast %35 : vector<16x16x4xf32> to vector<256x4xf32>
    %c0_57 = arith.constant 0 : index
    %c32 = arith.constant 32 : index
    %37 = vector.load %arg9[%c0_57, %c32] : memref<256x36xf32, #tpu.memory_space<vmem>>, vector<256x4xf32>
    tpu.vector_store %arg9[%c0_57, %c32], %36 {strides = array<i32>} : memref<256x36xf32, #tpu.memory_space<vmem>>, vector<256x4xf32>,
    %c0_58 = arith.constant 0 : index
    %c0_59 = arith.constant 0 : index
    %38 = vector.load %arg9[%c0_58, %c0_59] : memref<256x36xf32, #tpu.memory_space<vmem>>, vector<256x36xf32>
    %c0_60 = arith.constant 0 : index
    %c0_61 = arith.constant 0 : index
    %39 = vector.load %arg2[%c0_60, %c0_61] : memref<36x128xf32, #tpu.memory_space<vmem>>, vector<36x128xf32>
    %cst = arith.constant dense<0.000000e+00> : vector<256x128xf32>
    %40 = tpu.matmul %38, %39, %cst {dimension_numbers = #tpu.dot_dimension_numbers<[1], [0], [0], [1], [0, 0, 1, 1], [], []>} : vector<256x36xf32>, vector<36x128xf32>, vector<256x128xf32> -> vector<256x128xf32>
    %c0_62 = arith.constant 0 : index
    %c0_63 = arith.constant 0 : index
    %41 = vector.load %arg3[%c0_62, %c0_63] : memref<1x128xf32, #tpu.memory_space<vmem>>, vector<1x128xf32>
    %42 = vector.broadcast %41 : vector<1x128xf32> to vector<256x128xf32>
    %43 = arith.addf %40, %42 : vector<256x128xf32>
    %cst_64 = arith.constant 0.000000e+00 : f32
    %44 = vector.broadcast %cst_64 : f32 to vector<256x128xf32>
    %45 = arith.maximumf %43, %44 : vector<256x128xf32>
    %46 = vector.shape_cast %45 : vector<256x128xf32> to vector<16x16x128xf32>
    %c1_65 = arith.constant 1 : index
    %c1_66 = arith.constant 1 : index
    %c0_67 = arith.constant 0 : index
    %47 = vector.load %arg8[%c1_65, %c1_66, %c0_67] : memref<18x18x128xf32, #tpu.memory_space<vmem>>, vector<16x16x128xf32>
    tpu.vector_store %arg8[%c1_65, %c1_66, %c0_67], %46 {strides = array<i32>} : memref<18x18x128xf32, #tpu.memory_space<vmem>>, vector<16x16x128xf32>,
    %48 = vector.extract_strided_slice %46 {offsets = [0, 0, 0], sizes = [1, 16, 128], strides = [1, 1, 1]} : vector<16x16x128xf32> to vector<1x16x128xf32>
    %c0_68 = arith.constant 0 : index
    %c1_69 = arith.constant 1 : index
    %c0_70 = arith.constant 0 : index
    %49 = vector.load %arg8[%c0_68, %c1_69, %c0_70] : memref<18x18x128xf32, #tpu.memory_space<vmem>>, vector<1x16x128xf32>
    tpu.vector_store %arg8[%c0_68, %c1_69, %c0_70], %48 {strides = array<i32>} : memref<18x18x128xf32, #tpu.memory_space<vmem>>, vector<1x16x128xf32>,
    %50 = vector.extract_strided_slice %46 {offsets = [15, 0, 0], sizes = [1, 16, 128], strides = [1, 1, 1]} : vector<16x16x128xf32> to vector<1x16x128xf32>
    %c17_71 = arith.constant 17 : index
    %c1_72 = arith.constant 1 : index
    %c0_73 = arith.constant 0 : index
    %51 = vector.load %arg8[%c17_71, %c1_72, %c0_73] : memref<18x18x128xf32, #tpu.memory_space<vmem>>, vector<1x16x128xf32>
    tpu.vector_store %arg8[%c17_71, %c1_72, %c0_73], %50 {strides = array<i32>} : memref<18x18x128xf32, #tpu.memory_space<vmem>>, vector<1x16x128xf32>,
    %c0_74 = arith.constant 0 : index
    %c1_75 = arith.constant 1 : index
    %c0_76 = arith.constant 0 : index
    %52 = vector.load %arg8[%c0_74, %c1_75, %c0_76] : memref<18x18x128xf32, #tpu.memory_space<vmem>>, vector<18x1x128xf32>
    %c0_77 = arith.constant 0 : index
    %c0_78 = arith.constant 0 : index
    %c0_79 = arith.constant 0 : index
    %53 = vector.load %arg8[%c0_77, %c0_78, %c0_79] : memref<18x18x128xf32, #tpu.memory_space<vmem>>, vector<18x1x128xf32>
    tpu.vector_store %arg8[%c0_77, %c0_78, %c0_79], %52 {strides = array<i32>} : memref<18x18x128xf32, #tpu.memory_space<vmem>>, vector<18x1x128xf32>,
    %c0_80 = arith.constant 0 : index
    %c16_81 = arith.constant 16 : index
    %c0_82 = arith.constant 0 : index
    %54 = vector.load %arg8[%c0_80, %c16_81, %c0_82] : memref<18x18x128xf32, #tpu.memory_space<vmem>>, vector<18x1x128xf32>
    %c0_83 = arith.constant 0 : index
    %c17_84 = arith.constant 17 : index
    %c0_85 = arith.constant 0 : index
    %55 = vector.load %arg8[%c0_83, %c17_84, %c0_85] : memref<18x18x128xf32, #tpu.memory_space<vmem>>, vector<18x1x128xf32>
    tpu.vector_store %arg8[%c0_83, %c17_84, %c0_85], %54 {strides = array<i32>} : memref<18x18x128xf32, #tpu.memory_space<vmem>>, vector<18x1x128xf32>,
    %c0_86 = arith.constant 0 : index
    %c0_87 = arith.constant 0 : index
    %c0_88 = arith.constant 0 : index
    %56 = vector.load %arg8[%c0_86, %c0_87, %c0_88] : memref<18x18x128xf32, #tpu.memory_space<vmem>>, vector<16x16x128xf32>
    %57 = vector.shape_cast %56 : vector<16x16x128xf32> to vector<256x128xf32>
    %c0_89 = arith.constant 0 : index
    %c0_90 = arith.constant 0 : index
    %58 = vector.load %arg10[%c0_89, %c0_90] : memref<256x1152xf32, #tpu.memory_space<vmem>>, vector<256x128xf32>
    tpu.vector_store %arg10[%c0_89, %c0_90], %57 {strides = array<i32>} : memref<256x1152xf32, #tpu.memory_space<vmem>>, vector<256x128xf32>,
    %c0_91 = arith.constant 0 : index
    %c1_92 = arith.constant 1 : index
    %c0_93 = arith.constant 0 : index
    %59 = vector.load %arg8[%c0_91, %c1_92, %c0_93] : memref<18x18x128xf32, #tpu.memory_space<vmem>>, vector<16x16x128xf32>
    %60 = vector.shape_cast %59 : vector<16x16x128xf32> to vector<256x128xf32>
    %c0_94 = arith.constant 0 : index
    %c128 = arith.constant 128 : index
    %61 = vector.load %arg10[%c0_94, %c128] : memref<256x1152xf32, #tpu.memory_space<vmem>>, vector<256x128xf32>
    tpu.vector_store %arg10[%c0_94, %c128], %60 {strides = array<i32>} : memref<256x1152xf32, #tpu.memory_space<vmem>>, vector<256x128xf32>,
    %c0_95 = arith.constant 0 : index
    %c2_96 = arith.constant 2 : index
    %c0_97 = arith.constant 0 : index
    %62 = vector.load %arg8[%c0_95, %c2_96, %c0_97] : memref<18x18x128xf32, #tpu.memory_space<vmem>>, vector<16x16x128xf32>
    %63 = vector.shape_cast %62 : vector<16x16x128xf32> to vector<256x128xf32>
    %c0_98 = arith.constant 0 : index
    %c256 = arith.constant 256 : index
    %64 = vector.load %arg10[%c0_98, %c256] : memref<256x1152xf32, #tpu.memory_space<vmem>>, vector<256x128xf32>
    tpu.vector_store %arg10[%c0_98, %c256], %63 {strides = array<i32>} : memref<256x1152xf32, #tpu.memory_space<vmem>>, vector<256x128xf32>,
    %c1_99 = arith.constant 1 : index
    %c0_100 = arith.constant 0 : index
    %c0_101 = arith.constant 0 : index
    %65 = vector.load %arg8[%c1_99, %c0_100, %c0_101] : memref<18x18x128xf32, #tpu.memory_space<vmem>>, vector<16x16x128xf32>
    %66 = vector.shape_cast %65 : vector<16x16x128xf32> to vector<256x128xf32>
    %c0_102 = arith.constant 0 : index
    %c384 = arith.constant 384 : index
    %67 = vector.load %arg10[%c0_102, %c384] : memref<256x1152xf32, #tpu.memory_space<vmem>>, vector<256x128xf32>
    tpu.vector_store %arg10[%c0_102, %c384], %66 {strides = array<i32>} : memref<256x1152xf32, #tpu.memory_space<vmem>>, vector<256x128xf32>,
    %c1_103 = arith.constant 1 : index
    %c1_104 = arith.constant 1 : index
    %c0_105 = arith.constant 0 : index
    %68 = vector.load %arg8[%c1_103, %c1_104, %c0_105] : memref<18x18x128xf32, #tpu.memory_space<vmem>>, vector<16x16x128xf32>
    %69 = vector.shape_cast %68 : vector<16x16x128xf32> to vector<256x128xf32>
    %c0_106 = arith.constant 0 : index
    %c512 = arith.constant 512 : index
    %70 = vector.load %arg10[%c0_106, %c512] : memref<256x1152xf32, #tpu.memory_space<vmem>>, vector<256x128xf32>
    tpu.vector_store %arg10[%c0_106, %c512], %69 {strides = array<i32>} : memref<256x1152xf32, #tpu.memory_space<vmem>>, vector<256x128xf32>,
    %c1_107 = arith.constant 1 : index
    %c2_108 = arith.constant 2 : index
    %c0_109 = arith.constant 0 : index
    %71 = vector.load %arg8[%c1_107, %c2_108, %c0_109] : memref<18x18x128xf32, #tpu.memory_space<vmem>>, vector<16x16x128xf32>
    %72 = vector.shape_cast %71 : vector<16x16x128xf32> to vector<256x128xf32>
    %c0_110 = arith.constant 0 : index
    %c640 = arith.constant 640 : index
    %73 = vector.load %arg10[%c0_110, %c640] : memref<256x1152xf32, #tpu.memory_space<vmem>>, vector<256x128xf32>
    tpu.vector_store %arg10[%c0_110, %c640], %72 {strides = array<i32>} : memref<256x1152xf32, #tpu.memory_space<vmem>>, vector<256x128xf32>,
    %c2_111 = arith.constant 2 : index
    %c0_112 = arith.constant 0 : index
    %c0_113 = arith.constant 0 : index
    %74 = vector.load %arg8[%c2_111, %c0_112, %c0_113] : memref<18x18x128xf32, #tpu.memory_space<vmem>>, vector<16x16x128xf32>
    %75 = vector.shape_cast %74 : vector<16x16x128xf32> to vector<256x128xf32>
    %c0_114 = arith.constant 0 : index
    %c768 = arith.constant 768 : index
    %76 = vector.load %arg10[%c0_114, %c768] : memref<256x1152xf32, #tpu.memory_space<vmem>>, vector<256x128xf32>
    tpu.vector_store %arg10[%c0_114, %c768], %75 {strides = array<i32>} : memref<256x1152xf32, #tpu.memory_space<vmem>>, vector<256x128xf32>,
    %c2_115 = arith.constant 2 : index
    %c1_116 = arith.constant 1 : index
    %c0_117 = arith.constant 0 : index
    %77 = vector.load %arg8[%c2_115, %c1_116, %c0_117] : memref<18x18x128xf32, #tpu.memory_space<vmem>>, vector<16x16x128xf32>
    %78 = vector.shape_cast %77 : vector<16x16x128xf32> to vector<256x128xf32>
    %c0_118 = arith.constant 0 : index
    %c896 = arith.constant 896 : index
    %79 = vector.load %arg10[%c0_118, %c896] : memref<256x1152xf32, #tpu.memory_space<vmem>>, vector<256x128xf32>
    tpu.vector_store %arg10[%c0_118, %c896], %78 {strides = array<i32>} : memref<256x1152xf32, #tpu.memory_space<vmem>>, vector<256x128xf32>,
    %c2_119 = arith.constant 2 : index
    %c2_120 = arith.constant 2 : index
    %c0_121 = arith.constant 0 : index
    %80 = vector.load %arg8[%c2_119, %c2_120, %c0_121] : memref<18x18x128xf32, #tpu.memory_space<vmem>>, vector<16x16x128xf32>
    %81 = vector.shape_cast %80 : vector<16x16x128xf32> to vector<256x128xf32>
    %c0_122 = arith.constant 0 : index
    %c1024 = arith.constant 1024 : index
    %82 = vector.load %arg10[%c0_122, %c1024] : memref<256x1152xf32, #tpu.memory_space<vmem>>, vector<256x128xf32>
    tpu.vector_store %arg10[%c0_122, %c1024], %81 {strides = array<i32>} : memref<256x1152xf32, #tpu.memory_space<vmem>>, vector<256x128xf32>,
    %c0_123 = arith.constant 0 : index
    %c0_124 = arith.constant 0 : index
    %83 = vector.load %arg10[%c0_123, %c0_124] : memref<256x1152xf32, #tpu.memory_space<vmem>>, vector<256x1152xf32>
    %c0_125 = arith.constant 0 : index
    %c0_126 = arith.constant 0 : index
    %84 = vector.load %arg4[%c0_125, %c0_126] : memref<1152x128xf32, #tpu.memory_space<vmem>>, vector<1152x128xf32>
    %cst_127 = arith.constant dense<0.000000e+00> : vector<256x128xf32>
    %85 = tpu.matmul %83, %84, %cst_127 {dimension_numbers = #tpu.dot_dimension_numbers<[1], [0], [0], [1], [0, 0, 1, 1], [], []>} : vector<256x1152xf32>, vector<1152x128xf32>, vector<256x128xf32> -> vector<256x128xf32>
    %c0_128 = arith.constant 0 : index
    %c0_129 = arith.constant 0 : index
    %86 = vector.load %arg5[%c0_128, %c0_129] : memref<1x128xf32, #tpu.memory_space<vmem>>, vector<1x128xf32>
    %87 = vector.broadcast %86 : vector<1x128xf32> to vector<256x128xf32>
    %88 = arith.addf %85, %87 : vector<256x128xf32>
    %cst_130 = arith.constant 0.000000e+00 : f32
    %89 = vector.broadcast %cst_130 : f32 to vector<256x128xf32>
    %90 = arith.maximumf %88, %89 : vector<256x128xf32>
    %91 = vector.shape_cast %90 : vector<256x128xf32> to vector<1x16x16x128xf32>
    %c0_131 = arith.constant 0 : index
    %c0_132 = arith.constant 0 : index
    %c0_133 = arith.constant 0 : index
    %c0_134 = arith.constant 0 : index
    %92 = vector.load %arg6[%c0_131, %c0_132, %c0_133, %c0_134] : memref<1x16x16x128xf32, #tpu.memory_space<vmem>>, vector<1x16x16x128xf32>
    tpu.vector_store %arg6[%c0_131, %c0_132, %c0_133, %c0_134], %91 {strides = array<i32>} : memref<1x16x16x128xf32, #tpu.memory_space<vmem>>, vector<1x16x16x128xf32>,
    return
  }
  func.func @transform_0(%arg0: i32) -> (i32, i32, i32, i32) {
    %c0_i32 = arith.constant 0 : i32
    %c0_i32_0 = arith.constant 0 : i32
    %c0_i32_1 = arith.constant 0 : i32
    %c0_i32_2 = arith.constant 0 : i32
    return %arg0, %c0_i32, %c0_i32_0, %c0_i32_1 : i32, i32, i32, i32
  }
  func.func @transform_1(%arg0: i32) -> (i32, i32) {
    %c0_i32 = arith.constant 0 : i32
    %c0_i32_0 = arith.constant 0 : i32
    %c0_i32_1 = arith.constant 0 : i32
    return %c0_i32, %c0_i32_0 : i32, i32
  }
  func.func @transform_2(%arg0: i32) -> (i32, i32) {
    %c0_i32 = arith.constant 0 : i32
    %c0_i32_0 = arith.constant 0 : i32
    %c0_i32_1 = arith.constant 0 : i32
    return %c0_i32, %c0_i32_0 : i32, i32
  }
  func.func @transform_3(%arg0: i32) -> (i32, i32) {
    %c0_i32 = arith.constant 0 : i32
    %c0_i32_0 = arith.constant 0 : i32
    %c0_i32_1 = arith.constant 0 : i32
    return %c0_i32, %c0_i32_0 : i32, i32
  }
  func.func @transform_4(%arg0: i32) -> (i32, i32) {
    %c0_i32 = arith.constant 0 : i32
    %c0_i32_0 = arith.constant 0 : i32
    %c0_i32_1 = arith.constant 0 : i32
    return %c0_i32, %c0_i32_0 : i32, i32
  }
  func.func @transform_5(%arg0: i32) -> (i32, i32, i32, i32) {
    %c0_i32 = arith.constant 0 : i32
    %c0_i32_0 = arith.constant 0 : i32
    %c0_i32_1 = arith.constant 0 : i32
    %c0_i32_2 = arith.constant 0 : i32
    return %arg0, %c0_i32, %c0_i32_0, %c0_i32_1 : i32, i32, i32, i32
  }
}

</mosaic_0001>

<llo_original>
// kernel: tpu_custom_call.1
$region0: #{tpu_custom_call.1}
  #allocation0 [shape = 'u32[]', space=smem, size = 0x4, offset = 0x4, fixed_abs, tag = 'smem constant byte address 0x4 - core index']
  #allocation1 [shape = 'u32[144,128]{1,0:T(1,128)}', space=vmem, size = 0x12000, scoped, tag = 'internal scratch']
  #allocation2 [shape = 'f32[18,18,4]{2,1,0:T(8,128)}', space=vmem, size = 0x36000, scoped, tag = 'scratch operand']
  #allocation3 [shape = 'f32[18,18,128]{2,1,0:T(8,128)}', space=vmem, size = 0x36000, scoped, tag = 'scratch operand']
  #allocation4 [shape = 'f32[256,36]{1,0:T(8,128)}', space=vmem, size = 0x20000, scoped, tag = 'scratch operand']
  #allocation5 [shape = 'f32[256,1152]{1,0:T(8,128)}', space=vmem, size = 0x120000, scoped, tag = 'scratch operand']
  %s0 = inlined_call_operand.vmem [shape: f32[2,16,16,4], index: 0, kind: input, shape index: {}]
  %s1 = inlined_call_operand.vmem [shape: f32[36,128], index: 1, kind: input, shape index: {}]
  %s2 = inlined_call_operand.vmem [shape: f32[1,128], index: 2, kind: input, shape index: {}]
  %s3 = inlined_call_operand.hbm [shape: f32[1152,128], index: 3, kind: input, shape index: {}]
  %s4 = inlined_call_operand.vmem [shape: f32[1,128], index: 4, kind: input, shape index: {}]
  %s5 = inlined_call_operand.hbm [shape: f32[2,16,16,128], index: 5, kind: output, shape index: {}]
  %s6 = sld [smem:[#allocation0]]
  $region57: #{tpu_custom_call.1} parent=0
    _
  %s8 = ssub.s32 1, %s6
  %s9 = scalar_select 0, %s8, %s6
  $region1: #{tpu_custom_call.1} parent=0
    #allocation6 [shape = 'u8[589824]{0}', space=vmem, size = 0x90000, scoped, tag = 'input window, operand 3, single buffered']
    #allocation7 [shape = 's32[2]{0}', space=sflag, size = 0x8, scoped, tag = 'scoped memory for tpu_custom_call.1']
    #allocation8 [shape = 's32[2]{0}', space=sflag, size = 0x8, scoped, tag = 'scoped memory for tpu_custom_call.1']
    #allocation9 [shape = 'u8[262144]{0}', space=vmem, size = 0x40000, scoped, tag = 'output window, operand 0']
    %10 = vsyncpa [#allocation7], 0
    %11 = vsyncpa [#allocation8], 0
    %s12 = scalar_lea.sflag [#allocation8], 1
    %13 = vsyncpa %s12, 0
    loop: start=0, step=1, limit=4
    $region2: #{tpu_custom_call.1} parent=1 // loop_pre_header
      _
    $region3: #{tpu_custom_call.1} parent=1 // loop_header
      %s15 = sphi 0, %s19
      %p16 = scmp.ge.s32.totalorder %s15, 4
      %s25 = sphi 0, %s27
      %s28 = sphi 0, %s25
      %s29 = sphi 0, %s28
      %s45 = sphi 0, %s29
      %s49 = sphi 0, %s49
      %s51 = sphi 0, %s49
      %s52 = sphi 0, %s51
      %s66 = sphi 0, %s52
      %s70 = sphi 0, %s70
      %s72 = sphi 0, %s70
      %s73 = sphi 0, %s72
      %s87 = sphi 0, %s73
      %s91 = sphi 0, %s91
      %s93 = sphi 0, %s91
      %s94 = sphi 0, %s93
      %s108 = sphi 0, %s94
      %s112 = sphi 0, %s112
      %s114 = sphi 0, %s112
      %s115 = sphi 0, %s114
      %s129 = sphi 0, %s115
      %s135 = sphi 0, %s137
      %s138 = sphi 0, %s135
      %s139 = sphi 0, %s138
      %s155 = sphi 0, %s139
    $region4: #{tpu_custom_call.1} parent=1 // loop_header_branch
      %18 = sbr.rel (%p16) target = $region8
    $region5: #{tpu_custom_call.1} parent=1 // loop_body
      %s20 = ssub.s32 %s15, 1
      %s21 = ssub.s32 %s15, 2
      %s22 = sadd.s32 %s15, 1
      %s23 = ssub.s32 %s15, %s22
      %p24 = scmp.eq.s32.totalorder %s23, 0
      %s26 = sadd.s32 %s25, 1
      %s27 = scalar_select %p24, %s25, %s26
      %p30 = pneg %p24
      %p31 = scmp.eq.s32.totalorder %s15, 1
      %p32 = por %p30, %p31
      %p33 = scmp.ne.s32.totalorder %s25, %s28
      %p34 = scmp.eq.s32.totalorder %s15, 0
      %p35 = por %p33, %p34
      %p36 = scmp.ne.s32.totalorder %s25, %s28
      %p37 = scmp.eq.s32.totalorder %s20, 1
      %p38 = por %p36, %p37
      %p39 = scmp.ne.s32.totalorder %s28, %s29
      %p40 = scmp.eq.s32.totalorder %s20, 0
      %p41 = por %p39, %p40
      %p42 = scmp.ne.s32.totalorder %s28, %s29
      %p43 = scmp.eq.s32.totalorder %s21, 1
      %p44 = por %p42, %p43
      %p46 = scmp.ne.s32.totalorder %s29, %s45
      %p47 = scmp.eq.s32.totalorder %s21, 0
      %p48 = por %p46, %p47
      %s50 = sadd.s32 %s49, 1
      %p53 = scmp.eq.s32.totalorder %s15, 1
      %p54 = scmp.ne.s32.totalorder %s49, %s51
      %p55 = scmp.eq.s32.totalorder %s15, 0
      %p56 = por %p54, %p55
      %p57 = scmp.ne.s32.totalorder %s49, %s51
      %p58 = scmp.eq.s32.totalorder %s20, 1
      %p59 = por %p57, %p58
      %p60 = scmp.ne.s32.totalorder %s51, %s52
      %p61 = scmp.eq.s32.totalorder %s20, 0
      %p62 = por %p60, %p61
      %p63 = scmp.ne.s32.totalorder %s51, %s52
      %p64 = scmp.eq.s32.totalorder %s21, 1
      %p65 = por %p63, %p64
      %p67 = scmp.ne.s32.totalorder %s52, %s66
      %p68 = scmp.eq.s32.totalorder %s21, 0
      %p69 = por %p67, %p68
      %s71 = sadd.s32 %s70, 1
      %p74 = scmp.eq.s32.totalorder %s15, 1
      %p75 = scmp.ne.s32.totalorder %s70, %s72
      %p76 = scmp.eq.s32.totalorder %s15, 0
      %p77 = por %p75, %p76
      %p78 = scmp.ne.s32.totalorder %s70, %s72
      %p79 = scmp.eq.s32.totalorder %s20, 1
      %p80 = por %p78, %p79
      %p81 = scmp.ne.s32.totalorder %s72, %s73
      %p82 = scmp.eq.s32.totalorder %s20, 0
      %p83 = por %p81, %p82
      %p84 = scmp.ne.s32.totalorder %s72, %s73
      %p85 = scmp.eq.s32.totalorder %s21, 1
      %p86 = por %p84, %p85
      %p88 = scmp.ne.s32.totalorder %s73, %s87
      %p89 = scmp.eq.s32.totalorder %s21, 0
      %p90 = por %p88, %p89
      %s92 = sadd.s32 %s91, 1
      %p95 = scmp.eq.s32.totalorder %s15, 1
      %p96 = scmp.ne.s32.totalorder %s91, %s93
      %p97 = scmp.eq.s32.totalorder %s15, 0
      %p98 = por %p96, %p97
      %p99 = scmp.ne.s32.totalorder %s91, %s93
      %p100 = scmp.eq.s32.totalorder %s20, 1
      %p101 = por %p99, %p100
      %p102 = scmp.ne.s32.totalorder %s93, %s94
      %p103 = scmp.eq.s32.totalorder %s20, 0
      %p104 = por %p102, %p103
      %p105 = scmp.ne.s32.totalorder %s93, %s94
      %p106 = scmp.eq.s32.totalorder %s21, 1
      %p107 = por %p105, %p106
      %p109 = scmp.ne.s32.totalorder %s94, %s108
      %p110 = scmp.eq.s32.totalorder %s21, 0
      %p111 = por %p109, %p110
      %s113 = sadd.s32 %s112, 1
      %p116 = scmp.eq.s32.totalorder %s15, 1
      %p117 = scmp.ne.s32.totalorder %s112, %s114
      %p118 = scmp.eq.s32.totalorder %s15, 0
      %p119 = por %p117, %p118
      %p120 = scmp.ne.s32.totalorder %s112, %s114
      %p121 = scmp.eq.s32.totalorder %s20, 1
      %p122 = por %p120, %p121
      %p123 = scmp.ne.s32.totalorder %s114, %s115
      %p124 = scmp.eq.s32.totalorder %s20, 0
      %p125 = por %p123, %p124
      %p126 = scmp.ne.s32.totalorder %s114, %s115
      %p127 = scmp.eq.s32.totalorder %s21, 1
      %p128 = por %p126, %p127
      %p130 = scmp.ne.s32.totalorder %s115, %s129
      %p131 = scmp.eq.s32.totalorder %s21, 0
      %p132 = por %p130, %p131
      %s133 = ssub.s32 %s15, %s22
      %p134 = scmp.eq.s32.totalorder %s133, 0
      %s136 = sadd.s32 %s135, 1
      %s137 = scalar_select %p134, %s135, %s136
      %p140 = pneg %p134
      %p141 = scmp.eq.s32.totalorder %s15, 1
      %p142 = por %p140, %p141
      %p143 = scmp.ne.s32.totalorder %s135, %s138
      %p144 = scmp.eq.s32.totalorder %s15, 0
      %p145 = por %p143, %p144
      %p146 = scmp.ne.s32.totalorder %s135, %s138
      %p147 = scmp.eq.s32.totalorder %s20, 1
      %p148 = por %p146, %p147
      %p149 = scmp.ne.s32.totalorder %s138, %s139
      %p150 = scmp.eq.s32.totalorder %s20, 0
      %p151 = por %p149, %p150
      %p152 = scmp.ne.s32.totalorder %s138, %s139
      %p153 = scmp.eq.s32.totalorder %s21, 1
      %p154 = por %p152, %p153
      %p156 = scmp.ne.s32.totalorder %s139, %s155
      %p157 = scmp.eq.s32.totalorder %s21, 0
      %p158 = por %p156, %p157
      %p159 = scmp.le.s32.totalorder 1, %s15
      %p160 = scmp.lt.s32.totalorder %s15, 3
      %p161 = pnand %p159, %p160
      %p162 = pneg %p161
      // Predicated region
      $region9: #{tpu_custom_call.1} parent=5 // pred_check
        _
      $region10: #{tpu_custom_call.1} parent=5 // pred_check_branch
        %164 = sbr.rel (%p161) target = $region12
      $region11: #{tpu_custom_call.1} parent=5 // pred_region
        %s165 = ssub.s32 %s15, 1
        // Predicated region
        $region13: #{tpu_custom_call.1} parent=11 // pred_check
          %p166 = pneg %p62
        $region14: #{tpu_custom_call.1} parent=11 // pred_check_branch
          %168 = sbr.rel (%p166) target = $region16
        $region15: #{tpu_custom_call.1} parent=11 // pred_region
          _
        $region16: #{tpu_custom_call.1} parent=11 // pred_fallthru
          _
        // Predicated region
        $region17: #{tpu_custom_call.1} parent=11 // pred_check
          %p169 = pneg %p83
        $region18: #{tpu_custom_call.1} parent=11 // pred_check_branch
          %171 = sbr.rel (%p169) target = $region20
        $region19: #{tpu_custom_call.1} parent=11 // pred_region
          _
        $region20: #{tpu_custom_call.1} parent=11 // pred_fallthru
          _
        // Predicated region
        $region21: #{tpu_custom_call.1} parent=11 // pred_check
          %p172 = pneg %p104
        $region22: #{tpu_custom_call.1} parent=11 // pred_check_branch
          %174 = sbr.rel (%p172) target = $region24
        $region23: #{tpu_custom_call.1} parent=11 // pred_region
          %s176 = ssub.s32 18432, 18432
          %177 = vsyncadd [#allocation7], %s176
          %s178 = sshll.u32 [#allocation6], 4
          %s179 = int_to_ptr.vmem [resolvable:$true] %s178
          %184 = dma.hbm_to_vmem [thread:$0]  %s3, 18432, %s179, [#allocation7], 128, 128, 8
        $region24: #{tpu_custom_call.1} parent=11 // pred_fallthru
          _
        // Predicated region
        $region25: #{tpu_custom_call.1} parent=11 // pred_check
          %p185 = pneg %p125
        $region26: #{tpu_custom_call.1} parent=11 // pred_check_branch
          %187 = sbr.rel (%p185) target = $region28
        $region27: #{tpu_custom_call.1} parent=11 // pred_region
          _
        $region28: #{tpu_custom_call.1} parent=11 // pred_fallthru
          _
      $region12: #{tpu_custom_call.1} parent=5 // pred_fallthru
        _
      %p188 = scmp.lt.s32.totalorder %s15, 2
      // Predicated region
      $region29: #{tpu_custom_call.1} parent=5 // pred_check
        %p189 = pneg %p188
      $region30: #{tpu_custom_call.1} parent=5 // pred_check_branch
        %191 = sbr.rel (%p189) target = $region32
      $region31: #{tpu_custom_call.1} parent=5 // pred_region
        // Predicated region
        $region33: #{tpu_custom_call.1} parent=31 // pred_check
          %p192 = pneg %p35
        $region34: #{tpu_custom_call.1} parent=31 // pred_check_branch
          %194 = sbr.rel (%p192) target = $region36
        $region35: #{tpu_custom_call.1} parent=31 // pred_region
          %p195 = scmp.lt.s32.totalorder %s15, 1
          %s196 = scalar_select %p195, %s15, 1
          %s197 = smul.addr %s196, 32
          %s198 = smul.addr %s197, 8
          %s199 = scalar_lea.vmem %s0, %s198
        $region36: #{tpu_custom_call.1} parent=31 // pred_fallthru
          _
      $region32: #{tpu_custom_call.1} parent=5 // pred_fallthru
        _
      %p200 = scmp.le.s32.totalorder 1, %s15
      %p201 = scmp.lt.s32.totalorder %s15, 3
      %p202 = pnand %p200, %p201
      %p203 = pneg %p202
      // Predicated region
      $region37: #{tpu_custom_call.1} parent=5 // pred_check
        _
      $region38: #{tpu_custom_call.1} parent=5 // pred_check_branch
        %205 = sbr.rel (%p202) target = $region40
      $region39: #{tpu_custom_call.1} parent=5 // pred_region
        %s206 = ssub.s32 %s15, 1
        // Predicated region
        $region41: #{tpu_custom_call.1} parent=39 // pred_check
          %p207 = pneg %p104
        $region42: #{tpu_custom_call.1} parent=39 // pred_check_branch
          %209 = sbr.rel (%p207) target = $region44
        $region43: #{tpu_custom_call.1} parent=39 // pred_region
          %210 = dma.done [#allocation7], 18432
        $region44: #{tpu_custom_call.1} parent=39 // pred_fallthru
          _
        %p211 = scmp.lt.s32.totalorder %s20, 1
        %s212 = scalar_select %p211, %s20, 1
        %s213 = smul.addr %s212, 32
        %s214 = smul.addr %s213, 8
        %s215 = scalar_lea.vmem %s0, %s214
        %p216 = pneg %p41
        %p217 = pneg %p38
        %p218 = pneg %p62
        %p219 = pneg %p59
        %p220 = pneg %p83
        %p221 = pneg %p80
        %p222 = pneg %p104
        %p223 = pneg %p101
        %p224 = pneg %p125
        %p225 = pneg %p122
        %p226 = pneg %p151
        %p227 = pneg %p148
        %s228 = sand.u32 %s138, 1
        %s229 = scalar_lea.sflag [#allocation8], %s228
        %s230 = sand.u32 %s138, 1
        %s231 = smul.addr %s230, 256
        %s232 = scalar_lea.vmem [#allocation9], %s231
        %p233 = scmp.lt.s32.totalorder %s20, 1
        %s234 = scalar_select %p233, %s20, 1
        %s235 = smul.addr %s234, 32
        %s236 = smul.addr %s235, 8
        %s237 = scalar_lea.vmem %s0, %s236
        %v238 = vld [vmem:[%s237] sm:$0xff]
        %v239 = vld [vmem:[%s237 + $0x8] sm:$0xff]
        %v240 = vld [vmem:[%s237 + $0x10] sm:$0xff]
        %v241 = vld [vmem:[%s237 + $0x18] sm:$0xff]
        %v242 = vld [vmem:[%s237 + $0x20] sm:$0xff]
        %v243 = vld [vmem:[%s237 + $0x28] sm:$0xff]
        %v244 = vld [vmem:[%s237 + $0x30] sm:$0xff]
        %v245 = vld [vmem:[%s237 + $0x38] sm:$0xff]
        %v246 = vld [vmem:[%s237 + $0x40] sm:$0xff]
        %v247 = vld [vmem:[%s237 + $0x48] sm:$0xff]
        %v248 = vld [vmem:[%s237 + $0x50] sm:$0xff]
        %v249 = vld [vmem:[%s237 + $0x58] sm:$0xff]
        %v250 = vld [vmem:[%s237 + $0x60] sm:$0xff]
        %v251 = vld [vmem:[%s237 + $0x68] sm:$0xff]
        %v252 = vld [vmem:[%s237 + $0x70] sm:$0xff]
        %v253 = vld [vmem:[%s237 + $0x78] sm:$0xff]
        %v254 = vld [vmem:[%s237 + $0x80] sm:$0xff]
        %v255 = vld [vmem:[%s237 + $0x88] sm:$0xff]
        %v256 = vld [vmem:[%s237 + $0x90] sm:$0xff]
        %v257 = vld [vmem:[%s237 + $0x98] sm:$0xff]
        %v258 = vld [vmem:[%s237 + $0xa0] sm:$0xff]
        %v259 = vld [vmem:[%s237 + $0xa8] sm:$0xff]
        %v260 = vld [vmem:[%s237 + $0xb0] sm:$0xff]
        %v261 = vld [vmem:[%s237 + $0xb8] sm:$0xff]
        %v262 = vld [vmem:[%s237 + $0xc0] sm:$0xff]
        %v263 = vld [vmem:[%s237 + $0xc8] sm:$0xff]
        %v264 = vld [vmem:[%s237 + $0xd0] sm:$0xff]
        %v265 = vld [vmem:[%s237 + $0xd8] sm:$0xff]
        %v266 = vld [vmem:[%s237 + $0xe0] sm:$0xff]
        %v267 = vld [vmem:[%s237 + $0xe8] sm:$0xff]
        %v268 = vld [vmem:[%s237 + $0xf0] sm:$0xff]
        %v269 = vld [vmem:[%s237 + $0xf8] sm:$0xff]
        %s270 = scalar_lea.vmem [#allocation2], 24
        %vm271 = vcmask 31744
        %272 = vst.msk [vmem:[%s270 + $0x1] sm:$0xff] %vm271, %v238
        %273 = vst.msk [vmem:[%s270 + $0x9] sm:$0xff] %vm271, %v239
        %274 = vst.msk [vmem:[%s270 + $0x19] sm:$0xff] %vm271, %v240
        %275 = vst.msk [vmem:[%s270 + $0x21] sm:$0xff] %vm271, %v241
        %276 = vst.msk [vmem:[%s270 + $0x31] sm:$0xff] %vm271, %v242
        %277 = vst.msk [vmem:[%s270 + $0x39] sm:$0xff] %vm271, %v243
        %278 = vst.msk [vmem:[%s270 + $0x49] sm:$0xff] %vm271, %v244
        %279 = vst.msk [vmem:[%s270 + $0x51] sm:$0xff] %vm271, %v245
        %280 = vst.msk [vmem:[%s270 + $0x61] sm:$0xff] %vm271, %v246
        %281 = vst.msk [vmem:[%s270 + $0x69] sm:$0xff] %vm271, %v247
        %282 = vst.msk [vmem:[%s270 + $0x79] sm:$0xff] %vm271, %v248
        %283 = vst.msk [vmem:[%s270 + $0x81] sm:$0xff] %vm271, %v249
        %284 = vst.msk [vmem:[%s270 + $0x91] sm:$0xff] %vm271, %v250
        %285 = vst.msk [vmem:[%s270 + $0x99] sm:$0xff] %vm271, %v251
        %286 = vst.msk [vmem:[%s270 + $0xa9] sm:$0xff] %vm271, %v252
        %287 = vst.msk [vmem:[%s270 + $0xb1] sm:$0xff] %vm271, %v253
        %288 = vst.msk [vmem:[%s270 + $0xc1] sm:$0xff] %vm271, %v254
        %289 = vst.msk [vmem:[%s270 + $0xc9] sm:$0xff] %vm271, %v255
        %290 = vst.msk [vmem:[%s270 + $0xd9] sm:$0xff] %vm271, %v256
        %291 = vst.msk [vmem:[%s270 + $0xe1] sm:$0xff] %vm271, %v257
        %292 = vst.msk [vmem:[%s270 + $0xf1] sm:$0xff] %vm271, %v258
        %293 = vst.msk [vmem:[%s270 + $0xf9] sm:$0xff] %vm271, %v259
        %294 = vst.msk [vmem:[%s270 + $0x109] sm:$0xff] %vm271, %v260
        %295 = vst.msk [vmem:[%s270 + $0x111] sm:$0xff] %vm271, %v261
        %296 = vst.msk [vmem:[%s270 + $0x121] sm:$0xff] %vm271, %v262
        %297 = vst.msk [vmem:[%s270 + $0x129] sm:$0xff] %vm271, %v263
        %298 = vst.msk [vmem:[%s270 + $0x139] sm:$0xff] %vm271, %v264
        %299 = vst.msk [vmem:[%s270 + $0x141] sm:$0xff] %vm271, %v265
        %300 = vst.msk [vmem:[%s270 + $0x151] sm:$0xff] %vm271, %v266
        %301 = vst.msk [vmem:[%s270 + $0x159] sm:$0xff] %vm271, %v267
        %302 = vst.msk [vmem:[%s270 + $0x169] sm:$0xff] %vm271, %v268
        %303 = vst.msk [vmem:[%s270 + $0x171] sm:$0xff] %vm271, %v269
        %304 = vst.msk [vmem:[#allocation2 + $0x1] sm:$0xff] %vm271, %v238
        %305 = vst.msk [vmem:[#allocation2 + $0x9] sm:$0xff] %vm271, %v239
        %s306 = scalar_lea.vmem [#allocation2], 408
        %307 = vst.msk [vmem:[%s306 + $0x1] sm:$0xff] %vm271, %v268
        %308 = vst.msk [vmem:[%s306 + $0x9] sm:$0xff] %vm271, %v269
        %v309 = vld [vmem:[#allocation2 + $0x1] sm:$0x1]
        %v310 = vld [vmem:[#allocation2 + $0x19] sm:$0x1]
        %v311 = vld [vmem:[#allocation2 + $0x31] sm:$0x1]
        %v312 = vld [vmem:[#allocation2 + $0x49] sm:$0x1]
        %v313 = vld [vmem:[#allocation2 + $0x61] sm:$0x1]
        %v314 = vld [vmem:[#allocation2 + $0x79] sm:$0x1]
        %v315 = vld [vmem:[#allocation2 + $0x91] sm:$0x1]
        %v316 = vld [vmem:[#allocation2 + $0xa9] sm:$0x1]
        %v317 = vld [vmem:[#allocation2 + $0xc1] sm:$0x1]
        %v318 = vld [vmem:[#allocation2 + $0xd9] sm:$0x1]
        %v319 = vld [vmem:[#allocation2 + $0xf1] sm:$0x1]
        %v320 = vld [vmem:[#allocation2 + $0x109] sm:$0x1]
        %v321 = vld [vmem:[#allocation2 + $0x121] sm:$0x1]
        %v322 = vld [vmem:[#allocation2 + $0x139] sm:$0x1]
        %v323 = vld [vmem:[#allocation2 + $0x151] sm:$0x1]
        %v324 = vld [vmem:[#allocation2 + $0x169] sm:$0x1]
        %v325 = vld [vmem:[#allocation2 + $0x181] sm:$0x1]
        %v326 = vld [vmem:[#allocation2 + $0x199] sm:$0x1]
        %vm327 = vcmask 24576
        %328 = vst.msk [vmem:[#allocation2] sm:$0x1] %vm327, %v309
        %329 = vst.msk [vmem:[#allocation2 + $0x18] sm:$0x1] %vm327, %v310
        %330 = vst.msk [vmem:[#allocation2 + $0x30] sm:$0x1] %vm327, %v311
        %331 = vst.msk [vmem:[#allocation2 + $0x48] sm:$0x1] %vm327, %v312
        %332 = vst.msk [vmem:[#allocation2 + $0x60] sm:$0x1] %vm327, %v313
        %333 = vst.msk [vmem:[#allocation2 + $0x78] sm:$0x1] %vm327, %v314
        %334 = vst.msk [vmem:[#allocation2 + $0x90] sm:$0x1] %vm327, %v315
        %335 = vst.msk [vmem:[#allocation2 + $0xa8] sm:$0x1] %vm327, %v316
        %336 = vst.msk [vmem:[#allocation2 + $0xc0] sm:$0x1] %vm327, %v317
        %337 = vst.msk [vmem:[#allocation2 + $0xd8] sm:$0x1] %vm327, %v318
        %338 = vst.msk [vmem:[#allocation2 + $0xf0] sm:$0x1] %vm327, %v319
        %339 = vst.msk [vmem:[#allocation2 + $0x108] sm:$0x1] %vm327, %v320
        %340 = vst.msk [vmem:[#allocation2 + $0x120] sm:$0x1] %vm327, %v321
        %341 = vst.msk [vmem:[#allocation2 + $0x138] sm:$0x1] %vm327, %v322
        %342 = vst.msk [vmem:[#allocation2 + $0x150] sm:$0x1] %vm327, %v323
        %343 = vst.msk [vmem:[#allocation2 + $0x168] sm:$0x1] %vm327, %v324
        %344 = vst.msk [vmem:[#allocation2 + $0x180] sm:$0x1] %vm327, %v325
        %345 = vst.msk [vmem:[#allocation2 + $0x198] sm:$0x1] %vm327, %v326
        %v346 = vld [vmem:[#allocation2 + $0x10] sm:$0x1]
        %v347 = vld [vmem:[#allocation2 + $0x28] sm:$0x1]
        %v348 = vld [vmem:[#allocation2 + $0x40] sm:$0x1]
        %v349 = vld [vmem:[#allocation2 + $0x58] sm:$0x1]
        %v350 = vld [vmem:[#allocation2 + $0x70] sm:$0x1]
        %v351 = vld [vmem:[#allocation2 + $0x88] sm:$0x1]
        %v352 = vld [vmem:[#allocation2 + $0xa0] sm:$0x1]
        %v353 = vld [vmem:[#allocation2 + $0xb8] sm:$0x1]
        %v354 = vld [vmem:[#allocation2 + $0xd0] sm:$0x1]
        %v355 = vld [vmem:[#allocation2 + $0xe8] sm:$0x1]
        %v356 = vld [vmem:[#allocation2 + $0x100] sm:$0x1]
        %v357 = vld [vmem:[#allocation2 + $0x118] sm:$0x1]
        %v358 = vld [vmem:[#allocation2 + $0x130] sm:$0x1]
        %v359 = vld [vmem:[#allocation2 + $0x148] sm:$0x1]
        %v360 = vld [vmem:[#allocation2 + $0x160] sm:$0x1]
        %v361 = vld [vmem:[#allocation2 + $0x178] sm:$0x1]
        %v362 = vld [vmem:[#allocation2 + $0x190] sm:$0x1]
        %v363 = vld [vmem:[#allocation2 + $0x1a8] sm:$0x1]
        %364 = vst.msk [vmem:[#allocation2 + $0x11] sm:$0x1] %vm327, %v346
        %365 = vst.msk [vmem:[#allocation2 + $0x29] sm:$0x1] %vm327, %v347
        %366 = vst.msk [vmem:[#allocation2 + $0x41] sm:$0x1] %vm327, %v348
        %367 = vst.msk [vmem:[#allocation2 + $0x59] sm:$0x1] %vm327, %v349
        %368 = vst.msk [vmem:[#allocation2 + $0x71] sm:$0x1] %vm327, %v350
        %369 = vst.msk [vmem:[#allocation2 + $0x89] sm:$0x1] %vm327, %v351
        %370 = vst.msk [vmem:[#allocation2 + $0xa1] sm:$0x1] %vm327, %v352
        %371 = vst.msk [vmem:[#allocation2 + $0xb9] sm:$0x1] %vm327, %v353
        %372 = vst.msk [vmem:[#allocation2 + $0xd1] sm:$0x1] %vm327, %v354
        %373 = vst.msk [vmem:[#allocation2 + $0xe9] sm:$0x1] %vm327, %v355
        %374 = vst.msk [vmem:[#allocation2 + $0x101] sm:$0x1] %vm327, %v356
        %375 = vst.msk [vmem:[#allocation2 + $0x119] sm:$0x1] %vm327, %v357
        %376 = vst.msk [vmem:[#allocation2 + $0x131] sm:$0x1] %vm327, %v358
        %377 = vst.msk [vmem:[#allocation2 + $0x149] sm:$0x1] %vm327, %v359
        %378 = vst.msk [vmem:[#allocation2 + $0x161] sm:$0x1] %vm327, %v360
        %379 = vst.msk [vmem:[#allocation2 + $0x179] sm:$0x1] %vm327, %v361
        %380 = vst.msk [vmem:[#allocation2 + $0x191] sm:$0x1] %vm327, %v362
        %381 = vst.msk [vmem:[#allocation2 + $0x1a9] sm:$0x1] %vm327, %v363
        %v382 = vld [vmem:[#allocation2] sm:$0xff]
        %v383 = vld [vmem:[#allocation2 + $0x8] sm:$0xff]
        %v384 = vld [vmem:[#allocation2 + $0x18] sm:$0xff]
        %v385 = vld [vmem:[#allocation2 + $0x20] sm:$0xff]
        %v386 = vld [vmem:[#allocation2 + $0x30] sm:$0xff]
        %v387 = vld [vmem:[#allocation2 + $0x38] sm:$0xff]
        %v388 = vld [vmem:[#allocation2 + $0x48] sm:$0xff]
        %v389 = vld [vmem:[#allocation2 + $0x50] sm:$0xff]
        %v390 = vld [vmem:[#allocation2 + $0x60] sm:$0xff]
        %v391 = vld [vmem:[#allocation2 + $0x68] sm:$0xff]
        %v392 = vld [vmem:[#allocation2 + $0x78] sm:$0xff]
        %v393 = vld [vmem:[#allocation2 + $0x80] sm:$0xff]
        %v394 = vld [vmem:[#allocation2 + $0x90] sm:$0xff]
        %v395 = vld [vmem:[#allocation2 + $0x98] sm:$0xff]
        %v396 = vld [vmem:[#allocation2 + $0xa8] sm:$0xff]
        %v397 = vld [vmem:[#allocation2 + $0xb0] sm:$0xff]
        %v398 = vld [vmem:[#allocation2 + $0xc0] sm:$0xff]
        %v399 = vld [vmem:[#allocation2 + $0xc8] sm:$0xff]
        %v400 = vld [vmem:[#allocation2 + $0xd8] sm:$0xff]
        %v401 = vld [vmem:[#allocation2 + $0xe0] sm:$0xff]
        %v402 = vld [vmem:[#allocation2 + $0xf0] sm:$0xff]
        %v403 = vld [vmem:[#allocation2 + $0xf8] sm:$0xff]
        %v404 = vld [vmem:[#allocation2 + $0x108] sm:$0xff]
        %v405 = vld [vmem:[#allocation2 + $0x110] sm:$0xff]
        %v406 = vld [vmem:[#allocation2 + $0x120] sm:$0xff]
        %v407 = vld [vmem:[#allocation2 + $0x128] sm:$0xff]
        %v408 = vld [vmem:[#allocation2 + $0x138] sm:$0xff]
        %v409 = vld [vmem:[#allocation2 + $0x140] sm:$0xff]
        %v410 = vld [vmem:[#allocation2 + $0x150] sm:$0xff]
        %v411 = vld [vmem:[#allocation2 + $0x158] sm:$0xff]
        %v412 = vld [vmem:[#allocation2 + $0x168] sm:$0xff]
        %v413 = vld [vmem:[#allocation2 + $0x170] sm:$0xff]
        %414 = vst.msk [vmem:[#allocation4] sm:$0xff] %vm271, %v382
        %415 = vst.msk [vmem:[#allocation4 + $0x8] sm:$0xff] %vm271, %v383
        %416 = vst.msk [vmem:[#allocation4 + $0x10] sm:$0xff] %vm271, %v384
        %417 = vst.msk [vmem:[#allocation4 + $0x18] sm:$0xff] %vm271, %v385
        %418 = vst.msk [vmem:[#allocation4 + $0x20] sm:$0xff] %vm271, %v386
        %419 = vst.msk [vmem:[#allocation4 + $0x28] sm:$0xff] %vm271, %v387
        %420 = vst.msk [vmem:[#allocation4 + $0x30] sm:$0xff] %vm271, %v388
        %421 = vst.msk [vmem:[#allocation4 + $0x38] sm:$0xff] %vm271, %v389
        %422 = vst.msk [vmem:[#allocation4 + $0x40] sm:$0xff] %vm271, %v390
        %423 = vst.msk [vmem:[#allocation4 + $0x48] sm:$0xff] %vm271, %v391
        %424 = vst.msk [vmem:[#allocation4 + $0x50] sm:$0xff] %vm271, %v392
        %425 = vst.msk [vmem:[#allocation4 + $0x58] sm:$0xff] %vm271, %v393
        %426 = vst.msk [vmem:[#allocation4 + $0x60] sm:$0xff] %vm271, %v394
        %427 = vst.msk [vmem:[#allocation4 + $0x68] sm:$0xff] %vm271, %v395
        %428 = vst.msk [vmem:[#allocation4 + $0x70] sm:$0xff] %vm271, %v396
        %429 = vst.msk [vmem:[#allocation4 + $0x78] sm:$0xff] %vm271, %v397
        %430 = vst.msk [vmem:[#allocation4 + $0x80] sm:$0xff] %vm271, %v398
        %431 = vst.msk [vmem:[#allocation4 + $0x88] sm:$0xff] %vm271, %v399
        %432 = vst.msk [vmem:[#allocation4 + $0x90] sm:$0xff] %vm271, %v400
        %433 = vst.msk [vmem:[#allocation4 + $0x98] sm:$0xff] %vm271, %v401
        %434 = vst.msk [vmem:[#allocation4 + $0xa0] sm:$0xff] %vm271, %v402
        %435 = vst.msk [vmem:[#allocation4 + $0xa8] sm:$0xff] %vm271, %v403
        %436 = vst.msk [vmem:[#allocation4 + $0xb0] sm:$0xff] %vm271, %v404
        %437 = vst.msk [vmem:[#allocation4 + $0xb8] sm:$0xff] %vm271, %v405
        %438 = vst.msk [vmem:[#allocation4 + $0xc0] sm:$0xff] %vm271, %v406
        %439 = vst.msk [vmem:[#allocation4 + $0xc8] sm:$0xff] %vm271, %v407
        %440 = vst.msk [vmem:[#allocation4 + $0xd0] sm:$0xff] %vm271, %v408
        %441 = vst.msk [vmem:[#allocation4 + $0xd8] sm:$0xff] %vm271, %v409
        %442 = vst.msk [vmem:[#allocation4 + $0xe0] sm:$0xff] %vm271, %v410
        %443 = vst.msk [vmem:[#allocation4 + $0xe8] sm:$0xff] %vm271, %v411
        %444 = vst.msk [vmem:[#allocation4 + $0xf0] sm:$0xff] %vm271, %v412
        %445 = vst.msk [vmem:[#allocation4 + $0xf8] sm:$0xff] %vm271, %v413
        %v446 = vld [vmem:[#allocation2 + $0x1] sm:$0xff]
        %v447 = vld [vmem:[#allocation2 + $0x9] sm:$0xff]
        %v448 = vld [vmem:[#allocation2 + $0x19] sm:$0xff]
        %v449 = vld [vmem:[#allocation2 + $0x21] sm:$0xff]
        %v450 = vld [vmem:[#allocation2 + $0x31] sm:$0xff]
        %v451 = vld [vmem:[#allocation2 + $0x39] sm:$0xff]
        %v452 = vld [vmem:[#allocation2 + $0x49] sm:$0xff]
        %v453 = vld [vmem:[#allocation2 + $0x51] sm:$0xff]
        %v454 = vld [vmem:[#allocation2 + $0x61] sm:$0xff]
        %v455 = vld [vmem:[#allocation2 + $0x69] sm:$0xff]
        %v456 = vld [vmem:[#allocation2 + $0x79] sm:$0xff]
        %v457 = vld [vmem:[#allocation2 + $0x81] sm:$0xff]
        %v458 = vld [vmem:[#allocation2 + $0x91] sm:$0xff]
        %v459 = vld [vmem:[#allocation2 + $0x99] sm:$0xff]
        %v460 = vld [vmem:[#allocation2 + $0xa9] sm:$0xff]
        %v461 = vld [vmem:[#allocation2 + $0xb1] sm:$0xff]
        %v462 = vld [vmem:[#allocation2 + $0xc1] sm:$0xff]
        %v463 = vld [vmem:[#allocation2 + $0xc9] sm:$0xff]
        %v464 = vld [vmem:[#allocation2 + $0xd9] sm:$0xff]
        %v465 = vld [vmem:[#allocation2 + $0xe1] sm:$0xff]
        %v466 = vld [vmem:[#allocation2 + $0xf1] sm:$0xff]
        %v467 = vld [vmem:[#allocation2 + $0xf9] sm:$0xff]
        %v468 = vld [vmem:[#allocation2 + $0x109] sm:$0xff]
        %v469 = vld [vmem:[#allocation2 + $0x111] sm:$0xff]
        %v470 = vld [vmem:[#allocation2 + $0x121] sm:$0xff]
        %v471 = vld [vmem:[#allocation2 + $0x129] sm:$0xff]
        %v472 = vld [vmem:[#allocation2 + $0x139] sm:$0xff]
        %v473 = vld [vmem:[#allocation2 + $0x141] sm:$0xff]
        %v474 = vld [vmem:[#allocation2 + $0x151] sm:$0xff]
        %v475 = vld [vmem:[#allocation2 + $0x159] sm:$0xff]
        %v476 = vld [vmem:[#allocation2 + $0x169] sm:$0xff]
        %v477 = vld [vmem:[#allocation2 + $0x171] sm:$0xff]
        %510 = vrot.lane.b32.xlu0 %v446, 4
        %v511 = vpop.permute.xlu0 %510
        %512 = vrot.lane.b32.xlu0 %v447, 4
        %v513 = vpop.permute.xlu0 %512
        %514 = vrot.lane.b32.xlu0 %v448, 4
        %v515 = vpop.permute.xlu0 %514
        %516 = vrot.lane.b32.xlu0 %v449, 4
        %v517 = vpop.permute.xlu0 %516
        %518 = vrot.lane.b32.xlu0 %v450, 4
        %v519 = vpop.permute.xlu0 %518
        %520 = vrot.lane.b32.xlu0 %v451, 4
        %v521 = vpop.permute.xlu0 %520
        %522 = vrot.lane.b32.xlu0 %v452, 4
        %v523 = vpop.permute.xlu0 %522
        %524 = vrot.lane.b32.xlu0 %v453, 4
        %v525 = vpop.permute.xlu0 %524
        %526 = vrot.lane.b32.xlu0 %v454, 4
        %v527 = vpop.permute.xlu0 %526
        %528 = vrot.lane.b32.xlu0 %v455, 4
        %v529 = vpop.permute.xlu0 %528
        %530 = vrot.lane.b32.xlu0 %v456, 4
        %v531 = vpop.permute.xlu0 %530
        %532 = vrot.lane.b32.xlu0 %v457, 4
        %v533 = vpop.permute.xlu0 %532
        %534 = vrot.lane.b32.xlu0 %v458, 4
        %v535 = vpop.permute.xlu0 %534
        %536 = vrot.lane.b32.xlu0 %v459, 4
        %v537 = vpop.permute.xlu0 %536
        %538 = vrot.lane.b32.xlu0 %v460, 4
        %v539 = vpop.permute.xlu0 %538
        %540 = vrot.lane.b32.xlu0 %v461, 4
        %v541 = vpop.permute.xlu0 %540
        %542 = vrot.lane.b32.xlu0 %v462, 4
        %v543 = vpop.permute.xlu0 %542
        %544 = vrot.lane.b32.xlu0 %v463, 4
        %v545 = vpop.permute.xlu0 %544
        %546 = vrot.lane.b32.xlu0 %v464, 4
        %v547 = vpop.permute.xlu0 %546
        %548 = vrot.lane.b32.xlu0 %v465, 4
        %v549 = vpop.permute.xlu0 %548
        %550 = vrot.lane.b32.xlu0 %v466, 4
        %v551 = vpop.permute.xlu0 %550
        %552 = vrot.lane.b32.xlu0 %v467, 4
        %v553 = vpop.permute.xlu0 %552
        %554 = vrot.lane.b32.xlu0 %v468, 4
        %v555 = vpop.permute.xlu0 %554
        %556 = vrot.lane.b32.xlu0 %v469, 4
        %v557 = vpop.permute.xlu0 %556
        %558 = vrot.lane.b32.xlu0 %v470, 4
        %v559 = vpop.permute.xlu0 %558
        %560 = vrot.lane.b32.xlu0 %v471, 4
        %v561 = vpop.permute.xlu0 %560
        %562 = vrot.lane.b32.xlu0 %v472, 4
        %v563 = vpop.permute.xlu0 %562
        %564 = vrot.lane.b32.xlu0 %v473, 4
        %v565 = vpop.permute.xlu0 %564
        %566 = vrot.lane.b32.xlu0 %v474, 4
        %v567 = vpop.permute.xlu0 %566
        %568 = vrot.lane.b32.xlu0 %v475, 4
        %v569 = vpop.permute.xlu0 %568
        %570 = vrot.lane.b32.xlu0 %v476, 4
        %v571 = vpop.permute.xlu0 %570
        %572 = vrot.lane.b32.xlu0 %v477, 4
        %v573 = vpop.permute.xlu0 %572
        %vm606 = vcmask 64544
        %607 = vst.msk [vmem:[#allocation4] sm:$0xff] %vm606, %v511
        %608 = vst.msk [vmem:[#allocation4 + $0x8] sm:$0xff] %vm606, %v513
        %609 = vst.msk [vmem:[#allocation4 + $0x10] sm:$0xff] %vm606, %v515
        %610 = vst.msk [vmem:[#allocation4 + $0x18] sm:$0xff] %vm606, %v517
        %611 = vst.msk [vmem:[#allocation4 + $0x20] sm:$0xff] %vm606, %v519
        %612 = vst.msk [vmem:[#allocation4 + $0x28] sm:$0xff] %vm606, %v521
        %613 = vst.msk [vmem:[#allocation4 + $0x30] sm:$0xff] %vm606, %v523
        %614 = vst.msk [vmem:[#allocation4 + $0x38] sm:$0xff] %vm606, %v525
        %615 = vst.msk [vmem:[#allocation4 + $0x40] sm:$0xff] %vm606, %v527
        %616 = vst.msk [vmem:[#allocation4 + $0x48] sm:$0xff] %vm606, %v529
        %617 = vst.msk [vmem:[#allocation4 + $0x50] sm:$0xff] %vm606, %v531
        %618 = vst.msk [vmem:[#allocation4 + $0x58] sm:$0xff] %vm606, %v533
        %619 = vst.msk [vmem:[#allocation4 + $0x60] sm:$0xff] %vm606, %v535
        %620 = vst.msk [vmem:[#allocation4 + $0x68] sm:$0xff] %vm606, %v537
        %621 = vst.msk [vmem:[#allocation4 + $0x70] sm:$0xff] %vm606, %v539
        %622 = vst.msk [vmem:[#allocation4 + $0x78] sm:$0xff] %vm606, %v541
        %623 = vst.msk [vmem:[#allocation4 + $0x80] sm:$0xff] %vm606, %v543
        %624 = vst.msk [vmem:[#allocation4 + $0x88] sm:$0xff] %vm606, %v545
        %625 = vst.msk [vmem:[#allocation4 + $0x90] sm:$0xff] %vm606, %v547
        %626 = vst.msk [vmem:[#allocation4 + $0x98] sm:$0xff] %vm606, %v549
        %627 = vst.msk [vmem:[#allocation4 + $0xa0] sm:$0xff] %vm606, %v551
        %628 = vst.msk [vmem:[#allocation4 + $0xa8] sm:$0xff] %vm606, %v553
        %629 = vst.msk [vmem:[#allocation4 + $0xb0] sm:$0xff] %vm606, %v555
        %630 = vst.msk [vmem:[#allocation4 + $0xb8] sm:$0xff] %vm606, %v557
        %631 = vst.msk [vmem:[#allocation4 + $0xc0] sm:$0xff] %vm606, %v559
        %632 = vst.msk [vmem:[#allocation4 + $0xc8] sm:$0xff] %vm606, %v561
        %633 = vst.msk [vmem:[#allocation4 + $0xd0] sm:$0xff] %vm606, %v563
        %634 = vst.msk [vmem:[#allocation4 + $0xd8] sm:$0xff] %vm606, %v565
        %635 = vst.msk [vmem:[#allocation4 + $0xe0] sm:$0xff] %vm606, %v567
        %636 = vst.msk [vmem:[#allocation4 + $0xe8] sm:$0xff] %vm606, %v569
        %637 = vst.msk [vmem:[#allocation4 + $0xf0] sm:$0xff] %vm606, %v571
        %638 = vst.msk [vmem:[#allocation4 + $0xf8] sm:$0xff] %vm606, %v573
        %v639 = vld [vmem:[#allocation2 + $0x2] sm:$0xff]
        %v640 = vld [vmem:[#allocation2 + $0xa] sm:$0xff]
        %v641 = vld [vmem:[#allocation2 + $0x1a] sm:$0xff]
        %v642 = vld [vmem:[#allocation2 + $0x22] sm:$0xff]
        %v643 = vld [vmem:[#allocation2 + $0x32] sm:$0xff]
        %v644 = vld [vmem:[#allocation2 + $0x3a] sm:$0xff]
        %v645 = vld [vmem:[#allocation2 + $0x4a] sm:$0xff]
        %v646 = vld [vmem:[#allocation2 + $0x52] sm:$0xff]
        %v647 = vld [vmem:[#allocation2 + $0x62] sm:$0xff]
        %v648 = vld [vmem:[#allocation2 + $0x6a] sm:$0xff]
        %v649 = vld [vmem:[#allocation2 + $0x7a] sm:$0xff]
        %v650 = vld [vmem:[#allocation2 + $0x82] sm:$0xff]
        %v651 = vld [vmem:[#allocation2 + $0x92] sm:$0xff]
        %v652 = vld [vmem:[#allocation2 + $0x9a] sm:$0xff]
        %v653 = vld [vmem:[#allocation2 + $0xaa] sm:$0xff]
        %v654 = vld [vmem:[#allocation2 + $0xb2] sm:$0xff]
        %v655 = vld [vmem:[#allocation2 + $0xc2] sm:$0xff]
        %v656 = vld [vmem:[#allocation2 + $0xca] sm:$0xff]
        %v657 = vld [vmem:[#allocation2 + $0xda] sm:$0xff]
        %v658 = vld [vmem:[#allocation2 + $0xe2] sm:$0xff]
        %v659 = vld [vmem:[#allocation2 + $0xf2] sm:$0xff]
        %v660 = vld [vmem:[#allocation2 + $0xfa] sm:$0xff]
        %v661 = vld [vmem:[#allocation2 + $0x10a] sm:$0xff]
        %v662 = vld [vmem:[#allocation2 + $0x112] sm:$0xff]
        %v663 = vld [vmem:[#allocation2 + $0x122] sm:$0xff]
        %v664 = vld [vmem:[#allocation2 + $0x12a] sm:$0xff]
        %v665 = vld [vmem:[#allocation2 + $0x13a] sm:$0xff]
        %v666 = vld [vmem:[#allocation2 + $0x142] sm:$0xff]
        %v667 = vld [vmem:[#allocation2 + $0x152] sm:$0xff]
        %v668 = vld [vmem:[#allocation2 + $0x15a] sm:$0xff]
        %v669 = vld [vmem:[#allocation2 + $0x16a] sm:$0xff]
        %v670 = vld [vmem:[#allocation2 + $0x172] sm:$0xff]
        %703 = vrot.lane.b32.xlu0 %v639, 8
        %v704 = vpop.permute.xlu0 %703
        %705 = vrot.lane.b32.xlu0 %v640, 8
        %v706 = vpop.permute.xlu0 %705
        %707 = vrot.lane.b32.xlu0 %v641, 8
        %v708 = vpop.permute.xlu0 %707
        %709 = vrot.lane.b32.xlu0 %v642, 8
        %v710 = vpop.permute.xlu0 %709
        %711 = vrot.lane.b32.xlu0 %v643, 8
        %v712 = vpop.permute.xlu0 %711
        %713 = vrot.lane.b32.xlu0 %v644, 8
        %v714 = vpop.permute.xlu0 %713
        %715 = vrot.lane.b32.xlu0 %v645, 8
        %v716 = vpop.permute.xlu0 %715
        %717 = vrot.lane.b32.xlu0 %v646, 8
        %v718 = vpop.permute.xlu0 %717
        %719 = vrot.lane.b32.xlu0 %v647, 8
        %v720 = vpop.permute.xlu0 %719
        %721 = vrot.lane.b32.xlu0 %v648, 8
        %v722 = vpop.permute.xlu0 %721
        %723 = vrot.lane.b32.xlu0 %v649, 8
        %v724 = vpop.permute.xlu0 %723
        %725 = vrot.lane.b32.xlu0 %v650, 8
        %v726 = vpop.permute.xlu0 %725
        %727 = vrot.lane.b32.xlu0 %v651, 8
        %v728 = vpop.permute.xlu0 %727
        %729 = vrot.lane.b32.xlu0 %v652, 8
        %v730 = vpop.permute.xlu0 %729
        %731 = vrot.lane.b32.xlu0 %v653, 8
        %v732 = vpop.permute.xlu0 %731
        %733 = vrot.lane.b32.xlu0 %v654, 8
        %v734 = vpop.permute.xlu0 %733
        %735 = vrot.lane.b32.xlu0 %v655, 8
        %v736 = vpop.permute.xlu0 %735
        %737 = vrot.lane.b32.xlu0 %v656, 8
        %v738 = vpop.permute.xlu0 %737
        %739 = vrot.lane.b32.xlu0 %v657, 8
        %v740 = vpop.permute.xlu0 %739
        %741 = vrot.lane.b32.xlu0 %v658, 8
        %v742 = vpop.permute.xlu0 %741
        %743 = vrot.lane.b32.xlu0 %v659, 8
        %v744 = vpop.permute.xlu0 %743
        %745 = vrot.lane.b32.xlu0 %v660, 8
        %v746 = vpop.permute.xlu0 %745
        %747 = vrot.lane.b32.xlu0 %v661, 8
        %v748 = vpop.permute.xlu0 %747
        %749 = vrot.lane.b32.xlu0 %v662, 8
        %v750 = vpop.permute.xlu0 %749
        %751 = vrot.lane.b32.xlu0 %v663, 8
        %v752 = vpop.permute.xlu0 %751
        %753 = vrot.lane.b32.xlu0 %v664, 8
        %v754 = vpop.permute.xlu0 %753
        %755 = vrot.lane.b32.xlu0 %v665, 8
        %v756 = vpop.permute.xlu0 %755
        %757 = vrot.lane.b32.xlu0 %v666, 8
        %v758 = vpop.permute.xlu0 %757
        %759 = vrot.lane.b32.xlu0 %v667, 8
        %v760 = vpop.permute.xlu0 %759
        %761 = vrot.lane.b32.xlu0 %v668, 8
        %v762 = vpop.permute.xlu0 %761
        %763 = vrot.lane.b32.xlu0 %v669, 8
        %v764 = vpop.permute.xlu0 %763
        %765 = vrot.lane.b32.xlu0 %v670, 8
        %v766 = vpop.permute.xlu0 %765
        %vm799 = vcmask 97344
        %800 = vst.msk [vmem:[#allocation4] sm:$0xff] %vm799, %v704
        %801 = vst.msk [vmem:[#allocation4 + $0x8] sm:$0xff] %vm799, %v706
        %802 = vst.msk [vmem:[#allocation4 + $0x10] sm:$0xff] %vm799, %v708
        %803 = vst.msk [vmem:[#allocation4 + $0x18] sm:$0xff] %vm799, %v710
        %804 = vst.msk [vmem:[#allocation4 + $0x20] sm:$0xff] %vm799, %v712
        %805 = vst.msk [vmem:[#allocation4 + $0x28] sm:$0xff] %vm799, %v714
        %806 = vst.msk [vmem:[#allocation4 + $0x30] sm:$0xff] %vm799, %v716
        %807 = vst.msk [vmem:[#allocation4 + $0x38] sm:$0xff] %vm799, %v718
        %808 = vst.msk [vmem:[#allocation4 + $0x40] sm:$0xff] %vm799, %v720
        %809 = vst.msk [vmem:[#allocation4 + $0x48] sm:$0xff] %vm799, %v722
        %810 = vst.msk [vmem:[#allocation4 + $0x50] sm:$0xff] %vm799, %v724
        %811 = vst.msk [vmem:[#allocation4 + $0x58] sm:$0xff] %vm799, %v726
        %812 = vst.msk [vmem:[#allocation4 + $0x60] sm:$0xff] %vm799, %v728
        %813 = vst.msk [vmem:[#allocation4 + $0x68] sm:$0xff] %vm799, %v730
        %814 = vst.msk [vmem:[#allocation4 + $0x70] sm:$0xff] %vm799, %v732
        %815 = vst.msk [vmem:[#allocation4 + $0x78] sm:$0xff] %vm799, %v734
        %816 = vst.msk [vmem:[#allocation4 + $0x80] sm:$0xff] %vm799, %v736
        %817 = vst.msk [vmem:[#allocation4 + $0x88] sm:$0xff] %vm799, %v738
        %818 = vst.msk [vmem:[#allocation4 + $0x90] sm:$0xff] %vm799, %v740
        %819 = vst.msk [vmem:[#allocation4 + $0x98] sm:$0xff] %vm799, %v742
        %820 = vst.msk [vmem:[#allocation4 + $0xa0] sm:$0xff] %vm799, %v744
        %821 = vst.msk [vmem:[#allocation4 + $0xa8] sm:$0xff] %vm799, %v746
        %822 = vst.msk [vmem:[#allocation4 + $0xb0] sm:$0xff] %vm799, %v748
        %823 = vst.msk [vmem:[#allocation4 + $0xb8] sm:$0xff] %vm799, %v750
        %824 = vst.msk [vmem:[#allocation4 + $0xc0] sm:$0xff] %vm799, %v752
        %825 = vst.msk [vmem:[#allocation4 + $0xc8] sm:$0xff] %vm799, %v754
        %826 = vst.msk [vmem:[#allocation4 + $0xd0] sm:$0xff] %vm799, %v756
        %827 = vst.msk [vmem:[#allocation4 + $0xd8] sm:$0xff] %vm799, %v758
        %828 = vst.msk [vmem:[#allocation4 + $0xe0] sm:$0xff] %vm799, %v760
        %829 = vst.msk [vmem:[#allocation4 + $0xe8] sm:$0xff] %vm799, %v762
        %830 = vst.msk [vmem:[#allocation4 + $0xf0] sm:$0xff] %vm799, %v764
        %831 = vst.msk [vmem:[#allocation4 + $0xf8] sm:$0xff] %vm799, %v766
        %v832 = vld [vmem:[%s270] sm:$0xff]
        %v833 = vld [vmem:[%s270 + $0x8] sm:$0xff]
        %v834 = vld [vmem:[%s270 + $0x18] sm:$0xff]
        %v835 = vld [vmem:[%s270 + $0x20] sm:$0xff]
        %v836 = vld [vmem:[%s270 + $0x30] sm:$0xff]
        %v837 = vld [vmem:[%s270 + $0x38] sm:$0xff]
        %v838 = vld [vmem:[%s270 + $0x48] sm:$0xff]
        %v839 = vld [vmem:[%s270 + $0x50] sm:$0xff]
        %v840 = vld [vmem:[%s270 + $0x60] sm:$0xff]
        %v841 = vld [vmem:[%s270 + $0x68] sm:$0xff]
        %v842 = vld [vmem:[%s270 + $0x78] sm:$0xff]
        %v843 = vld [vmem:[%s270 + $0x80] sm:$0xff]
        %v844 = vld [vmem:[%s270 + $0x90] sm:$0xff]
        %v845 = vld [vmem:[%s270 + $0x98] sm:$0xff]
        %v846 = vld [vmem:[%s270 + $0xa8] sm:$0xff]
        %v847 = vld [vmem:[%s270 + $0xb0] sm:$0xff]
        %v848 = vld [vmem:[%s270 + $0xc0] sm:$0xff]
        %v849 = vld [vmem:[%s270 + $0xc8] sm:$0xff]
        %v850 = vld [vmem:[%s270 + $0xd8] sm:$0xff]
        %v851 = vld [vmem:[%s270 + $0xe0] sm:$0xff]
        %v852 = vld [vmem:[%s270 + $0xf0] sm:$0xff]
        %v853 = vld [vmem:[%s270 + $0xf8] sm:$0xff]
        %v854 = vld [vmem:[%s270 + $0x108] sm:$0xff]
        %v855 = vld [vmem:[%s270 + $0x110] sm:$0xff]
        %v856 = vld [vmem:[%s270 + $0x120] sm:$0xff]
        %v857 = vld [vmem:[%s270 + $0x128] sm:$0xff]
        %v858 = vld [vmem:[%s270 + $0x138] sm:$0xff]
        %v859 = vld [vmem:[%s270 + $0x140] sm:$0xff]
        %v860 = vld [vmem:[%s270 + $0x150] sm:$0xff]
        %v861 = vld [vmem:[%s270 + $0x158] sm:$0xff]
        %v862 = vld [vmem:[%s270 + $0x168] sm:$0xff]
        %v863 = vld [vmem:[%s270 + $0x170] sm:$0xff]
        %896 = vrot.lane.b32.xlu0 %v832, 12
        %v897 = vpop.permute.xlu0 %896
        %898 = vrot.lane.b32.xlu0 %v833, 12
        %v899 = vpop.permute.xlu0 %898
        %900 = vrot.lane.b32.xlu0 %v834, 12
        %v901 = vpop.permute.xlu0 %900
        %902 = vrot.lane.b32.xlu0 %v835, 12
        %v903 = vpop.permute.xlu0 %902
        %904 = vrot.lane.b32.xlu0 %v836, 12
        %v905 = vpop.permute.xlu0 %904
        %906 = vrot.lane.b32.xlu0 %v837, 12
        %v907 = vpop.permute.xlu0 %906
        %908 = vrot.lane.b32.xlu0 %v838, 12
        %v909 = vpop.permute.xlu0 %908
        %910 = vrot.lane.b32.xlu0 %v839, 12
        %v911 = vpop.permute.xlu0 %910
        %912 = vrot.lane.b32.xlu0 %v840, 12
        %v913 = vpop.permute.xlu0 %912
        %914 = vrot.lane.b32.xlu0 %v841, 12
        %v915 = vpop.permute.xlu0 %914
        %916 = vrot.lane.b32.xlu0 %v842, 12
        %v917 = vpop.permute.xlu0 %916
        %918 = vrot.lane.b32.xlu0 %v843, 12
        %v919 = vpop.permute.xlu0 %918
        %920 = vrot.lane.b32.xlu0 %v844, 12
        %v921 = vpop.permute.xlu0 %920
        %922 = vrot.lane.b32.xlu0 %v845, 12
        %v923 = vpop.permute.xlu0 %922
        %924 = vrot.lane.b32.xlu0 %v846, 12
        %v925 = vpop.permute.xlu0 %924
        %926 = vrot.lane.b32.xlu0 %v847, 12
        %v927 = vpop.permute.xlu0 %926
        %928 = vrot.lane.b32.xlu0 %v848, 12
        %v929 = vpop.permute.xlu0 %928
        %930 = vrot.lane.b32.xlu0 %v849, 12
        %v931 = vpop.permute.xlu0 %930
        %932 = vrot.lane.b32.xlu0 %v850, 12
        %v933 = vpop.permute.xlu0 %932
        %934 = vrot.lane.b32.xlu0 %v851, 12
        %v935 = vpop.permute.xlu0 %934
        %936 = vrot.lane.b32.xlu0 %v852, 12
        %v937 = vpop.permute.xlu0 %936
        %938 = vrot.lane.b32.xlu0 %v853, 12
        %v939 = vpop.permute.xlu0 %938
        %940 = vrot.lane.b32.xlu0 %v854, 12
        %v941 = vpop.permute.xlu0 %940
        %942 = vrot.lane.b32.xlu0 %v855, 12
        %v943 = vpop.permute.xlu0 %942
        %944 = vrot.lane.b32.xlu0 %v856, 12
        %v945 = vpop.permute.xlu0 %944
        %946 = vrot.lane.b32.xlu0 %v857, 12
        %v947 = vpop.permute.xlu0 %946
        %948 = vrot.lane.b32.xlu0 %v858, 12
        %v949 = vpop.permute.xlu0 %948
        %950 = vrot.lane.b32.xlu0 %v859, 12
        %v951 = vpop.permute.xlu0 %950
        %952 = vrot.lane.b32.xlu0 %v860, 12
        %v953 = vpop.permute.xlu0 %952
        %954 = vrot.lane.b32.xlu0 %v861, 12
        %v955 = vpop.permute.xlu0 %954
        %956 = vrot.lane.b32.xlu0 %v862, 12
        %v957 = vpop.permute.xlu0 %956
        %958 = vrot.lane.b32.xlu0 %v863, 12
        %v959 = vpop.permute.xlu0 %958
        %vm992 = vcmask 130144
        %993 = vst.msk [vmem:[#allocation4] sm:$0xff] %vm992, %v897
        %994 = vst.msk [vmem:[#allocation4 + $0x8] sm:$0xff] %vm992, %v899
        %995 = vst.msk [vmem:[#allocation4 + $0x10] sm:$0xff] %vm992, %v901
        %996 = vst.msk [vmem:[#allocation4 + $0x18] sm:$0xff] %vm992, %v903
        %997 = vst.msk [vmem:[#allocation4 + $0x20] sm:$0xff] %vm992, %v905
        %998 = vst.msk [vmem:[#allocation4 + $0x28] sm:$0xff] %vm992, %v907
        %999 = vst.msk [vmem:[#allocation4 + $0x30] sm:$0xff] %vm992, %v909
        %1000 = vst.msk [vmem:[#allocation4 + $0x38] sm:$0xff] %vm992, %v911
        %1001 = vst.msk [vmem:[#allocation4 + $0x40] sm:$0xff] %vm992, %v913
        %1002 = vst.msk [vmem:[#allocation4 + $0x48] sm:$0xff] %vm992, %v915
        %1003 = vst.msk [vmem:[#allocation4 + $0x50] sm:$0xff] %vm992, %v917
        %1004 = vst.msk [vmem:[#allocation4 + $0x58] sm:$0xff] %vm992, %v919
        %1005 = vst.msk [vmem:[#allocation4 + $0x60] sm:$0xff] %vm992, %v921
        %1006 = vst.msk [vmem:[#allocation4 + $0x68] sm:$0xff] %vm992, %v923
        %1007 = vst.msk [vmem:[#allocation4 + $0x70] sm:$0xff] %vm992, %v925
        %1008 = vst.msk [vmem:[#allocation4 + $0x78] sm:$0xff] %vm992, %v927
        %1009 = vst.msk [vmem:[#allocation4 + $0x80] sm:$0xff] %vm992, %v929
        %1010 = vst.msk [vmem:[#allocation4 + $0x88] sm:$0xff] %vm992, %v931
        %1011 = vst.msk [vmem:[#allocation4 + $0x90] sm:$0xff] %vm992, %v933
        %1012 = vst.msk [vmem:[#allocation4 + $0x98] sm:$0xff] %vm992, %v935
        %1013 = vst.msk [vmem:[#allocation4 + $0xa0] sm:$0xff] %vm992, %v937
        %1014 = vst.msk [vmem:[#allocation4 + $0xa8] sm:$0xff] %vm992, %v939
        %1015 = vst.msk [vmem:[#allocation4 + $0xb0] sm:$0xff] %vm992, %v941
        %1016 = vst.msk [vmem:[#allocation4 + $0xb8] sm:$0xff] %vm992, %v943
        %1017 = vst.msk [vmem:[#allocation4 + $0xc0] sm:$0xff] %vm992, %v945
        %1018 = vst.msk [vmem:[#allocation4 + $0xc8] sm:$0xff] %vm992, %v947
        %1019 = vst.msk [vmem:[#allocation4 + $0xd0] sm:$0xff] %vm992, %v949
        %1020 = vst.msk [vmem:[#allocation4 + $0xd8] sm:$0xff] %vm992, %v951
        %1021 = vst.msk [vmem:[#allocation4 + $0xe0] sm:$0xff] %vm992, %v953
        %1022 = vst.msk [vmem:[#allocation4 + $0xe8] sm:$0xff] %vm992, %v955
        %1023 = vst.msk [vmem:[#allocation4 + $0xf0] sm:$0xff] %vm992, %v957
        %1024 = vst.msk [vmem:[#allocation4 + $0xf8] sm:$0xff] %vm992, %v959
        %v1025 = vld [vmem:[%s270 + $0x1] sm:$0xff]
        %v1026 = vld [vmem:[%s270 + $0x9] sm:$0xff]
        %v1027 = vld [vmem:[%s270 + $0x19] sm:$0xff]
        %v1028 = vld [vmem:[%s270 + $0x21] sm:$0xff]
        %v1029 = vld [vmem:[%s270 + $0x31] sm:$0xff]
        %v1030 = vld [vmem:[%s270 + $0x39] sm:$0xff]
        %v1031 = vld [vmem:[%s270 + $0x49] sm:$0xff]
        %v1032 = vld [vmem:[%s270 + $0x51] sm:$0xff]
        %v1033 = vld [vmem:[%s270 + $0x61] sm:$0xff]
        %v1034 = vld [vmem:[%s270 + $0x69] sm:$0xff]
        %v1035 = vld [vmem:[%s270 + $0x79] sm:$0xff]
        %v1036 = vld [vmem:[%s270 + $0x81] sm:$0xff]
        %v1037 = vld [vmem:[%s270 + $0x91] sm:$0xff]
        %v1038 = vld [vmem:[%s270 + $0x99] sm:$0xff]
        %v1039 = vld [vmem:[%s270 + $0xa9] sm:$0xff]
        %v1040 = vld [vmem:[%s270 + $0xb1] sm:$0xff]
        %v1041 = vld [vmem:[%s270 + $0xc1] sm:$0xff]
        %v1042 = vld [vmem:[%s270 + $0xc9] sm:$0xff]
        %v1043 = vld [vmem:[%s270 + $0xd9] sm:$0xff]
        %v1044 = vld [vmem:[%s270 + $0xe1] sm:$0xff]
        %v1045 = vld [vmem:[%s270 + $0xf1] sm:$0xff]
        %v1046 = vld [vmem:[%s270 + $0xf9] sm:$0xff]
        %v1047 = vld [vmem:[%s270 + $0x109] sm:$0xff]
        %v1048 = vld [vmem:[%s270 + $0x111] sm:$0xff]
        %v1049 = vld [vmem:[%s270 + $0x121] sm:$0xff]
        %v1050 = vld [vmem:[%s270 + $0x129] sm:$0xff]
        %v1051 = vld [vmem:[%s270 + $0x139] sm:$0xff]
        %v1052 = vld [vmem:[%s270 + $0x141] sm:$0xff]
        %v1053 = vld [vmem:[%s270 + $0x151] sm:$0xff]
        %v1054 = vld [vmem:[%s270 + $0x159] sm:$0xff]
        %v1055 = vld [vmem:[%s270 + $0x169] sm:$0xff]
        %v1056 = vld [vmem:[%s270 + $0x171] sm:$0xff]
        %1089 = vrot.lane.b32.xlu0 %v1025, 16
        %v1090 = vpop.permute.xlu0 %1089
        %1091 = vrot.lane.b32.xlu0 %v1026, 16
        %v1092 = vpop.permute.xlu0 %1091
        %1093 = vrot.lane.b32.xlu0 %v1027, 16
        %v1094 = vpop.permute.xlu0 %1093
        %1095 = vrot.lane.b32.xlu0 %v1028, 16
        %v1096 = vpop.permute.xlu0 %1095
        %1097 = vrot.lane.b32.xlu0 %v1029, 16
        %v1098 = vpop.permute.xlu0 %1097
        %1099 = vrot.lane.b32.xlu0 %v1030, 16
        %v1100 = vpop.permute.xlu0 %1099
        %1101 = vrot.lane.b32.xlu0 %v1031, 16
        %v1102 = vpop.permute.xlu0 %1101
        %1103 = vrot.lane.b32.xlu0 %v1032, 16
        %v1104 = vpop.permute.xlu0 %1103
        %1105 = vrot.lane.b32.xlu0 %v1033, 16
        %v1106 = vpop.permute.xlu0 %1105
        %1107 = vrot.lane.b32.xlu0 %v1034, 16
        %v1108 = vpop.permute.xlu0 %1107
        %1109 = vrot.lane.b32.xlu0 %v1035, 16
        %v1110 = vpop.permute.xlu0 %1109
        %1111 = vrot.lane.b32.xlu0 %v1036, 16
        %v1112 = vpop.permute.xlu0 %1111
        %1113 = vrot.lane.b32.xlu0 %v1037, 16
        %v1114 = vpop.permute.xlu0 %1113
        %1115 = vrot.lane.b32.xlu0 %v1038, 16
        %v1116 = vpop.permute.xlu0 %1115
        %1117 = vrot.lane.b32.xlu0 %v1039, 16
        %v1118 = vpop.permute.xlu0 %1117
        %1119 = vrot.lane.b32.xlu0 %v1040, 16
        %v1120 = vpop.permute.xlu0 %1119
        %1121 = vrot.lane.b32.xlu0 %v1041, 16
        %v1122 = vpop.permute.xlu0 %1121
        %1123 = vrot.lane.b32.xlu0 %v1042, 16
        %v1124 = vpop.permute.xlu0 %1123
        %1125 = vrot.lane.b32.xlu0 %v1043, 16
        %v1126 = vpop.permute.xlu0 %1125
        %1127 = vrot.lane.b32.xlu0 %v1044, 16
        %v1128 = vpop.permute.xlu0 %1127
        %1129 = vrot.lane.b32.xlu0 %v1045, 16
        %v1130 = vpop.permute.xlu0 %1129
        %1131 = vrot.lane.b32.xlu0 %v1046, 16
        %v1132 = vpop.permute.xlu0 %1131
        %1133 = vrot.lane.b32.xlu0 %v1047, 16
        %v1134 = vpop.permute.xlu0 %1133
        %1135 = vrot.lane.b32.xlu0 %v1048, 16
        %v1136 = vpop.permute.xlu0 %1135
        %1137 = vrot.lane.b32.xlu0 %v1049, 16
        %v1138 = vpop.permute.xlu0 %1137
        %1139 = vrot.lane.b32.xlu0 %v1050, 16
        %v1140 = vpop.permute.xlu0 %1139
        %1141 = vrot.lane.b32.xlu0 %v1051, 16
        %v1142 = vpop.permute.xlu0 %1141
        %1143 = vrot.lane.b32.xlu0 %v1052, 16
        %v1144 = vpop.permute.xlu0 %1143
        %1145 = vrot.lane.b32.xlu0 %v1053, 16
        %v1146 = vpop.permute.xlu0 %1145
        %1147 = vrot.lane.b32.xlu0 %v1054, 16
        %v1148 = vpop.permute.xlu0 %1147
        %1149 = vrot.lane.b32.xlu0 %v1055, 16
        %v1150 = vpop.permute.xlu0 %1149
        %1151 = vrot.lane.b32.xlu0 %v1056, 16
        %v1152 = vpop.permute.xlu0 %1151
        %vm1185 = vcmask 162944
        %1186 = vst.msk [vmem:[#allocation4] sm:$0xff] %vm1185, %v1090
        %1187 = vst.msk [vmem:[#allocation4 + $0x8] sm:$0xff] %vm1185, %v1092
        %1188 = vst.msk [vmem:[#allocation4 + $0x10] sm:$0xff] %vm1185, %v1094
        %1189 = vst.msk [vmem:[#allocation4 + $0x18] sm:$0xff] %vm1185, %v1096
        %1190 = vst.msk [vmem:[#allocation4 + $0x20] sm:$0xff] %vm1185, %v1098
        %1191 = vst.msk [vmem:[#allocation4 + $0x28] sm:$0xff] %vm1185, %v1100
        %1192 = vst.msk [vmem:[#allocation4 + $0x30] sm:$0xff] %vm1185, %v1102
        %1193 = vst.msk [vmem:[#allocation4 + $0x38] sm:$0xff] %vm1185, %v1104
        %1194 = vst.msk [vmem:[#allocation4 + $0x40] sm:$0xff] %vm1185, %v1106
        %1195 = vst.msk [vmem:[#allocation4 + $0x48] sm:$0xff] %vm1185, %v1108
        %1196 = vst.msk [vmem:[#allocation4 + $0x50] sm:$0xff] %vm1185, %v1110
        %1197 = vst.msk [vmem:[#allocation4 + $0x58] sm:$0xff] %vm1185, %v1112
        %1198 = vst.msk [vmem:[#allocation4 + $0x60] sm:$0xff] %vm1185, %v1114
        %1199 = vst.msk [vmem:[#allocation4 + $0x68] sm:$0xff] %vm1185, %v1116
        %1200 = vst.msk [vmem:[#allocation4 + $0x70] sm:$0xff] %vm1185, %v1118
        %1201 = vst.msk [vmem:[#allocation4 + $0x78] sm:$0xff] %vm1185, %v1120
        %1202 = vst.msk [vmem:[#allocation4 + $0x80] sm:$0xff] %vm1185, %v1122
        %1203 = vst.msk [vmem:[#allocation4 + $0x88] sm:$0xff] %vm1185, %v1124
        %1204 = vst.msk [vmem:[#allocation4 + $0x90] sm:$0xff] %vm1185, %v1126
        %1205 = vst.msk [vmem:[#allocation4 + $0x98] sm:$0xff] %vm1185, %v1128
        %1206 = vst.msk [vmem:[#allocation4 + $0xa0] sm:$0xff] %vm1185, %v1130
        %1207 = vst.msk [vmem:[#allocation4 + $0xa8] sm:$0xff] %vm1185, %v1132
        %1208 = vst.msk [vmem:[#allocation4 + $0xb0] sm:$0xff] %vm1185, %v1134
        %1209 = vst.msk [vmem:[#allocation4 + $0xb8] sm:$0xff] %vm1185, %v1136
        %1210 = vst.msk [vmem:[#allocation4 + $0xc0] sm:$0xff] %vm1185, %v1138
        %1211 = vst.msk [vmem:[#allocation4 + $0xc8] sm:$0xff] %vm1185, %v1140
        %1212 = vst.msk [vmem:[#allocation4 + $0xd0] sm:$0xff] %vm1185, %v1142
        %1213 = vst.msk [vmem:[#allocation4 + $0xd8] sm:$0xff] %vm1185, %v1144
        %1214 = vst.msk [vmem:[#allocation4 + $0xe0] sm:$0xff] %vm1185, %v1146
        %1215 = vst.msk [vmem:[#allocation4 + $0xe8] sm:$0xff] %vm1185, %v1148
        %1216 = vst.msk [vmem:[#allocation4 + $0xf0] sm:$0xff] %vm1185, %v1150
        %1217 = vst.msk [vmem:[#allocation4 + $0xf8] sm:$0xff] %vm1185, %v1152
        %v1218 = vld [vmem:[%s270 + $0x2] sm:$0xff]
        %v1219 = vld [vmem:[%s270 + $0xa] sm:$0xff]
        %v1220 = vld [vmem:[%s270 + $0x1a] sm:$0xff]
        %v1221 = vld [vmem:[%s270 + $0x22] sm:$0xff]
        %v1222 = vld [vmem:[%s270 + $0x32] sm:$0xff]
        %v1223 = vld [vmem:[%s270 + $0x3a] sm:$0xff]
        %v1224 = vld [vmem:[%s270 + $0x4a] sm:$0xff]
        %v1225 = vld [vmem:[%s270 + $0x52] sm:$0xff]
        %v1226 = vld [vmem:[%s270 + $0x62] sm:$0xff]
        %v1227 = vld [vmem:[%s270 + $0x6a] sm:$0xff]
        %v1228 = vld [vmem:[%s270 + $0x7a] sm:$0xff]
        %v1229 = vld [vmem:[%s270 + $0x82] sm:$0xff]
        %v1230 = vld [vmem:[%s270 + $0x92] sm:$0xff]
        %v1231 = vld [vmem:[%s270 + $0x9a] sm:$0xff]
        %v1232 = vld [vmem:[%s270 + $0xaa] sm:$0xff]
        %v1233 = vld [vmem:[%s270 + $0xb2] sm:$0xff]
        %v1234 = vld [vmem:[%s270 + $0xc2] sm:$0xff]
        %v1235 = vld [vmem:[%s270 + $0xca] sm:$0xff]
        %v1236 = vld [vmem:[%s270 + $0xda] sm:$0xff]
        %v1237 = vld [vmem:[%s270 + $0xe2] sm:$0xff]
        %v1238 = vld [vmem:[%s270 + $0xf2] sm:$0xff]
        %v1239 = vld [vmem:[%s270 + $0xfa] sm:$0xff]
        %v1240 = vld [vmem:[%s270 + $0x10a] sm:$0xff]
        %v1241 = vld [vmem:[%s270 + $0x112] sm:$0xff]
        %v1242 = vld [vmem:[%s270 + $0x122] sm:$0xff]
        %v1243 = vld [vmem:[%s270 + $0x12a] sm:$0xff]
        %v1244 = vld [vmem:[%s270 + $0x13a] sm:$0xff]
        %v1245 = vld [vmem:[%s270 + $0x142] sm:$0xff]
        %v1246 = vld [vmem:[%s270 + $0x152] sm:$0xff]
        %v1247 = vld [vmem:[%s270 + $0x15a] sm:$0xff]
        %v1248 = vld [vmem:[%s270 + $0x16a] sm:$0xff]
        %v1249 = vld [vmem:[%s270 + $0x172] sm:$0xff]
        %1282 = vrot.lane.b32.xlu0 %v1218, 20
        %v1283 = vpop.permute.xlu0 %1282
        %1284 = vrot.lane.b32.xlu0 %v1219, 20
        %v1285 = vpop.permute.xlu0 %1284
        %1286 = vrot.lane.b32.xlu0 %v1220, 20
        %v1287 = vpop.permute.xlu0 %1286
        %1288 = vrot.lane.b32.xlu0 %v1221, 20
        %v1289 = vpop.permute.xlu0 %1288
        %1290 = vrot.lane.b32.xlu0 %v1222, 20
        %v1291 = vpop.permute.xlu0 %1290
        %1292 = vrot.lane.b32.xlu0 %v1223, 20
        %v1293 = vpop.permute.xlu0 %1292
        %1294 = vrot.lane.b32.xlu0 %v1224, 20
        %v1295 = vpop.permute.xlu0 %1294
        %1296 = vrot.lane.b32.xlu0 %v1225, 20
        %v1297 = vpop.permute.xlu0 %1296
        %1298 = vrot.lane.b32.xlu0 %v1226, 20
        %v1299 = vpop.permute.xlu0 %1298
        %1300 = vrot.lane.b32.xlu0 %v1227, 20
        %v1301 = vpop.permute.xlu0 %1300
        %1302 = vrot.lane.b32.xlu0 %v1228, 20
        %v1303 = vpop.permute.xlu0 %1302
        %1304 = vrot.lane.b32.xlu0 %v1229, 20
        %v1305 = vpop.permute.xlu0 %1304
        %1306 = vrot.lane.b32.xlu0 %v1230, 20
        %v1307 = vpop.permute.xlu0 %1306
        %1308 = vrot.lane.b32.xlu0 %v1231, 20
        %v1309 = vpop.permute.xlu0 %1308
        %1310 = vrot.lane.b32.xlu0 %v1232, 20
        %v1311 = vpop.permute.xlu0 %1310
        %1312 = vrot.lane.b32.xlu0 %v1233, 20
        %v1313 = vpop.permute.xlu0 %1312
        %1314 = vrot.lane.b32.xlu0 %v1234, 20
        %v1315 = vpop.permute.xlu0 %1314
        %1316 = vrot.lane.b32.xlu0 %v1235, 20
        %v1317 = vpop.permute.xlu0 %1316
        %1318 = vrot.lane.b32.xlu0 %v1236, 20
        %v1319 = vpop.permute.xlu0 %1318
        %1320 = vrot.lane.b32.xlu0 %v1237, 20
        %v1321 = vpop.permute.xlu0 %1320
        %1322 = vrot.lane.b32.xlu0 %v1238, 20
        %v1323 = vpop.permute.xlu0 %1322
        %1324 = vrot.lane.b32.xlu0 %v1239, 20
        %v1325 = vpop.permute.xlu0 %1324
        %1326 = vrot.lane.b32.xlu0 %v1240, 20
        %v1327 = vpop.permute.xlu0 %1326
        %1328 = vrot.lane.b32.xlu0 %v1241, 20
        %v1329 = vpop.permute.xlu0 %1328
        %1330 = vrot.lane.b32.xlu0 %v1242, 20
        %v1331 = vpop.permute.xlu0 %1330
        %1332 = vrot.lane.b32.xlu0 %v1243, 20
        %v1333 = vpop.permute.xlu0 %1332
        %1334 = vrot.lane.b32.xlu0 %v1244, 20
        %v1335 = vpop.permute.xlu0 %1334
        %1336 = vrot.lane.b32.xlu0 %v1245, 20
        %v1337 = vpop.permute.xlu0 %1336
        %1338 = vrot.lane.b32.xlu0 %v1246, 20
        %v1339 = vpop.permute.xlu0 %1338
        %1340 = vrot.lane.b32.xlu0 %v1247, 20
        %v1341 = vpop.permute.xlu0 %1340
        %1342 = vrot.lane.b32.xlu0 %v1248, 20
        %v1343 = vpop.permute.xlu0 %1342
        %1344 = vrot.lane.b32.xlu0 %v1249, 20
        %v1345 = vpop.permute.xlu0 %1344
        %vm1378 = vcmask 195744
        %1379 = vst.msk [vmem:[#allocation4] sm:$0xff] %vm1378, %v1283
        %1380 = vst.msk [vmem:[#allocation4 + $0x8] sm:$0xff] %vm1378, %v1285
        %1381 = vst.msk [vmem:[#allocation4 + $0x10] sm:$0xff] %vm1378, %v1287
        %1382 = vst.msk [vmem:[#allocation4 + $0x18] sm:$0xff] %vm1378, %v1289
        %1383 = vst.msk [vmem:[#allocation4 + $0x20] sm:$0xff] %vm1378, %v1291
        %1384 = vst.msk [vmem:[#allocation4 + $0x28] sm:$0xff] %vm1378, %v1293
        %1385 = vst.msk [vmem:[#allocation4 + $0x30] sm:$0xff] %vm1378, %v1295
        %1386 = vst.msk [vmem:[#allocation4 + $0x38] sm:$0xff] %vm1378, %v1297
        %1387 = vst.msk [vmem:[#allocation4 + $0x40] sm:$0xff] %vm1378, %v1299
        %1388 = vst.msk [vmem:[#allocation4 + $0x48] sm:$0xff] %vm1378, %v1301
        %1389 = vst.msk [vmem:[#allocation4 + $0x50] sm:$0xff] %vm1378, %v1303
        %1390 = vst.msk [vmem:[#allocation4 + $0x58] sm:$0xff] %vm1378, %v1305
        %1391 = vst.msk [vmem:[#allocation4 + $0x60] sm:$0xff] %vm1378, %v1307
        %1392 = vst.msk [vmem:[#allocation4 + $0x68] sm:$0xff] %vm1378, %v1309
        %1393 = vst.msk [vmem:[#allocation4 + $0x70] sm:$0xff] %vm1378, %v1311
        %1394 = vst.msk [vmem:[#allocation4 + $0x78] sm:$0xff] %vm1378, %v1313
        %1395 = vst.msk [vmem:[#allocation4 + $0x80] sm:$0xff] %vm1378, %v1315
        %1396 = vst.msk [vmem:[#allocation4 + $0x88] sm:$0xff] %vm1378, %v1317
        %1397 = vst.msk [vmem:[#allocation4 + $0x90] sm:$0xff] %vm1378, %v1319
        %1398 = vst.msk [vmem:[#allocation4 + $0x98] sm:$0xff] %vm1378, %v1321
        %1399 = vst.msk [vmem:[#allocation4 + $0xa0] sm:$0xff] %vm1378, %v1323
        %1400 = vst.msk [vmem:[#allocation4 + $0xa8] sm:$0xff] %vm1378, %v1325
        %1401 = vst.msk [vmem:[#allocation4 + $0xb0] sm:$0xff] %vm1378, %v1327
        %1402 = vst.msk [vmem:[#allocation4 + $0xb8] sm:$0xff] %vm1378, %v1329
        %1403 = vst.msk [vmem:[#allocation4 + $0xc0] sm:$0xff] %vm1378, %v1331
        %1404 = vst.msk [vmem:[#allocation4 + $0xc8] sm:$0xff] %vm1378, %v1333
        %1405 = vst.msk [vmem:[#allocation4 + $0xd0] sm:$0xff] %vm1378, %v1335
        %1406 = vst.msk [vmem:[#allocation4 + $0xd8] sm:$0xff] %vm1378, %v1337
        %1407 = vst.msk [vmem:[#allocation4 + $0xe0] sm:$0xff] %vm1378, %v1339
        %1408 = vst.msk [vmem:[#allocation4 + $0xe8] sm:$0xff] %vm1378, %v1341
        %1409 = vst.msk [vmem:[#allocation4 + $0xf0] sm:$0xff] %vm1378, %v1343
        %1410 = vst.msk [vmem:[#allocation4 + $0xf8] sm:$0xff] %vm1378, %v1345
        %s1411 = scalar_lea.vmem [#allocation2], 48
        %v1412 = vld [vmem:[%s1411] sm:$0xff]
        %v1413 = vld [vmem:[%s1411 + $0x8] sm:$0xff]
        %v1414 = vld [vmem:[%s1411 + $0x18] sm:$0xff]
        %v1415 = vld [vmem:[%s1411 + $0x20] sm:$0xff]
        %v1416 = vld [vmem:[%s1411 + $0x30] sm:$0xff]
        %v1417 = vld [vmem:[%s1411 + $0x38] sm:$0xff]
        %v1418 = vld [vmem:[%s1411 + $0x48] sm:$0xff]
        %v1419 = vld [vmem:[%s1411 + $0x50] sm:$0xff]
        %v1420 = vld [vmem:[%s1411 + $0x60] sm:$0xff]
        %v1421 = vld [vmem:[%s1411 + $0x68] sm:$0xff]
        %v1422 = vld [vmem:[%s1411 + $0x78] sm:$0xff]
        %v1423 = vld [vmem:[%s1411 + $0x80] sm:$0xff]
        %v1424 = vld [vmem:[%s1411 + $0x90] sm:$0xff]
        %v1425 = vld [vmem:[%s1411 + $0x98] sm:$0xff]
        %v1426 = vld [vmem:[%s1411 + $0xa8] sm:$0xff]
        %v1427 = vld [vmem:[%s1411 + $0xb0] sm:$0xff]
        %v1428 = vld [vmem:[%s1411 + $0xc0] sm:$0xff]
        %v1429 = vld [vmem:[%s1411 + $0xc8] sm:$0xff]
        %v1430 = vld [vmem:[%s1411 + $0xd8] sm:$0xff]
        %v1431 = vld [vmem:[%s1411 + $0xe0] sm:$0xff]
        %v1432 = vld [vmem:[%s1411 + $0xf0] sm:$0xff]
        %v1433 = vld [vmem:[%s1411 + $0xf8] sm:$0xff]
        %v1434 = vld [vmem:[%s1411 + $0x108] sm:$0xff]
        %v1435 = vld [vmem:[%s1411 + $0x110] sm:$0xff]
        %v1436 = vld [vmem:[%s1411 + $0x120] sm:$0xff]
        %v1437 = vld [vmem:[%s1411 + $0x128] sm:$0xff]
        %v1438 = vld [vmem:[%s1411 + $0x138] sm:$0xff]
        %v1439 = vld [vmem:[%s1411 + $0x140] sm:$0xff]
        %v1440 = vld [vmem:[%s1411 + $0x150] sm:$0xff]
        %v1441 = vld [vmem:[%s1411 + $0x158] sm:$0xff]
        %v1442 = vld [vmem:[%s1411 + $0x168] sm:$0xff]
        %v1443 = vld [vmem:[%s1411 + $0x170] sm:$0xff]
        %1476 = vrot.lane.b32.xlu0 %v1412, 24
        %v1477 = vpop.permute.xlu0 %1476
        %1478 = vrot.lane.b32.xlu0 %v1413, 24
        %v1479 = vpop.permute.xlu0 %1478
        %1480 = vrot.lane.b32.xlu0 %v1414, 24
        %v1481 = vpop.permute.xlu0 %1480
        %1482 = vrot.lane.b32.xlu0 %v1415, 24
        %v1483 = vpop.permute.xlu0 %1482
        %1484 = vrot.lane.b32.xlu0 %v1416, 24
        %v1485 = vpop.permute.xlu0 %1484
        %1486 = vrot.lane.b32.xlu0 %v1417, 24
        %v1487 = vpop.permute.xlu0 %1486
        %1488 = vrot.lane.b32.xlu0 %v1418, 24
        %v1489 = vpop.permute.xlu0 %1488
        %1490 = vrot.lane.b32.xlu0 %v1419, 24
        %v1491 = vpop.permute.xlu0 %1490
        %1492 = vrot.lane.b32.xlu0 %v1420, 24
        %v1493 = vpop.permute.xlu0 %1492
        %1494 = vrot.lane.b32.xlu0 %v1421, 24
        %v1495 = vpop.permute.xlu0 %1494
        %1496 = vrot.lane.b32.xlu0 %v1422, 24
        %v1497 = vpop.permute.xlu0 %1496
        %1498 = vrot.lane.b32.xlu0 %v1423, 24
        %v1499 = vpop.permute.xlu0 %1498
        %1500 = vrot.lane.b32.xlu0 %v1424, 24
        %v1501 = vpop.permute.xlu0 %1500
        %1502 = vrot.lane.b32.xlu0 %v1425, 24
        %v1503 = vpop.permute.xlu0 %1502
        %1504 = vrot.lane.b32.xlu0 %v1426, 24
        %v1505 = vpop.permute.xlu0 %1504
        %1506 = vrot.lane.b32.xlu0 %v1427, 24
        %v1507 = vpop.permute.xlu0 %1506
        %1508 = vrot.lane.b32.xlu0 %v1428, 24
        %v1509 = vpop.permute.xlu0 %1508
        %1510 = vrot.lane.b32.xlu0 %v1429, 24
        %v1511 = vpop.permute.xlu0 %1510
        %1512 = vrot.lane.b32.xlu0 %v1430, 24
        %v1513 = vpop.permute.xlu0 %1512
        %1514 = vrot.lane.b32.xlu0 %v1431, 24
        %v1515 = vpop.permute.xlu0 %1514
        %1516 = vrot.lane.b32.xlu0 %v1432, 24
        %v1517 = vpop.permute.xlu0 %1516
        %1518 = vrot.lane.b32.xlu0 %v1433, 24
        %v1519 = vpop.permute.xlu0 %1518
        %1520 = vrot.lane.b32.xlu0 %v1434, 24
        %v1521 = vpop.permute.xlu0 %1520
        %1522 = vrot.lane.b32.xlu0 %v1435, 24
        %v1523 = vpop.permute.xlu0 %1522
        %1524 = vrot.lane.b32.xlu0 %v1436, 24
        %v1525 = vpop.permute.xlu0 %1524
        %1526 = vrot.lane.b32.xlu0 %v1437, 24
        %v1527 = vpop.permute.xlu0 %1526
        %1528 = vrot.lane.b32.xlu0 %v1438, 24
        %v1529 = vpop.permute.xlu0 %1528
        %1530 = vrot.lane.b32.xlu0 %v1439, 24
        %v1531 = vpop.permute.xlu0 %1530
        %1532 = vrot.lane.b32.xlu0 %v1440, 24
        %v1533 = vpop.permute.xlu0 %1532
        %1534 = vrot.lane.b32.xlu0 %v1441, 24
        %v1535 = vpop.permute.xlu0 %1534
        %1536 = vrot.lane.b32.xlu0 %v1442, 24
        %v1537 = vpop.permute.xlu0 %1536
        %1538 = vrot.lane.b32.xlu0 %v1443, 24
        %v1539 = vpop.permute.xlu0 %1538
        %vm1572 = vcmask 228544
        %1573 = vst.msk [vmem:[#allocation4] sm:$0xff] %vm1572, %v1477
        %1574 = vst.msk [vmem:[#allocation4 + $0x8] sm:$0xff] %vm1572, %v1479
        %1575 = vst.msk [vmem:[#allocation4 + $0x10] sm:$0xff] %vm1572, %v1481
        %1576 = vst.msk [vmem:[#allocation4 + $0x18] sm:$0xff] %vm1572, %v1483
        %1577 = vst.msk [vmem:[#allocation4 + $0x20] sm:$0xff] %vm1572, %v1485
        %1578 = vst.msk [vmem:[#allocation4 + $0x28] sm:$0xff] %vm1572, %v1487
        %1579 = vst.msk [vmem:[#allocation4 + $0x30] sm:$0xff] %vm1572, %v1489
        %1580 = vst.msk [vmem:[#allocation4 + $0x38] sm:$0xff] %vm1572, %v1491
        %1581 = vst.msk [vmem:[#allocation4 + $0x40] sm:$0xff] %vm1572, %v1493
        %1582 = vst.msk [vmem:[#allocation4 + $0x48] sm:$0xff] %vm1572, %v1495
        %1583 = vst.msk [vmem:[#allocation4 + $0x50] sm:$0xff] %vm1572, %v1497
        %1584 = vst.msk [vmem:[#allocation4 + $0x58] sm:$0xff] %vm1572, %v1499
        %1585 = vst.msk [vmem:[#allocation4 + $0x60] sm:$0xff] %vm1572, %v1501
        %1586 = vst.msk [vmem:[#allocation4 + $0x68] sm:$0xff] %vm1572, %v1503
        %1587 = vst.msk [vmem:[#allocation4 + $0x70] sm:$0xff] %vm1572, %v1505
        %1588 = vst.msk [vmem:[#allocation4 + $0x78] sm:$0xff] %vm1572, %v1507
        %1589 = vst.msk [vmem:[#allocation4 + $0x80] sm:$0xff] %vm1572, %v1509
        %1590 = vst.msk [vmem:[#allocation4 + $0x88] sm:$0xff] %vm1572, %v1511
        %1591 = vst.msk [vmem:[#allocation4 + $0x90] sm:$0xff] %vm1572, %v1513
        %1592 = vst.msk [vmem:[#allocation4 + $0x98] sm:$0xff] %vm1572, %v1515
        %1593 = vst.msk [vmem:[#allocation4 + $0xa0] sm:$0xff] %vm1572, %v1517
        %1594 = vst.msk [vmem:[#allocation4 + $0xa8] sm:$0xff] %vm1572, %v1519
        %1595 = vst.msk [vmem:[#allocation4 + $0xb0] sm:$0xff] %vm1572, %v1521
        %1596 = vst.msk [vmem:[#allocation4 + $0xb8] sm:$0xff] %vm1572, %v1523
        %1597 = vst.msk [vmem:[#allocation4 + $0xc0] sm:$0xff] %vm1572, %v1525
        %1598 = vst.msk [vmem:[#allocation4 + $0xc8] sm:$0xff] %vm1572, %v1527
        %1599 = vst.msk [vmem:[#allocation4 + $0xd0] sm:$0xff] %vm1572, %v1529
        %1600 = vst.msk [vmem:[#allocation4 + $0xd8] sm:$0xff] %vm1572, %v1531
        %1601 = vst.msk [vmem:[#allocation4 + $0xe0] sm:$0xff] %vm1572, %v1533
        %1602 = vst.msk [vmem:[#allocation4 + $0xe8] sm:$0xff] %vm1572, %v1535
        %1603 = vst.msk [vmem:[#allocation4 + $0xf0] sm:$0xff] %vm1572, %v1537
        %1604 = vst.msk [vmem:[#allocation4 + $0xf8] sm:$0xff] %vm1572, %v1539
        %v1605 = vld [vmem:[%s1411 + $0x1] sm:$0xff]
        %v1606 = vld [vmem:[%s1411 + $0x9] sm:$0xff]
        %v1607 = vld [vmem:[%s1411 + $0x19] sm:$0xff]
        %v1608 = vld [vmem:[%s1411 + $0x21] sm:$0xff]
        %v1609 = vld [vmem:[%s1411 + $0x31] sm:$0xff]
        %v1610 = vld [vmem:[%s1411 + $0x39] sm:$0xff]
        %v1611 = vld [vmem:[%s1411 + $0x49] sm:$0xff]
        %v1612 = vld [vmem:[%s1411 + $0x51] sm:$0xff]
        %v1613 = vld [vmem:[%s1411 + $0x61] sm:$0xff]
        %v1614 = vld [vmem:[%s1411 + $0x69] sm:$0xff]
        %v1615 = vld [vmem:[%s1411 + $0x79] sm:$0xff]
        %v1616 = vld [vmem:[%s1411 + $0x81] sm:$0xff]
        %v1617 = vld [vmem:[%s1411 + $0x91] sm:$0xff]
        %v1618 = vld [vmem:[%s1411 + $0x99] sm:$0xff]
        %v1619 = vld [vmem:[%s1411 + $0xa9] sm:$0xff]
        %v1620 = vld [vmem:[%s1411 + $0xb1] sm:$0xff]
        %v1621 = vld [vmem:[%s1411 + $0xc1] sm:$0xff]
        %v1622 = vld [vmem:[%s1411 + $0xc9] sm:$0xff]
        %v1623 = vld [vmem:[%s1411 + $0xd9] sm:$0xff]
        %v1624 = vld [vmem:[%s1411 + $0xe1] sm:$0xff]
        %v1625 = vld [vmem:[%s1411 + $0xf1] sm:$0xff]
        %v1626 = vld [vmem:[%s1411 + $0xf9] sm:$0xff]
        %v1627 = vld [vmem:[%s1411 + $0x109] sm:$0xff]
        %v1628 = vld [vmem:[%s1411 + $0x111] sm:$0xff]
        %v1629 = vld [vmem:[%s1411 + $0x121] sm:$0xff]
        %v1630 = vld [vmem:[%s1411 + $0x129] sm:$0xff]
        %v1631 = vld [vmem:[%s1411 + $0x139] sm:$0xff]
        %v1632 = vld [vmem:[%s1411 + $0x141] sm:$0xff]
        %v1633 = vld [vmem:[%s1411 + $0x151] sm:$0xff]
        %v1634 = vld [vmem:[%s1411 + $0x159] sm:$0xff]
        %v1635 = vld [vmem:[%s1411 + $0x169] sm:$0xff]
        %v1636 = vld [vmem:[%s1411 + $0x171] sm:$0xff]
        %1669 = vrot.lane.b32.xlu0 %v1605, 28
        %v1670 = vpop.permute.xlu0 %1669
        %1671 = vrot.lane.b32.xlu0 %v1606, 28
        %v1672 = vpop.permute.xlu0 %1671
        %1673 = vrot.lane.b32.xlu0 %v1607, 28
        %v1674 = vpop.permute.xlu0 %1673
        %1675 = vrot.lane.b32.xlu0 %v1608, 28
        %v1676 = vpop.permute.xlu0 %1675
        %1677 = vrot.lane.b32.xlu0 %v1609, 28
        %v1678 = vpop.permute.xlu0 %1677
        %1679 = vrot.lane.b32.xlu0 %v1610, 28
        %v1680 = vpop.permute.xlu0 %1679
        %1681 = vrot.lane.b32.xlu0 %v1611, 28
        %v1682 = vpop.permute.xlu0 %1681
        %1683 = vrot.lane.b32.xlu0 %v1612, 28
        %v1684 = vpop.permute.xlu0 %1683
        %1685 = vrot.lane.b32.xlu0 %v1613, 28
        %v1686 = vpop.permute.xlu0 %1685
        %1687 = vrot.lane.b32.xlu0 %v1614, 28
        %v1688 = vpop.permute.xlu0 %1687
        %1689 = vrot.lane.b32.xlu0 %v1615, 28
        %v1690 = vpop.permute.xlu0 %1689
        %1691 = vrot.lane.b32.xlu0 %v1616, 28
        %v1692 = vpop.permute.xlu0 %1691
        %1693 = vrot.lane.b32.xlu0 %v1617, 28
        %v1694 = vpop.permute.xlu0 %1693
        %1695 = vrot.lane.b32.xlu0 %v1618, 28
        %v1696 = vpop.permute.xlu0 %1695
        %1697 = vrot.lane.b32.xlu0 %v1619, 28
        %v1698 = vpop.permute.xlu0 %1697
        %1699 = vrot.lane.b32.xlu0 %v1620, 28
        %v1700 = vpop.permute.xlu0 %1699
        %1701 = vrot.lane.b32.xlu0 %v1621, 28
        %v1702 = vpop.permute.xlu0 %1701
        %1703 = vrot.lane.b32.xlu0 %v1622, 28
        %v1704 = vpop.permute.xlu0 %1703
        %1705 = vrot.lane.b32.xlu0 %v1623, 28
        %v1706 = vpop.permute.xlu0 %1705
        %1707 = vrot.lane.b32.xlu0 %v1624, 28
        %v1708 = vpop.permute.xlu0 %1707
        %1709 = vrot.lane.b32.xlu0 %v1625, 28
        %v1710 = vpop.permute.xlu0 %1709
        %1711 = vrot.lane.b32.xlu0 %v1626, 28
        %v1712 = vpop.permute.xlu0 %1711
        %1713 = vrot.lane.b32.xlu0 %v1627, 28
        %v1714 = vpop.permute.xlu0 %1713
        %1715 = vrot.lane.b32.xlu0 %v1628, 28
        %v1716 = vpop.permute.xlu0 %1715
        %1717 = vrot.lane.b32.xlu0 %v1629, 28
        %v1718 = vpop.permute.xlu0 %1717
        %1719 = vrot.lane.b32.xlu0 %v1630, 28
        %v1720 = vpop.permute.xlu0 %1719
        %1721 = vrot.lane.b32.xlu0 %v1631, 28
        %v1722 = vpop.permute.xlu0 %1721
        %1723 = vrot.lane.b32.xlu0 %v1632, 28
        %v1724 = vpop.permute.xlu0 %1723
        %1725 = vrot.lane.b32.xlu0 %v1633, 28
        %v1726 = vpop.permute.xlu0 %1725
        %1727 = vrot.lane.b32.xlu0 %v1634, 28
        %v1728 = vpop.permute.xlu0 %1727
        %1729 = vrot.lane.b32.xlu0 %v1635, 28
        %v1730 = vpop.permute.xlu0 %1729
        %1731 = vrot.lane.b32.xlu0 %v1636, 28
        %v1732 = vpop.permute.xlu0 %1731
        %vm1765 = vcmask 261344
        %1766 = vst.msk [vmem:[#allocation4] sm:$0xff] %vm1765, %v1670
        %1767 = vst.msk [vmem:[#allocation4 + $0x8] sm:$0xff] %vm1765, %v1672
        %1768 = vst.msk [vmem:[#allocation4 + $0x10] sm:$0xff] %vm1765, %v1674
        %1769 = vst.msk [vmem:[#allocation4 + $0x18] sm:$0xff] %vm1765, %v1676
        %1770 = vst.msk [vmem:[#allocation4 + $0x20] sm:$0xff] %vm1765, %v1678
        %1771 = vst.msk [vmem:[#allocation4 + $0x28] sm:$0xff] %vm1765, %v1680
        %1772 = vst.msk [vmem:[#allocation4 + $0x30] sm:$0xff] %vm1765, %v1682
        %1773 = vst.msk [vmem:[#allocation4 + $0x38] sm:$0xff] %vm1765, %v1684
        %1774 = vst.msk [vmem:[#allocation4 + $0x40] sm:$0xff] %vm1765, %v1686
        %1775 = vst.msk [vmem:[#allocation4 + $0x48] sm:$0xff] %vm1765, %v1688
        %1776 = vst.msk [vmem:[#allocation4 + $0x50] sm:$0xff] %vm1765, %v1690
        %1777 = vst.msk [vmem:[#allocation4 + $0x58] sm:$0xff] %vm1765, %v1692
        %1778 = vst.msk [vmem:[#allocation4 + $0x60] sm:$0xff] %vm1765, %v1694
        %1779 = vst.msk [vmem:[#allocation4 + $0x68] sm:$0xff] %vm1765, %v1696
        %1780 = vst.msk [vmem:[#allocation4 + $0x70] sm:$0xff] %vm1765, %v1698
        %1781 = vst.msk [vmem:[#allocation4 + $0x78] sm:$0xff] %vm1765, %v1700
        %1782 = vst.msk [vmem:[#allocation4 + $0x80] sm:$0xff] %vm1765, %v1702
        %1783 = vst.msk [vmem:[#allocation4 + $0x88] sm:$0xff] %vm1765, %v1704
        %1784 = vst.msk [vmem:[#allocation4 + $0x90] sm:$0xff] %vm1765, %v1706
        %1785 = vst.msk [vmem:[#allocation4 + $0x98] sm:$0xff] %vm1765, %v1708
        %1786 = vst.msk [vmem:[#allocation4 + $0xa0] sm:$0xff] %vm1765, %v1710
        %1787 = vst.msk [vmem:[#allocation4 + $0xa8] sm:$0xff] %vm1765, %v1712
        %1788 = vst.msk [vmem:[#allocation4 + $0xb0] sm:$0xff] %vm1765, %v1714
        %1789 = vst.msk [vmem:[#allocation4 + $0xb8] sm:$0xff] %vm1765, %v1716
        %1790 = vst.msk [vmem:[#allocation4 + $0xc0] sm:$0xff] %vm1765, %v1718
        %1791 = vst.msk [vmem:[#allocation4 + $0xc8] sm:$0xff] %vm1765, %v1720
        %1792 = vst.msk [vmem:[#allocation4 + $0xd0] sm:$0xff] %vm1765, %v1722
        %1793 = vst.msk [vmem:[#allocation4 + $0xd8] sm:$0xff] %vm1765, %v1724
        %1794 = vst.msk [vmem:[#allocation4 + $0xe0] sm:$0xff] %vm1765, %v1726
        %1795 = vst.msk [vmem:[#allocation4 + $0xe8] sm:$0xff] %vm1765, %v1728
        %1796 = vst.msk [vmem:[#allocation4 + $0xf0] sm:$0xff] %vm1765, %v1730
        %1797 = vst.msk [vmem:[#allocation4 + $0xf8] sm:$0xff] %vm1765, %v1732
        %v1798 = vld [vmem:[%s1411 + $0x2] sm:$0xff]
        %v1799 = vld [vmem:[%s1411 + $0xa] sm:$0xff]
        %v1800 = vld [vmem:[%s1411 + $0x1a] sm:$0xff]
        %v1801 = vld [vmem:[%s1411 + $0x22] sm:$0xff]
        %v1802 = vld [vmem:[%s1411 + $0x32] sm:$0xff]
        %v1803 = vld [vmem:[%s1411 + $0x3a] sm:$0xff]
        %v1804 = vld [vmem:[%s1411 + $0x4a] sm:$0xff]
        %v1805 = vld [vmem:[%s1411 + $0x52] sm:$0xff]
        %v1806 = vld [vmem:[%s1411 + $0x62] sm:$0xff]
        %v1807 = vld [vmem:[%s1411 + $0x6a] sm:$0xff]
        %v1808 = vld [vmem:[%s1411 + $0x7a] sm:$0xff]
        %v1809 = vld [vmem:[%s1411 + $0x82] sm:$0xff]
        %v1810 = vld [vmem:[%s1411 + $0x92] sm:$0xff]
        %v1811 = vld [vmem:[%s1411 + $0x9a] sm:$0xff]
        %v1812 = vld [vmem:[%s1411 + $0xaa] sm:$0xff]
        %v1813 = vld [vmem:[%s1411 + $0xb2] sm:$0xff]
        %v1814 = vld [vmem:[%s1411 + $0xc2] sm:$0xff]
        %v1815 = vld [vmem:[%s1411 + $0xca] sm:$0xff]
        %v1816 = vld [vmem:[%s1411 + $0xda] sm:$0xff]
        %v1817 = vld [vmem:[%s1411 + $0xe2] sm:$0xff]
        %v1818 = vld [vmem:[%s1411 + $0xf2] sm:$0xff]
        %v1819 = vld [vmem:[%s1411 + $0xfa] sm:$0xff]
        %v1820 = vld [vmem:[%s1411 + $0x10a] sm:$0xff]
        %v1821 = vld [vmem:[%s1411 + $0x112] sm:$0xff]
        %v1822 = vld [vmem:[%s1411 + $0x122] sm:$0xff]
        %v1823 = vld [vmem:[%s1411 + $0x12a] sm:$0xff]
        %v1824 = vld [vmem:[%s1411 + $0x13a] sm:$0xff]
        %v1825 = vld [vmem:[%s1411 + $0x142] sm:$0xff]
        %v1826 = vld [vmem:[%s1411 + $0x152] sm:$0xff]
        %v1827 = vld [vmem:[%s1411 + $0x15a] sm:$0xff]
        %v1828 = vld [vmem:[%s1411 + $0x16a] sm:$0xff]
        %v1829 = vld [vmem:[%s1411 + $0x172] sm:$0xff]
        %1862 = vrot.lane.b32.xlu0 %v1798, 32
        %v1863 = vpop.permute.xlu0 %1862
        %1864 = vrot.lane.b32.xlu0 %v1799, 32
        %v1865 = vpop.permute.xlu0 %1864
        %1866 = vrot.lane.b32.xlu0 %v1800, 32
        %v1867 = vpop.permute.xlu0 %1866
        %1868 = vrot.lane.b32.xlu0 %v1801, 32
        %v1869 = vpop.permute.xlu0 %1868
        %1870 = vrot.lane.b32.xlu0 %v1802, 32
        %v1871 = vpop.permute.xlu0 %1870
        %1872 = vrot.lane.b32.xlu0 %v1803, 32
        %v1873 = vpop.permute.xlu0 %1872
        %1874 = vrot.lane.b32.xlu0 %v1804, 32
        %v1875 = vpop.permute.xlu0 %1874
        %1876 = vrot.lane.b32.xlu0 %v1805, 32
        %v1877 = vpop.permute.xlu0 %1876
        %1878 = vrot.lane.b32.xlu0 %v1806, 32
        %v1879 = vpop.permute.xlu0 %1878
        %1880 = vrot.lane.b32.xlu0 %v1807, 32
        %v1881 = vpop.permute.xlu0 %1880
        %1882 = vrot.lane.b32.xlu0 %v1808, 32
        %v1883 = vpop.permute.xlu0 %1882
        %1884 = vrot.lane.b32.xlu0 %v1809, 32
        %v1885 = vpop.permute.xlu0 %1884
        %1886 = vrot.lane.b32.xlu0 %v1810, 32
        %v1887 = vpop.permute.xlu0 %1886
        %1888 = vrot.lane.b32.xlu0 %v1811, 32
        %v1889 = vpop.permute.xlu0 %1888
        %1890 = vrot.lane.b32.xlu0 %v1812, 32
        %v1891 = vpop.permute.xlu0 %1890
        %1892 = vrot.lane.b32.xlu0 %v1813, 32
        %v1893 = vpop.permute.xlu0 %1892
        %1894 = vrot.lane.b32.xlu0 %v1814, 32
        %v1895 = vpop.permute.xlu0 %1894
        %1896 = vrot.lane.b32.xlu0 %v1815, 32
        %v1897 = vpop.permute.xlu0 %1896
        %1898 = vrot.lane.b32.xlu0 %v1816, 32
        %v1899 = vpop.permute.xlu0 %1898
        %1900 = vrot.lane.b32.xlu0 %v1817, 32
        %v1901 = vpop.permute.xlu0 %1900
        %1902 = vrot.lane.b32.xlu0 %v1818, 32
        %v1903 = vpop.permute.xlu0 %1902
        %1904 = vrot.lane.b32.xlu0 %v1819, 32
        %v1905 = vpop.permute.xlu0 %1904
        %1906 = vrot.lane.b32.xlu0 %v1820, 32
        %v1907 = vpop.permute.xlu0 %1906
        %1908 = vrot.lane.b32.xlu0 %v1821, 32
        %v1909 = vpop.permute.xlu0 %1908
        %1910 = vrot.lane.b32.xlu0 %v1822, 32
        %v1911 = vpop.permute.xlu0 %1910
        %1912 = vrot.lane.b32.xlu0 %v1823, 32
        %v1913 = vpop.permute.xlu0 %1912
        %1914 = vrot.lane.b32.xlu0 %v1824, 32
        %v1915 = vpop.permute.xlu0 %1914
        %1916 = vrot.lane.b32.xlu0 %v1825, 32
        %v1917 = vpop.permute.xlu0 %1916
        %1918 = vrot.lane.b32.xlu0 %v1826, 32
        %v1919 = vpop.permute.xlu0 %1918
        %1920 = vrot.lane.b32.xlu0 %v1827, 32
        %v1921 = vpop.permute.xlu0 %1920
        %1922 = vrot.lane.b32.xlu0 %v1828, 32
        %v1923 = vpop.permute.xlu0 %1922
        %1924 = vrot.lane.b32.xlu0 %v1829, 32
        %v1925 = vpop.permute.xlu0 %1924
        %vm1958 = vcmask 294144
        %1959 = vst.msk [vmem:[#allocation4] sm:$0xff] %vm1958, %v1863
        %1960 = vst.msk [vmem:[#allocation4 + $0x8] sm:$0xff] %vm1958, %v1865
        %1961 = vst.msk [vmem:[#allocation4 + $0x10] sm:$0xff] %vm1958, %v1867
        %1962 = vst.msk [vmem:[#allocation4 + $0x18] sm:$0xff] %vm1958, %v1869
        %1963 = vst.msk [vmem:[#allocation4 + $0x20] sm:$0xff] %vm1958, %v1871
        %1964 = vst.msk [vmem:[#allocation4 + $0x28] sm:$0xff] %vm1958, %v1873
        %1965 = vst.msk [vmem:[#allocation4 + $0x30] sm:$0xff] %vm1958, %v1875
        %1966 = vst.msk [vmem:[#allocation4 + $0x38] sm:$0xff] %vm1958, %v1877
        %1967 = vst.msk [vmem:[#allocation4 + $0x40] sm:$0xff] %vm1958, %v1879
        %1968 = vst.msk [vmem:[#allocation4 + $0x48] sm:$0xff] %vm1958, %v1881
        %1969 = vst.msk [vmem:[#allocation4 + $0x50] sm:$0xff] %vm1958, %v1883
        %1970 = vst.msk [vmem:[#allocation4 + $0x58] sm:$0xff] %vm1958, %v1885
        %1971 = vst.msk [vmem:[#allocation4 + $0x60] sm:$0xff] %vm1958, %v1887
        %1972 = vst.msk [vmem:[#allocation4 + $0x68] sm:$0xff] %vm1958, %v1889
        %1973 = vst.msk [vmem:[#allocation4 + $0x70] sm:$0xff] %vm1958, %v1891
        %1974 = vst.msk [vmem:[#allocation4 + $0x78] sm:$0xff] %vm1958, %v1893
        %1975 = vst.msk [vmem:[#allocation4 + $0x80] sm:$0xff] %vm1958, %v1895
        %1976 = vst.msk [vmem:[#allocation4 + $0x88] sm:$0xff] %vm1958, %v1897
        %1977 = vst.msk [vmem:[#allocation4 + $0x90] sm:$0xff] %vm1958, %v1899
        %1978 = vst.msk [vmem:[#allocation4 + $0x98] sm:$0xff] %vm1958, %v1901
        %1979 = vst.msk [vmem:[#allocation4 + $0xa0] sm:$0xff] %vm1958, %v1903
        %1980 = vst.msk [vmem:[#allocation4 + $0xa8] sm:$0xff] %vm1958, %v1905
        %1981 = vst.msk [vmem:[#allocation4 + $0xb0] sm:$0xff] %vm1958, %v1907
        %1982 = vst.msk [vmem:[#allocation4 + $0xb8] sm:$0xff] %vm1958, %v1909
        %1983 = vst.msk [vmem:[#allocation4 + $0xc0] sm:$0xff] %vm1958, %v1911
        %1984 = vst.msk [vmem:[#allocation4 + $0xc8] sm:$0xff] %vm1958, %v1913
        %1985 = vst.msk [vmem:[#allocation4 + $0xd0] sm:$0xff] %vm1958, %v1915
        %1986 = vst.msk [vmem:[#allocation4 + $0xd8] sm:$0xff] %vm1958, %v1917
        %1987 = vst.msk [vmem:[#allocation4 + $0xe0] sm:$0xff] %vm1958, %v1919
        %1988 = vst.msk [vmem:[#allocation4 + $0xe8] sm:$0xff] %vm1958, %v1921
        %1989 = vst.msk [vmem:[#allocation4 + $0xf0] sm:$0xff] %vm1958, %v1923
        %1990 = vst.msk [vmem:[#allocation4 + $0xf8] sm:$0xff] %vm1958, %v1925
        %v1991 = vld [vmem:[#allocation4] sm:$0xff]
        %v1992 = vld [vmem:[#allocation4 + $0x8] sm:$0xff]
        %v1993 = vld [vmem:[#allocation4 + $0x10] sm:$0xff]
        %v1994 = vld [vmem:[#allocation4 + $0x18] sm:$0xff]
        %v1995 = vld [vmem:[#allocation4 + $0x20] sm:$0xff]
        %v1996 = vld [vmem:[#allocation4 + $0x28] sm:$0xff]
        %v1997 = vld [vmem:[#allocation4 + $0x30] sm:$0xff]
        %v1998 = vld [vmem:[#allocation4 + $0x38] sm:$0xff]
        %v1999 = vld [vmem:[#allocation4 + $0x40] sm:$0xff]
        %v2000 = vld [vmem:[#allocation4 + $0x48] sm:$0xff]
        %v2001 = vld [vmem:[#allocation4 + $0x50] sm:$0xff]
        %v2002 = vld [vmem:[#allocation4 + $0x58] sm:$0xff]
        %v2003 = vld [vmem:[#allocation4 + $0x60] sm:$0xff]
        %v2004 = vld [vmem:[#allocation4 + $0x68] sm:$0xff]
        %v2005 = vld [vmem:[#allocation4 + $0x70] sm:$0xff]
        %v2006 = vld [vmem:[#allocation4 + $0x78] sm:$0xff]
        %v2007 = vld [vmem:[#allocation4 + $0x80] sm:$0xff]
        %v2008 = vld [vmem:[#allocation4 + $0x88] sm:$0xff]
        %v2009 = vld [vmem:[#allocation4 + $0x90] sm:$0xff]
        %v2010 = vld [vmem:[#allocation4 + $0x98] sm:$0xff]
        %v2011 = vld [vmem:[#allocation4 + $0xa0] sm:$0xff]
        %v2012 = vld [vmem:[#allocation4 + $0xa8] sm:$0xff]
        %v2013 = vld [vmem:[#allocation4 + $0xb0] sm:$0xff]
        %v2014 = vld [vmem:[#allocation4 + $0xb8] sm:$0xff]
        %v2015 = vld [vmem:[#allocation4 + $0xc0] sm:$0xff]
        %v2016 = vld [vmem:[#allocation4 + $0xc8] sm:$0xff]
        %v2017 = vld [vmem:[#allocation4 + $0xd0] sm:$0xff]
        %v2018 = vld [vmem:[#allocation4 + $0xd8] sm:$0xff]
        %v2019 = vld [vmem:[#allocation4 + $0xe0] sm:$0xff]
        %v2020 = vld [vmem:[#allocation4 + $0xe8] sm:$0xff]
        %v2021 = vld [vmem:[#allocation4 + $0xf0] sm:$0xff]
        %v2022 = vld [vmem:[#allocation4 + $0xf8] sm:$0xff]
        %v2023 = vld [vmem:[%s1] sm:$0xff]
        %v2024 = vld [vmem:[%s1 + $0x8] sm:$0xff]
        %v2025 = vld [vmem:[%s1 + $0x10] sm:$0xff]
        %v2026 = vld [vmem:[%s1 + $0x18] sm:$0xff]
        %v2027 = vld [vmem:[%s1 + $0x20] sm:$0xf]
        %v2028 = vld [vmem:[%s2] sm:$0x1]
        %v2030 = vlaneseq
        %v2031 = vshrl.u32 %v2030, 7
        %v2032 = vsub.s32 0, %v2031
        %v2033 = vrot.slane %v2028, %v2032
        %vm2035 = vcmask 293888
        %v2037 = vsel %vm2035, %v1991, 0
        %v2040 = vsel %vm2035, %v1992, 0
        %v2043 = vsel %vm2035, %v1993, 0
        %v2046 = vsel %vm2035, %v1994, 0
        %v2049 = vsel %vm2035, %v1995, 0
        %v2052 = vsel %vm2035, %v1996, 0
        %v2055 = vsel %vm2035, %v1997, 0
        %v2058 = vsel %vm2035, %v1998, 0
        %v2061 = vsel %vm2035, %v1999, 0
        %v2064 = vsel %vm2035, %v2000, 0
        %v2067 = vsel %vm2035, %v2001, 0
        %v2070 = vsel %vm2035, %v2002, 0
        %v2073 = vsel %vm2035, %v2003, 0
        %v2076 = vsel %vm2035, %v2004, 0
        %v2079 = vsel %vm2035, %v2005, 0
        %v2082 = vsel %vm2035, %v2006, 0
        %v2085 = vsel %vm2035, %v2007, 0
        %v2088 = vsel %vm2035, %v2008, 0
        %v2091 = vsel %vm2035, %v2009, 0
        %v2094 = vsel %vm2035, %v2010, 0
        %v2097 = vsel %vm2035, %v2011, 0
        %v2100 = vsel %vm2035, %v2012, 0
        %v2103 = vsel %vm2035, %v2013, 0
        %v2106 = vsel %vm2035, %v2014, 0
        %v2109 = vsel %vm2035, %v2015, 0
        %v2112 = vsel %vm2035, %v2016, 0
        %v2115 = vsel %vm2035, %v2017, 0
        %v2118 = vsel %vm2035, %v2018, 0
        %v2121 = vsel %vm2035, %v2019, 0
        %v2124 = vsel %vm2035, %v2020, 0
        %v2127 = vsel %vm2035, %v2021, 0
        %v2130 = vsel %vm2035, %v2022, 0
        %vm2132 = vcmask 1043456
        %v2134 = vsel %vm2132, %v2027, 0
        %2136 = vmatprep.subr.mxu0 0.0
        %2137 = vmatpush1.msra.mxu0 %v2023
        %2138 = vmatprep.subr.mxu0 0.0
        %2139 = vmatpush1.msra.mxu0 %v2024
        %2140 = vmatprep.subr.mxu0 0.0
        %2141 = vmatpush1.msra.mxu0 %v2025
        %2142 = vmatprep.subr.mxu0 0.0
        %2143 = vmatpush1.msra.mxu0 %v2026
        %2144 = vmatprep.subr.mxu0 0.0
        %2145 = vmatpush1.msra.mxu0 %v2134
        %2146 = vmatprep.subr.mxu0 0.0
        %2147 = vmatpush1.msra.mxu0 0.0
        %2148 = vmatprep.subr.mxu0 0.0
        %2149 = vmatpush1.msra.mxu0 0.0
        %2150 = vmatprep.subr.mxu0 0.0
        %2151 = vmatpush1.msra.mxu0 0.0
        %2152 = vmatprep.subr.mxu0 0.0
        %2153 = vmatpush1.msra.mxu0 0.0
        %2154 = vmatprep.subr.mxu0 0.0
        %2155 = vmatpush1.msra.mxu0 0.0
        %2156 = vmatprep.subr.mxu0 0.0
        %2157 = vmatpush1.msra.mxu0 0.0
        %2158 = vmatprep.subr.mxu0 0.0
        %2159 = vmatpush1.msra.mxu0 0.0
        %2160 = vmatprep.subr.mxu0 0.0
        %2161 = vmatpush1.msra.mxu0 0.0
        %2162 = vmatprep.subr.mxu0 0.0
        %2163 = vmatpush1.msra.mxu0 0.0
        %2164 = vmatprep.subr.mxu0 0.0
        %2165 = vmatpush1.msra.mxu0 0.0
        %2166 = vmatprep.subr.mxu0 0.0
        %2167 = vmatpush1.msra.mxu0 0.0
        %2168 = vmatprep.subr.mxu0 0.0
        %2169 = vmatpush1.msra.mxu0 0.0
        %2170 = vmatprep.subr.mxu0 0.0
        %2171 = vmatpush1.msra.mxu0 0.0
        %2172 = vmatprep.subr.mxu0 0.0
        %2173 = vmatpush1.msra.mxu0 0.0
        %2174 = vmatprep.subr.mxu0 0.0
        %2175 = vmatpush1.msra.mxu0 0.0
        %2176 = vmatprep.subr.mxu0 0.0
        %2177 = vmatpush1.msra.mxu0 0.0
        %2178 = vmatprep.subr.mxu0 0.0
        %2179 = vmatpush1.msra.mxu0 0.0
        %2180 = vmatprep.subr.mxu0 0.0
        %2181 = vmatpush1.msra.mxu0 0.0
        %2182 = vmatprep.subr.mxu0 0.0
        %2183 = vmatpush1.msra.mxu0 0.0
        %2184 = vmatprep.subr.mxu0 0.0
        %2185 = vmatpush1.msra.mxu0 0.0
        %2186 = vmatprep.subr.mxu0 0.0
        %2187 = vmatpush1.msra.mxu0 0.0
        %2188 = vmatprep.subr.mxu0 0.0
        %2189 = vmatpush1.msra.mxu0 0.0
        %2190 = vmatprep.subr.mxu0 0.0
        %2191 = vmatpush1.msra.mxu0 0.0
        %2192 = vmatprep.subr.mxu0 0.0
        %2193 = vmatpush1.msra.mxu0 0.0
        %2194 = vmatprep.subr.mxu0 0.0
        %2195 = vmatpush1.msra.mxu0 0.0
        %2196 = vmatprep.subr.mxu0 0.0
        %2197 = vmatpush1.msra.mxu0 0.0
        %2198 = vmatprep.subr.mxu0 0.0
        %2199 = vmatpush1.msra.mxu0 0.0
        %2200 = vmatprep.mubr.f32.mxu0 0.0
        %2201 = vmatmul.mubr.f32.gmra.mrb[0].mxu0 %v2037
        %v2202 = vpop.f32.mrb[0].mxu0
        %v2203 = vadd.f32 %v2033, %v2202
        %v2204 = vpop.f32.mrb[0].mxu0
        %2205 = vmatprep.mubr.f32.mxu0 0.0
        %2206 = vmatmul.mubr.f32.gmra.mrb[0].mxu0 %v2040
        %v2207 = vpop.f32.mrb[0].mxu0
        %v2208 = vadd.f32 %v2033, %v2207
        %v2209 = vpop.f32.mrb[0].mxu0
        %2210 = vmatprep.mubr.f32.mxu0 0.0
        %2211 = vmatmul.mubr.f32.gmra.mrb[0].mxu0 %v2043
        %v2212 = vpop.f32.mrb[0].mxu0
        %v2213 = vadd.f32 %v2033, %v2212
        %v2214 = vpop.f32.mrb[0].mxu0
        %2215 = vmatprep.mubr.f32.mxu0 0.0
        %2216 = vmatmul.mubr.f32.gmra.mrb[0].mxu0 %v2046
        %v2217 = vpop.f32.mrb[0].mxu0
        %v2218 = vadd.f32 %v2033, %v2217
        %v2219 = vpop.f32.mrb[0].mxu0
        %2220 = vmatprep.mubr.f32.mxu0 0.0
        %2221 = vmatmul.mubr.f32.gmra.mrb[0].mxu0 %v2049
        %v2222 = vpop.f32.mrb[0].mxu0
        %v2223 = vadd.f32 %v2033, %v2222
        %v2224 = vpop.f32.mrb[0].mxu0
        %2225 = vmatprep.mubr.f32.mxu0 0.0
        %2226 = vmatmul.mubr.f32.gmra.mrb[0].mxu0 %v2052
        %v2227 = vpop.f32.mrb[0].mxu0
        %v2228 = vadd.f32 %v2033, %v2227
        %v2229 = vpop.f32.mrb[0].mxu0
        %2230 = vmatprep.mubr.f32.mxu0 0.0
        %2231 = vmatmul.mubr.f32.gmra.mrb[0].mxu0 %v2055
        %v2232 = vpop.f32.mrb[0].mxu0
        %v2233 = vadd.f32 %v2033, %v2232
        %v2234 = vpop.f32.mrb[0].mxu0
        %2235 = vmatprep.mubr.f32.mxu0 0.0
        %2236 = vmatmul.mubr.f32.gmra.mrb[0].mxu0 %v2058
        %v2237 = vpop.f32.mrb[0].mxu0
        %v2238 = vadd.f32 %v2033, %v2237
        %v2239 = vpop.f32.mrb[0].mxu0
        %2240 = vmatprep.mubr.f32.mxu0 0.0
        %2241 = vmatmul.mubr.f32.gmra.mrb[0].mxu0 %v2061
        %v2242 = vpop.f32.mrb[0].mxu0
        %v2243 = vadd.f32 %v2033, %v2242
        %v2244 = vpop.f32.mrb[0].mxu0
        %2245 = vmatprep.mubr.f32.mxu0 0.0
        %2246 = vmatmul.mubr.f32.gmra.mrb[0].mxu0 %v2064
        %v2247 = vpop.f32.mrb[0].mxu0
        %v2248 = vadd.f32 %v2033, %v2247
        %v2249 = vpop.f32.mrb[0].mxu0
        %2250 = vmatprep.mubr.f32.mxu0 0.0
        %2251 = vmatmul.mubr.f32.gmra.mrb[0].mxu0 %v2067
        %v2252 = vpop.f32.mrb[0].mxu0
        %v2253 = vadd.f32 %v2033, %v2252
        %v2254 = vpop.f32.mrb[0].mxu0
        %2255 = vmatprep.mubr.f32.mxu0 0.0
        %2256 = vmatmul.mubr.f32.gmra.mrb[0].mxu0 %v2070
        %v2257 = vpop.f32.mrb[0].mxu0
        %v2258 = vadd.f32 %v2033, %v2257
        %v2259 = vpop.f32.mrb[0].mxu0
        %2260 = vmatprep.mubr.f32.mxu0 0.0
        %2261 = vmatmul.mubr.f32.gmra.mrb[0].mxu0 %v2073
        %v2262 = vpop.f32.mrb[0].mxu0
        %v2263 = vadd.f32 %v2033, %v2262
        %v2264 = vpop.f32.mrb[0].mxu0
        %2265 = vmatprep.mubr.f32.mxu0 0.0
        %2266 = vmatmul.mubr.f32.gmra.mrb[0].mxu0 %v2076
        %v2267 = vpop.f32.mrb[0].mxu0
        %v2268 = vadd.f32 %v2033, %v2267
        %v2269 = vpop.f32.mrb[0].mxu0
        %2270 = vmatprep.mubr.f32.mxu0 0.0
        %2271 = vmatmul.mubr.f32.gmra.mrb[0].mxu0 %v2079
        %v2272 = vpop.f32.mrb[0].mxu0
        %v2273 = vadd.f32 %v2033, %v2272
        %v2274 = vpop.f32.mrb[0].mxu0
        %2275 = vmatprep.mubr.f32.mxu0 0.0
        %2276 = vmatmul.mubr.f32.gmra.mrb[0].mxu0 %v2082
        %v2277 = vpop.f32.mrb[0].mxu0
        %v2278 = vadd.f32 %v2033, %v2277
        %v2279 = vpop.f32.mrb[0].mxu0
        %2280 = vmatprep.mubr.f32.mxu0 0.0
        %2281 = vmatmul.mubr.f32.gmra.mrb[0].mxu0 %v2085
        %v2282 = vpop.f32.mrb[0].mxu0
        %v2283 = vadd.f32 %v2033, %v2282
        %v2284 = vpop.f32.mrb[0].mxu0
        %2285 = vmatprep.mubr.f32.mxu0 0.0
        %2286 = vmatmul.mubr.f32.gmra.mrb[0].mxu0 %v2088
        %v2287 = vpop.f32.mrb[0].mxu0
        %v2288 = vadd.f32 %v2033, %v2287
        %v2289 = vpop.f32.mrb[0].mxu0
        %2290 = vmatprep.mubr.f32.mxu0 0.0
        %2291 = vmatmul.mubr.f32.gmra.mrb[0].mxu0 %v2091
        %v2292 = vpop.f32.mrb[0].mxu0
        %v2293 = vadd.f32 %v2033, %v2292
        %v2294 = vpop.f32.mrb[0].mxu0
        %2295 = vmatprep.mubr.f32.mxu0 0.0
        %2296 = vmatmul.mubr.f32.gmra.mrb[0].mxu0 %v2094
        %v2297 = vpop.f32.mrb[0].mxu0
        %v2298 = vadd.f32 %v2033, %v2297
        %v2299 = vpop.f32.mrb[0].mxu0
        %2300 = vmatprep.mubr.f32.mxu0 0.0
        %2301 = vmatmul.mubr.f32.gmra.mrb[0].mxu0 %v2097
        %v2302 = vpop.f32.mrb[0].mxu0
        %v2303 = vadd.f32 %v2033, %v2302
        %v2304 = vpop.f32.mrb[0].mxu0
        %2305 = vmatprep.mubr.f32.mxu0 0.0
        %2306 = vmatmul.mubr.f32.gmra.mrb[0].mxu0 %v2100
        %v2307 = vpop.f32.mrb[0].mxu0
        %v2308 = vadd.f32 %v2033, %v2307
        %v2309 = vpop.f32.mrb[0].mxu0
        %2310 = vmatprep.mubr.f32.mxu0 0.0
        %2311 = vmatmul.mubr.f32.gmra.mrb[0].mxu0 %v2103
        %v2312 = vpop.f32.mrb[0].mxu0
        %v2313 = vadd.f32 %v2033, %v2312
        %v2314 = vpop.f32.mrb[0].mxu0
        %2315 = vmatprep.mubr.f32.mxu0 0.0
        %2316 = vmatmul.mubr.f32.gmra.mrb[0].mxu0 %v2106
        %v2317 = vpop.f32.mrb[0].mxu0
        %v2318 = vadd.f32 %v2033, %v2317
        %v2319 = vpop.f32.mrb[0].mxu0
        %2320 = vmatprep.mubr.f32.mxu0 0.0
        %2321 = vmatmul.mubr.f32.gmra.mrb[0].mxu0 %v2109
        %v2322 = vpop.f32.mrb[0].mxu0
        %v2323 = vadd.f32 %v2033, %v2322
        %v2324 = vpop.f32.mrb[0].mxu0
        %2325 = vmatprep.mubr.f32.mxu0 0.0
        %2326 = vmatmul.mubr.f32.gmra.mrb[0].mxu0 %v2112
        %v2327 = vpop.f32.mrb[0].mxu0
        %v2328 = vadd.f32 %v2033, %v2327
        %v2329 = vpop.f32.mrb[0].mxu0
        %2330 = vmatprep.mubr.f32.mxu0 0.0
        %2331 = vmatmul.mubr.f32.gmra.mrb[0].mxu0 %v2115
        %v2332 = vpop.f32.mrb[0].mxu0
        %v2333 = vadd.f32 %v2033, %v2332
        %v2334 = vpop.f32.mrb[0].mxu0
        %2335 = vmatprep.mubr.f32.mxu0 0.0
        %2336 = vmatmul.mubr.f32.gmra.mrb[0].mxu0 %v2118
        %v2337 = vpop.f32.mrb[0].mxu0
        %v2338 = vadd.f32 %v2033, %v2337
        %v2339 = vpop.f32.mrb[0].mxu0
        %2340 = vmatprep.mubr.f32.mxu0 0.0
        %2341 = vmatmul.mubr.f32.gmra.mrb[0].mxu0 %v2121
        %v2342 = vpop.f32.mrb[0].mxu0
        %v2343 = vadd.f32 %v2033, %v2342
        %v2344 = vpop.f32.mrb[0].mxu0
        %2345 = vmatprep.mubr.f32.mxu0 0.0
        %2346 = vmatmul.mubr.f32.gmra.mrb[0].mxu0 %v2124
        %v2347 = vpop.f32.mrb[0].mxu0
        %v2348 = vadd.f32 %v2033, %v2347
        %v2349 = vpop.f32.mrb[0].mxu0
        %2350 = vmatprep.mubr.f32.mxu0 0.0
        %2351 = vmatmul.mubr.f32.gmra.mrb[0].mxu0 %v2127
        %v2352 = vpop.f32.mrb[0].mxu0
        %v2353 = vadd.f32 %v2033, %v2352
        %v2354 = vpop.f32.mrb[0].mxu0
        %2355 = vmatprep.mubr.f32.mxu0 0.0
        %2356 = vmatmul.mubr.f32.gmra.mrb[0].mxu0 %v2130
        %v2357 = vpop.f32.mrb[0].mxu0
        %v2358 = vadd.f32 %v2033, %v2357
        %v2359 = vpop.f32.mrb[0].mxu0
        %2360 = vdwg.mxu0
        %v2361 = vmax.f32 %v2203, 0.0
        %v2362 = vmax.f32 %v2208, 0.0
        %v2363 = vmax.f32 %v2213, 0.0
        %v2364 = vmax.f32 %v2218, 0.0
        %v2365 = vmax.f32 %v2223, 0.0
        %v2366 = vmax.f32 %v2228, 0.0
        %v2367 = vmax.f32 %v2233, 0.0
        %v2368 = vmax.f32 %v2238, 0.0
        %v2369 = vmax.f32 %v2243, 0.0
        %v2370 = vmax.f32 %v2248, 0.0
        %v2371 = vmax.f32 %v2253, 0.0
        %v2372 = vmax.f32 %v2258, 0.0
        %v2373 = vmax.f32 %v2263, 0.0
        %v2374 = vmax.f32 %v2268, 0.0
        %v2375 = vmax.f32 %v2273, 0.0
        %v2376 = vmax.f32 %v2278, 0.0
        %v2377 = vmax.f32 %v2283, 0.0
        %v2378 = vmax.f32 %v2288, 0.0
        %v2379 = vmax.f32 %v2293, 0.0
        %v2380 = vmax.f32 %v2298, 0.0
        %v2381 = vmax.f32 %v2303, 0.0
        %v2382 = vmax.f32 %v2308, 0.0
        %v2383 = vmax.f32 %v2313, 0.0
        %v2384 = vmax.f32 %v2318, 0.0
        %v2385 = vmax.f32 %v2323, 0.0
        %v2386 = vmax.f32 %v2328, 0.0
        %v2387 = vmax.f32 %v2333, 0.0
        %v2388 = vmax.f32 %v2338, 0.0
        %v2389 = vmax.f32 %v2343, 0.0
        %v2390 = vmax.f32 %v2348, 0.0
        %v2391 = vmax.f32 %v2353, 0.0
        %v2392 = vmax.f32 %v2358, 0.0
        %s2393 = scalar_lea.vmem [#allocation3], 24
        %2394 = vst [vmem:[%s2393 + $0x1] sm:$0xff] %v2361
        %2395 = vst [vmem:[%s2393 + $0x9] sm:$0xff] %v2362
        %2396 = vst [vmem:[%s2393 + $0x19] sm:$0xff] %v2363
        %2397 = vst [vmem:[%s2393 + $0x21] sm:$0xff] %v2364
        %2398 = vst [vmem:[%s2393 + $0x31] sm:$0xff] %v2365
        %2399 = vst [vmem:[%s2393 + $0x39] sm:$0xff] %v2366
        %2400 = vst [vmem:[%s2393 + $0x49] sm:$0xff] %v2367
        %2401 = vst [vmem:[%s2393 + $0x51] sm:$0xff] %v2368
        %2402 = vst [vmem:[%s2393 + $0x61] sm:$0xff] %v2369
        %2403 = vst [vmem:[%s2393 + $0x69] sm:$0xff] %v2370
        %2404 = vst [vmem:[%s2393 + $0x79] sm:$0xff] %v2371
        %2405 = vst [vmem:[%s2393 + $0x81] sm:$0xff] %v2372
        %2406 = vst [vmem:[%s2393 + $0x91] sm:$0xff] %v2373
        %2407 = vst [vmem:[%s2393 + $0x99] sm:$0xff] %v2374
        %2408 = vst [vmem:[%s2393 + $0xa9] sm:$0xff] %v2375
        %2409 = vst [vmem:[%s2393 + $0xb1] sm:$0xff] %v2376
        %2410 = vst [vmem:[%s2393 + $0xc1] sm:$0xff] %v2377
        %2411 = vst [vmem:[%s2393 + $0xc9] sm:$0xff] %v2378
        %2412 = vst [vmem:[%s2393 + $0xd9] sm:$0xff] %v2379
        %2413 = vst [vmem:[%s2393 + $0xe1] sm:$0xff] %v2380
        %2414 = vst [vmem:[%s2393 + $0xf1] sm:$0xff] %v2381
        %2415 = vst [vmem:[%s2393 + $0xf9] sm:$0xff] %v2382
        %2416 = vst [vmem:[%s2393 + $0x109] sm:$0xff] %v2383
        %2417 = vst [vmem:[%s2393 + $0x111] sm:$0xff] %v2384
        %2418 = vst [vmem:[%s2393 + $0x121] sm:$0xff] %v2385
        %2419 = vst [vmem:[%s2393 + $0x129] sm:$0xff] %v2386
        %2420 = vst [vmem:[%s2393 + $0x139] sm:$0xff] %v2387
        %2421 = vst [vmem:[%s2393 + $0x141] sm:$0xff] %v2388
        %2422 = vst [vmem:[%s2393 + $0x151] sm:$0xff] %v2389
        %2423 = vst [vmem:[%s2393 + $0x159] sm:$0xff] %v2390
        %2424 = vst [vmem:[%s2393 + $0x169] sm:$0xff] %v2391
        %2425 = vst [vmem:[%s2393 + $0x171] sm:$0xff] %v2392
        %2426 = vst [vmem:[#allocation3 + $0x1] sm:$0xff] %v2361
        %2427 = vst [vmem:[#allocation3 + $0x9] sm:$0xff] %v2362
        %s2428 = scalar_lea.vmem [#allocation3], 408
        %2429 = vst [vmem:[%s2428 + $0x1] sm:$0xff] %v2391
        %2430 = vst [vmem:[%s2428 + $0x9] sm:$0xff] %v2392
        %v2431 = vld [vmem:[#allocation3 + $0x1] sm:$0x1]
        %v2432 = vld [vmem:[#allocation3 + $0x19] sm:$0x1]
        %v2433 = vld [vmem:[#allocation3 + $0x31] sm:$0x1]
        %v2434 = vld [vmem:[#allocation3 + $0x49] sm:$0x1]
        %v2435 = vld [vmem:[#allocation3 + $0x61] sm:$0x1]
        %v2436 = vld [vmem:[#allocation3 + $0x79] sm:$0x1]
        %v2437 = vld [vmem:[#allocation3 + $0x91] sm:$0x1]
        %v2438 = vld [vmem:[#allocation3 + $0xa9] sm:$0x1]
        %v2439 = vld [vmem:[#allocation3 + $0xc1] sm:$0x1]
        %v2440 = vld [vmem:[#allocation3 + $0xd9] sm:$0x1]
        %v2441 = vld [vmem:[#allocation3 + $0xf1] sm:$0x1]
        %v2442 = vld [vmem:[#allocation3 + $0x109] sm:$0x1]
        %v2443 = vld [vmem:[#allocation3 + $0x121] sm:$0x1]
        %v2444 = vld [vmem:[#allocation3 + $0x139] sm:$0x1]
        %v2445 = vld [vmem:[#allocation3 + $0x151] sm:$0x1]
        %v2446 = vld [vmem:[#allocation3 + $0x169] sm:$0x1]
        %v2447 = vld [vmem:[#allocation3 + $0x181] sm:$0x1]
        %v2448 = vld [vmem:[#allocation3 + $0x199] sm:$0x1]
        %2449 = vst [vmem:[#allocation3] sm:$0x1] %v2431
        %2450 = vst [vmem:[#allocation3 + $0x18] sm:$0x1] %v2432
        %2451 = vst [vmem:[#allocation3 + $0x30] sm:$0x1] %v2433
        %2452 = vst [vmem:[#allocation3 + $0x48] sm:$0x1] %v2434
        %2453 = vst [vmem:[#allocation3 + $0x60] sm:$0x1] %v2435
        %2454 = vst [vmem:[#allocation3 + $0x78] sm:$0x1] %v2436
        %2455 = vst [vmem:[#allocation3 + $0x90] sm:$0x1] %v2437
        %2456 = vst [vmem:[#allocation3 + $0xa8] sm:$0x1] %v2438
        %2457 = vst [vmem:[#allocation3 + $0xc0] sm:$0x1] %v2439
        %2458 = vst [vmem:[#allocation3 + $0xd8] sm:$0x1] %v2440
        %2459 = vst [vmem:[#allocation3 + $0xf0] sm:$0x1] %v2441
        %2460 = vst [vmem:[#allocation3 + $0x108] sm:$0x1] %v2442
        %2461 = vst [vmem:[#allocation3 + $0x120] sm:$0x1] %v2443
        %2462 = vst [vmem:[#allocation3 + $0x138] sm:$0x1] %v2444
        %2463 = vst [vmem:[#allocation3 + $0x150] sm:$0x1] %v2445
        %2464 = vst [vmem:[#allocation3 + $0x168] sm:$0x1] %v2446
        %2465 = vst [vmem:[#allocation3 + $0x180] sm:$0x1] %v2447
        %2466 = vst [vmem:[#allocation3 + $0x198] sm:$0x1] %v2448
        %v2467 = vld [vmem:[#allocation3 + $0x10] sm:$0x1]
        %v2468 = vld [vmem:[#allocation3 + $0x28] sm:$0x1]
        %v2469 = vld [vmem:[#allocation3 + $0x40] sm:$0x1]
        %v2470 = vld [vmem:[#allocation3 + $0x58] sm:$0x1]
        %v2471 = vld [vmem:[#allocation3 + $0x70] sm:$0x1]
        %v2472 = vld [vmem:[#allocation3 + $0x88] sm:$0x1]
        %v2473 = vld [vmem:[#allocation3 + $0xa0] sm:$0x1]
        %v2474 = vld [vmem:[#allocation3 + $0xb8] sm:$0x1]
        %v2475 = vld [vmem:[#allocation3 + $0xd0] sm:$0x1]
        %v2476 = vld [vmem:[#allocation3 + $0xe8] sm:$0x1]
        %v2477 = vld [vmem:[#allocation3 + $0x100] sm:$0x1]
        %v2478 = vld [vmem:[#allocation3 + $0x118] sm:$0x1]
        %v2479 = vld [vmem:[#allocation3 + $0x130] sm:$0x1]
        %v2480 = vld [vmem:[#allocation3 + $0x148] sm:$0x1]
        %v2481 = vld [vmem:[#allocation3 + $0x160] sm:$0x1]
        %v2482 = vld [vmem:[#allocation3 + $0x178] sm:$0x1]
        %v2483 = vld [vmem:[#allocation3 + $0x190] sm:$0x1]
        %v2484 = vld [vmem:[#allocation3 + $0x1a8] sm:$0x1]
        %2485 = vst [vmem:[#allocation3 + $0x11] sm:$0x1] %v2467
        %2486 = vst [vmem:[#allocation3 + $0x29] sm:$0x1] %v2468
        %2487 = vst [vmem:[#allocation3 + $0x41] sm:$0x1] %v2469
        %2488 = vst [vmem:[#allocation3 + $0x59] sm:$0x1] %v2470
        %2489 = vst [vmem:[#allocation3 + $0x71] sm:$0x1] %v2471
        %2490 = vst [vmem:[#allocation3 + $0x89] sm:$0x1] %v2472
        %2491 = vst [vmem:[#allocation3 + $0xa1] sm:$0x1] %v2473
        %2492 = vst [vmem:[#allocation3 + $0xb9] sm:$0x1] %v2474
        %2493 = vst [vmem:[#allocation3 + $0xd1] sm:$0x1] %v2475
        %2494 = vst [vmem:[#allocation3 + $0xe9] sm:$0x1] %v2476
        %2495 = vst [vmem:[#allocation3 + $0x101] sm:$0x1] %v2477
        %2496 = vst [vmem:[#allocation3 + $0x119] sm:$0x1] %v2478
        %2497 = vst [vmem:[#allocation3 + $0x131] sm:$0x1] %v2479
        %2498 = vst [vmem:[#allocation3 + $0x149] sm:$0x1] %v2480
        %2499 = vst [vmem:[#allocation3 + $0x161] sm:$0x1] %v2481
        %2500 = vst [vmem:[#allocation3 + $0x179] sm:$0x1] %v2482
        %2501 = vst [vmem:[#allocation3 + $0x191] sm:$0x1] %v2483
        %2502 = vst [vmem:[#allocation3 + $0x1a9] sm:$0x1] %v2484
        %v2503 = vld [vmem:[#allocation3] sm:$0xff]
        %v2504 = vld [vmem:[#allocation3 + $0x8] sm:$0xff]
        %v2505 = vld [vmem:[#allocation3 + $0x18] sm:$0xff]
        %v2506 = vld [vmem:[#allocation3 + $0x20] sm:$0xff]
        %v2507 = vld [vmem:[#allocation3 + $0x30] sm:$0xff]
        %v2508 = vld [vmem:[#allocation3 + $0x38] sm:$0xff]
        %v2509 = vld [vmem:[#allocation3 + $0x48] sm:$0xff]
        %v2510 = vld [vmem:[#allocation3 + $0x50] sm:$0xff]
        %v2511 = vld [vmem:[#allocation3 + $0x60] sm:$0xff]
        %v2512 = vld [vmem:[#allocation3 + $0x68] sm:$0xff]
        %v2513 = vld [vmem:[#allocation3 + $0x78] sm:$0xff]
        %v2514 = vld [vmem:[#allocation3 + $0x80] sm:$0xff]
        %v2515 = vld [vmem:[#allocation3 + $0x90] sm:$0xff]
        %v2516 = vld [vmem:[#allocation3 + $0x98] sm:$0xff]
        %v2517 = vld [vmem:[#allocation3 + $0xa8] sm:$0xff]
        %v2518 = vld [vmem:[#allocation3 + $0xb0] sm:$0xff]
        %v2519 = vld [vmem:[#allocation3 + $0xc0] sm:$0xff]
        %v2520 = vld [vmem:[#allocation3 + $0xc8] sm:$0xff]
        %v2521 = vld [vmem:[#allocation3 + $0xd8] sm:$0xff]
        %v2522 = vld [vmem:[#allocation3 + $0xe0] sm:$0xff]
        %v2523 = vld [vmem:[#allocation3 + $0xf0] sm:$0xff]
        %v2524 = vld [vmem:[#allocation3 + $0xf8] sm:$0xff]
        %v2525 = vld [vmem:[#allocation3 + $0x108] sm:$0xff]
        %v2526 = vld [vmem:[#allocation3 + $0x110] sm:$0xff]
        %v2527 = vld [vmem:[#allocation3 + $0x120] sm:$0xff]
        %v2528 = vld [vmem:[#allocation3 + $0x128] sm:$0xff]
        %v2529 = vld [vmem:[#allocation3 + $0x138] sm:$0xff]
        %v2530 = vld [vmem:[#allocation3 + $0x140] sm:$0xff]
        %v2531 = vld [vmem:[#allocation3 + $0x150] sm:$0xff]
        %v2532 = vld [vmem:[#allocation3 + $0x158] sm:$0xff]
        %v2533 = vld [vmem:[#allocation3 + $0x168] sm:$0xff]
        %v2534 = vld [vmem:[#allocation3 + $0x170] sm:$0xff]
        %2535 = vst [vmem:[#allocation5] sm:$0xff] %v2503
        %2536 = vst [vmem:[#allocation5 + $0x48] sm:$0xff] %v2504
        %2537 = vst [vmem:[#allocation5 + $0x90] sm:$0xff] %v2505
        %2538 = vst [vmem:[#allocation5 + $0xd8] sm:$0xff] %v2506
        %2539 = vst [vmem:[#allocation5 + $0x120] sm:$0xff] %v2507
        %2540 = vst [vmem:[#allocation5 + $0x168] sm:$0xff] %v2508
        %2541 = vst [vmem:[#allocation5 + $0x1b0] sm:$0xff] %v2509
        %2542 = vst [vmem:[#allocation5 + $0x1f8] sm:$0xff] %v2510
        %2543 = vst [vmem:[#allocation5 + $0x240] sm:$0xff] %v2511
        %2544 = vst [vmem:[#allocation5 + $0x288] sm:$0xff] %v2512
        %2545 = vst [vmem:[#allocation5 + $0x2d0] sm:$0xff] %v2513
        %2546 = vst [vmem:[#allocation5 + $0x318] sm:$0xff] %v2514
        %2547 = vst [vmem:[#allocation5 + $0x360] sm:$0xff] %v2515
        %2548 = vst [vmem:[#allocation5 + $0x3a8] sm:$0xff] %v2516
        %2549 = vst [vmem:[#allocation5 + $0x3f0] sm:$0xff] %v2517
        %2550 = vst [vmem:[#allocation5 + $0x438] sm:$0xff] %v2518
        %2551 = vst [vmem:[#allocation5 + $0x480] sm:$0xff] %v2519
        %2552 = vst [vmem:[#allocation5 + $0x4c8] sm:$0xff] %v2520
        %2553 = vst [vmem:[#allocation5 + $0x510] sm:$0xff] %v2521
        %2554 = vst [vmem:[#allocation5 + $0x558] sm:$0xff] %v2522
        %2555 = vst [vmem:[#allocation5 + $0x5a0] sm:$0xff] %v2523
        %2556 = vst [vmem:[#allocation5 + $0x5e8] sm:$0xff] %v2524
        %2557 = vst [vmem:[#allocation5 + $0x630] sm:$0xff] %v2525
        %2558 = vst [vmem:[#allocation5 + $0x678] sm:$0xff] %v2526
        %2559 = vst [vmem:[#allocation5 + $0x6c0] sm:$0xff] %v2527
        %2560 = vst [vmem:[#allocation5 + $0x708] sm:$0xff] %v2528
        %2561 = vst [vmem:[#allocation5 + $0x750] sm:$0xff] %v2529
        %2562 = vst [vmem:[#allocation5 + $0x798] sm:$0xff] %v2530
        %2563 = vst [vmem:[#allocation5 + $0x7e0] sm:$0xff] %v2531
        %2564 = vst [vmem:[#allocation5 + $0x828] sm:$0xff] %v2532
        %2565 = vst [vmem:[#allocation5 + $0x870] sm:$0xff] %v2533
        %2566 = vst [vmem:[#allocation5 + $0x8b8] sm:$0xff] %v2534
        %v2567 = vld [vmem:[#allocation3 + $0x1] sm:$0xff]
        %v2568 = vld [vmem:[#allocation3 + $0x9] sm:$0xff]
        %v2569 = vld [vmem:[#allocation3 + $0x19] sm:$0xff]
        %v2570 = vld [vmem:[#allocation3 + $0x21] sm:$0xff]
        %v2571 = vld [vmem:[#allocation3 + $0x31] sm:$0xff]
        %v2572 = vld [vmem:[#allocation3 + $0x39] sm:$0xff]
        %v2573 = vld [vmem:[#allocation3 + $0x49] sm:$0xff]
        %v2574 = vld [vmem:[#allocation3 + $0x51] sm:$0xff]
        %v2575 = vld [vmem:[#allocation3 + $0x61] sm:$0xff]
        %v2576 = vld [vmem:[#allocation3 + $0x69] sm:$0xff]
        %v2577 = vld [vmem:[#allocation3 + $0x79] sm:$0xff]
        %v2578 = vld [vmem:[#allocation3 + $0x81] sm:$0xff]
        %v2579 = vld [vmem:[#allocation3 + $0x91] sm:$0xff]
        %v2580 = vld [vmem:[#allocation3 + $0x99] sm:$0xff]
        %v2581 = vld [vmem:[#allocation3 + $0xa9] sm:$0xff]
        %v2582 = vld [vmem:[#allocation3 + $0xb1] sm:$0xff]
        %v2583 = vld [vmem:[#allocation3 + $0xc1] sm:$0xff]
        %v2584 = vld [vmem:[#allocation3 + $0xc9] sm:$0xff]
        %v2585 = vld [vmem:[#allocation3 + $0xd9] sm:$0xff]
        %v2586 = vld [vmem:[#allocation3 + $0xe1] sm:$0xff]
        %v2587 = vld [vmem:[#allocation3 + $0xf1] sm:$0xff]
        %v2588 = vld [vmem:[#allocation3 + $0xf9] sm:$0xff]
        %v2589 = vld [vmem:[#allocation3 + $0x109] sm:$0xff]
        %v2590 = vld [vmem:[#allocation3 + $0x111] sm:$0xff]
        %v2591 = vld [vmem:[#allocation3 + $0x121] sm:$0xff]
        %v2592 = vld [vmem:[#allocation3 + $0x129] sm:$0xff]
        %v2593 = vld [vmem:[#allocation3 + $0x139] sm:$0xff]
        %v2594 = vld [vmem:[#allocation3 + $0x141] sm:$0xff]
        %v2595 = vld [vmem:[#allocation3 + $0x151] sm:$0xff]
        %v2596 = vld [vmem:[#allocation3 + $0x159] sm:$0xff]
        %v2597 = vld [vmem:[#allocation3 + $0x169] sm:$0xff]
        %v2598 = vld [vmem:[#allocation3 + $0x171] sm:$0xff]
        %2599 = vst [vmem:[#allocation5 + $0x8] sm:$0xff] %v2567
        %2600 = vst [vmem:[#allocation5 + $0x50] sm:$0xff] %v2568
        %2601 = vst [vmem:[#allocation5 + $0x98] sm:$0xff] %v2569
        %2602 = vst [vmem:[#allocation5 + $0xe0] sm:$0xff] %v2570
        %2603 = vst [vmem:[#allocation5 + $0x128] sm:$0xff] %v2571
        %2604 = vst [vmem:[#allocation5 + $0x170] sm:$0xff] %v2572
        %2605 = vst [vmem:[#allocation5 + $0x1b8] sm:$0xff] %v2573
        %2606 = vst [vmem:[#allocation5 + $0x200] sm:$0xff] %v2574
        %2607 = vst [vmem:[#allocation5 + $0x248] sm:$0xff] %v2575
        %2608 = vst [vmem:[#allocation5 + $0x290] sm:$0xff] %v2576
        %2609 = vst [vmem:[#allocation5 + $0x2d8] sm:$0xff] %v2577
        %2610 = vst [vmem:[#allocation5 + $0x320] sm:$0xff] %v2578
        %2611 = vst [vmem:[#allocation5 + $0x368] sm:$0xff] %v2579
        %2612 = vst [vmem:[#allocation5 + $0x3b0] sm:$0xff] %v2580
        %2613 = vst [vmem:[#allocation5 + $0x3f8] sm:$0xff] %v2581
        %2614 = vst [vmem:[#allocation5 + $0x440] sm:$0xff] %v2582
        %2615 = vst [vmem:[#allocation5 + $0x488] sm:$0xff] %v2583
        %2616 = vst [vmem:[#allocation5 + $0x4d0] sm:$0xff] %v2584
        %2617 = vst [vmem:[#allocation5 + $0x518] sm:$0xff] %v2585
        %2618 = vst [vmem:[#allocation5 + $0x560] sm:$0xff] %v2586
        %2619 = vst [vmem:[#allocation5 + $0x5a8] sm:$0xff] %v2587
        %2620 = vst [vmem:[#allocation5 + $0x5f0] sm:$0xff] %v2588
        %2621 = vst [vmem:[#allocation5 + $0x638] sm:$0xff] %v2589
        %2622 = vst [vmem:[#allocation5 + $0x680] sm:$0xff] %v2590
        %2623 = vst [vmem:[#allocation5 + $0x6c8] sm:$0xff] %v2591
        %2624 = vst [vmem:[#allocation5 + $0x710] sm:$0xff] %v2592
        %2625 = vst [vmem:[#allocation5 + $0x758] sm:$0xff] %v2593
        %2626 = vst [vmem:[#allocation5 + $0x7a0] sm:$0xff] %v2594
        %2627 = vst [vmem:[#allocation5 + $0x7e8] sm:$0xff] %v2595
        %2628 = vst [vmem:[#allocation5 + $0x830] sm:$0xff] %v2596
        %2629 = vst [vmem:[#allocation5 + $0x878] sm:$0xff] %v2597
        %2630 = vst [vmem:[#allocation5 + $0x8c0] sm:$0xff] %v2598
        %v2631 = vld [vmem:[#allocation3 + $0x2] sm:$0xff]
        %v2632 = vld [vmem:[#allocation3 + $0xa] sm:$0xff]
        %v2633 = vld [vmem:[#allocation3 + $0x1a] sm:$0xff]
        %v2634 = vld [vmem:[#allocation3 + $0x22] sm:$0xff]
        %v2635 = vld [vmem:[#allocation3 + $0x32] sm:$0xff]
        %v2636 = vld [vmem:[#allocation3 + $0x3a] sm:$0xff]
        %v2637 = vld [vmem:[#allocation3 + $0x4a] sm:$0xff]
        %v2638 = vld [vmem:[#allocation3 + $0x52] sm:$0xff]
        %v2639 = vld [vmem:[#allocation3 + $0x62] sm:$0xff]
        %v2640 = vld [vmem:[#allocation3 + $0x6a] sm:$0xff]
        %v2641 = vld [vmem:[#allocation3 + $0x7a] sm:$0xff]
        %v2642 = vld [vmem:[#allocation3 + $0x82] sm:$0xff]
        %v2643 = vld [vmem:[#allocation3 + $0x92] sm:$0xff]
        %v2644 = vld [vmem:[#allocation3 + $0x9a] sm:$0xff]
        %v2645 = vld [vmem:[#allocation3 + $0xaa] sm:$0xff]
        %v2646 = vld [vmem:[#allocation3 + $0xb2] sm:$0xff]
        %v2647 = vld [vmem:[#allocation3 + $0xc2] sm:$0xff]
        %v2648 = vld [vmem:[#allocation3 + $0xca] sm:$0xff]
        %v2649 = vld [vmem:[#allocation3 + $0xda] sm:$0xff]
        %v2650 = vld [vmem:[#allocation3 + $0xe2] sm:$0xff]
        %v2651 = vld [vmem:[#allocation3 + $0xf2] sm:$0xff]
        %v2652 = vld [vmem:[#allocation3 + $0xfa] sm:$0xff]
        %v2653 = vld [vmem:[#allocation3 + $0x10a] sm:$0xff]
        %v2654 = vld [vmem:[#allocation3 + $0x112] sm:$0xff]
        %v2655 = vld [vmem:[#allocation3 + $0x122] sm:$0xff]
        %v2656 = vld [vmem:[#allocation3 + $0x12a] sm:$0xff]
        %v2657 = vld [vmem:[#allocation3 + $0x13a] sm:$0xff]
        %v2658 = vld [vmem:[#allocation3 + $0x142] sm:$0xff]
        %v2659 = vld [vmem:[#allocation3 + $0x152] sm:$0xff]
        %v2660 = vld [vmem:[#allocation3 + $0x15a] sm:$0xff]
        %v2661 = vld [vmem:[#allocation3 + $0x16a] sm:$0xff]
        %v2662 = vld [vmem:[#allocation3 + $0x172] sm:$0xff]
        %2663 = vst [vmem:[#allocation5 + $0x10] sm:$0xff] %v2631
        %2664 = vst [vmem:[#allocation5 + $0x58] sm:$0xff] %v2632
        %2665 = vst [vmem:[#allocation5 + $0xa0] sm:$0xff] %v2633
        %2666 = vst [vmem:[#allocation5 + $0xe8] sm:$0xff] %v2634
        %2667 = vst [vmem:[#allocation5 + $0x130] sm:$0xff] %v2635
        %2668 = vst [vmem:[#allocation5 + $0x178] sm:$0xff] %v2636
        %2669 = vst [vmem:[#allocation5 + $0x1c0] sm:$0xff] %v2637
        %2670 = vst [vmem:[#allocation5 + $0x208] sm:$0xff] %v2638
        %2671 = vst [vmem:[#allocation5 + $0x250] sm:$0xff] %v2639
        %2672 = vst [vmem:[#allocation5 + $0x298] sm:$0xff] %v2640
        %2673 = vst [vmem:[#allocation5 + $0x2e0] sm:$0xff] %v2641
        %2674 = vst [vmem:[#allocation5 + $0x328] sm:$0xff] %v2642
        %2675 = vst [vmem:[#allocation5 + $0x370] sm:$0xff] %v2643
        %2676 = vst [vmem:[#allocation5 + $0x3b8] sm:$0xff] %v2644
        %2677 = vst [vmem:[#allocation5 + $0x400] sm:$0xff] %v2645
        %2678 = vst [vmem:[#allocation5 + $0x448] sm:$0xff] %v2646
        %2679 = vst [vmem:[#allocation5 + $0x490] sm:$0xff] %v2647
        %2680 = vst [vmem:[#allocation5 + $0x4d8] sm:$0xff] %v2648
        %2681 = vst [vmem:[#allocation5 + $0x520] sm:$0xff] %v2649
        %2682 = vst [vmem:[#allocation5 + $0x568] sm:$0xff] %v2650
        %2683 = vst [vmem:[#allocation5 + $0x5b0] sm:$0xff] %v2651
        %2684 = vst [vmem:[#allocation5 + $0x5f8] sm:$0xff] %v2652
        %2685 = vst [vmem:[#allocation5 + $0x640] sm:$0xff] %v2653
        %2686 = vst [vmem:[#allocation5 + $0x688] sm:$0xff] %v2654
        %2687 = vst [vmem:[#allocation5 + $0x6d0] sm:$0xff] %v2655
        %2688 = vst [vmem:[#allocation5 + $0x718] sm:$0xff] %v2656
        %2689 = vst [vmem:[#allocation5 + $0x760] sm:$0xff] %v2657
        %2690 = vst [vmem:[#allocation5 + $0x7a8] sm:$0xff] %v2658
        %2691 = vst [vmem:[#allocation5 + $0x7f0] sm:$0xff] %v2659
        %2692 = vst [vmem:[#allocation5 + $0x838] sm:$0xff] %v2660
        %2693 = vst [vmem:[#allocation5 + $0x880] sm:$0xff] %v2661
        %2694 = vst [vmem:[#allocation5 + $0x8c8] sm:$0xff] %v2662
        %v2695 = vld [vmem:[%s2393] sm:$0xff]
        %v2696 = vld [vmem:[%s2393 + $0x8] sm:$0xff]
        %v2697 = vld [vmem:[%s2393 + $0x18] sm:$0xff]
        %v2698 = vld [vmem:[%s2393 + $0x20] sm:$0xff]
        %v2699 = vld [vmem:[%s2393 + $0x30] sm:$0xff]
        %v2700 = vld [vmem:[%s2393 + $0x38] sm:$0xff]
        %v2701 = vld [vmem:[%s2393 + $0x48] sm:$0xff]
        %v2702 = vld [vmem:[%s2393 + $0x50] sm:$0xff]
        %v2703 = vld [vmem:[%s2393 + $0x60] sm:$0xff]
        %v2704 = vld [vmem:[%s2393 + $0x68] sm:$0xff]
        %v2705 = vld [vmem:[%s2393 + $0x78] sm:$0xff]
        %v2706 = vld [vmem:[%s2393 + $0x80] sm:$0xff]
        %v2707 = vld [vmem:[%s2393 + $0x90] sm:$0xff]
        %v2708 = vld [vmem:[%s2393 + $0x98] sm:$0xff]
        %v2709 = vld [vmem:[%s2393 + $0xa8] sm:$0xff]
        %v2710 = vld [vmem:[%s2393 + $0xb0] sm:$0xff]
        %v2711 = vld [vmem:[%s2393 + $0xc0] sm:$0xff]
        %v2712 = vld [vmem:[%s2393 + $0xc8] sm:$0xff]
        %v2713 = vld [vmem:[%s2393 + $0xd8] sm:$0xff]
        %v2714 = vld [vmem:[%s2393 + $0xe0] sm:$0xff]
        %v2715 = vld [vmem:[%s2393 + $0xf0] sm:$0xff]
        %v2716 = vld [vmem:[%s2393 + $0xf8] sm:$0xff]
        %v2717 = vld [vmem:[%s2393 + $0x108] sm:$0xff]
        %v2718 = vld [vmem:[%s2393 + $0x110] sm:$0xff]
        %v2719 = vld [vmem:[%s2393 + $0x120] sm:$0xff]
        %v2720 = vld [vmem:[%s2393 + $0x128] sm:$0xff]
        %v2721 = vld [vmem:[%s2393 + $0x138] sm:$0xff]
        %v2722 = vld [vmem:[%s2393 + $0x140] sm:$0xff]
        %v2723 = vld [vmem:[%s2393 + $0x150] sm:$0xff]
        %v2724 = vld [vmem:[%s2393 + $0x158] sm:$0xff]
        %v2725 = vld [vmem:[%s2393 + $0x168] sm:$0xff]
        %v2726 = vld [vmem:[%s2393 + $0x170] sm:$0xff]
        %2727 = vst [vmem:[#allocation5 + $0x18] sm:$0xff] %v2695
        %2728 = vst [vmem:[#allocation5 + $0x60] sm:$0xff] %v2696
        %2729 = vst [vmem:[#allocation5 + $0xa8] sm:$0xff] %v2697
        %2730 = vst [vmem:[#allocation5 + $0xf0] sm:$0xff] %v2698
        %2731 = vst [vmem:[#allocation5 + $0x138] sm:$0xff] %v2699
        %2732 = vst [vmem:[#allocation5 + $0x180] sm:$0xff] %v2700
        %2733 = vst [vmem:[#allocation5 + $0x1c8] sm:$0xff] %v2701
        %2734 = vst [vmem:[#allocation5 + $0x210] sm:$0xff] %v2702
        %2735 = vst [vmem:[#allocation5 + $0x258] sm:$0xff] %v2703
        %2736 = vst [vmem:[#allocation5 + $0x2a0] sm:$0xff] %v2704
        %2737 = vst [vmem:[#allocation5 + $0x2e8] sm:$0xff] %v2705
        %2738 = vst [vmem:[#allocation5 + $0x330] sm:$0xff] %v2706
        %2739 = vst [vmem:[#allocation5 + $0x378] sm:$0xff] %v2707
        %2740 = vst [vmem:[#allocation5 + $0x3c0] sm:$0xff] %v2708
        %2741 = vst [vmem:[#allocation5 + $0x408] sm:$0xff] %v2709
        %2742 = vst [vmem:[#allocation5 + $0x450] sm:$0xff] %v2710
        %2743 = vst [vmem:[#allocation5 + $0x498] sm:$0xff] %v2711
        %2744 = vst [vmem:[#allocation5 + $0x4e0] sm:$0xff] %v2712
        %2745 = vst [vmem:[#allocation5 + $0x528] sm:$0xff] %v2713
        %2746 = vst [vmem:[#allocation5 + $0x570] sm:$0xff] %v2714
        %2747 = vst [vmem:[#allocation5 + $0x5b8] sm:$0xff] %v2715
        %2748 = vst [vmem:[#allocation5 + $0x600] sm:$0xff] %v2716
        %2749 = vst [vmem:[#allocation5 + $0x648] sm:$0xff] %v2717
        %2750 = vst [vmem:[#allocation5 + $0x690] sm:$0xff] %v2718
        %2751 = vst [vmem:[#allocation5 + $0x6d8] sm:$0xff] %v2719
        %2752 = vst [vmem:[#allocation5 + $0x720] sm:$0xff] %v2720
        %2753 = vst [vmem:[#allocation5 + $0x768] sm:$0xff] %v2721
        %2754 = vst [vmem:[#allocation5 + $0x7b0] sm:$0xff] %v2722
        %2755 = vst [vmem:[#allocation5 + $0x7f8] sm:$0xff] %v2723
        %2756 = vst [vmem:[#allocation5 + $0x840] sm:$0xff] %v2724
        %2757 = vst [vmem:[#allocation5 + $0x888] sm:$0xff] %v2725
        %2758 = vst [vmem:[#allocation5 + $0x8d0] sm:$0xff] %v2726
        %v2759 = vld [vmem:[%s2393 + $0x1] sm:$0xff]
        %v2760 = vld [vmem:[%s2393 + $0x9] sm:$0xff]
        %v2761 = vld [vmem:[%s2393 + $0x19] sm:$0xff]
        %v2762 = vld [vmem:[%s2393 + $0x21] sm:$0xff]
        %v2763 = vld [vmem:[%s2393 + $0x31] sm:$0xff]
        %v2764 = vld [vmem:[%s2393 + $0x39] sm:$0xff]
        %v2765 = vld [vmem:[%s2393 + $0x49] sm:$0xff]
        %v2766 = vld [vmem:[%s2393 + $0x51] sm:$0xff]
        %v2767 = vld [vmem:[%s2393 + $0x61] sm:$0xff]
        %v2768 = vld [vmem:[%s2393 + $0x69] sm:$0xff]
        %v2769 = vld [vmem:[%s2393 + $0x79] sm:$0xff]
        %v2770 = vld [vmem:[%s2393 + $0x81] sm:$0xff]
        %v2771 = vld [vmem:[%s2393 + $0x91] sm:$0xff]
        %v2772 = vld [vmem:[%s2393 + $0x99] sm:$0xff]
        %v2773 = vld [vmem:[%s2393 + $0xa9] sm:$0xff]
        %v2774 = vld [vmem:[%s2393 + $0xb1] sm:$0xff]
        %v2775 = vld [vmem:[%s2393 + $0xc1] sm:$0xff]
        %v2776 = vld [vmem:[%s2393 + $0xc9] sm:$0xff]
        %v2777 = vld [vmem:[%s2393 + $0xd9] sm:$0xff]
        %v2778 = vld [vmem:[%s2393 + $0xe1] sm:$0xff]
        %v2779 = vld [vmem:[%s2393 + $0xf1] sm:$0xff]
        %v2780 = vld [vmem:[%s2393 + $0xf9] sm:$0xff]
        %v2781 = vld [vmem:[%s2393 + $0x109] sm:$0xff]
        %v2782 = vld [vmem:[%s2393 + $0x111] sm:$0xff]
        %v2783 = vld [vmem:[%s2393 + $0x121] sm:$0xff]
        %v2784 = vld [vmem:[%s2393 + $0x129] sm:$0xff]
        %v2785 = vld [vmem:[%s2393 + $0x139] sm:$0xff]
        %v2786 = vld [vmem:[%s2393 + $0x141] sm:$0xff]
        %v2787 = vld [vmem:[%s2393 + $0x151] sm:$0xff]
        %v2788 = vld [vmem:[%s2393 + $0x159] sm:$0xff]
        %v2789 = vld [vmem:[%s2393 + $0x169] sm:$0xff]
        %v2790 = vld [vmem:[%s2393 + $0x171] sm:$0xff]
        %2791 = vst [vmem:[#allocation5 + $0x20] sm:$0xff] %v2759
        %2792 = vst [vmem:[#allocation5 + $0x68] sm:$0xff] %v2760
        %2793 = vst [vmem:[#allocation5 + $0xb0] sm:$0xff] %v2761
        %2794 = vst [vmem:[#allocation5 + $0xf8] sm:$0xff] %v2762
        %2795 = vst [vmem:[#allocation5 + $0x140] sm:$0xff] %v2763
        %2796 = vst [vmem:[#allocation5 + $0x188] sm:$0xff] %v2764
        %2797 = vst [vmem:[#allocation5 + $0x1d0] sm:$0xff] %v2765
        %2798 = vst [vmem:[#allocation5 + $0x218] sm:$0xff] %v2766
        %2799 = vst [vmem:[#allocation5 + $0x260] sm:$0xff] %v2767
        %2800 = vst [vmem:[#allocation5 + $0x2a8] sm:$0xff] %v2768
        %2801 = vst [vmem:[#allocation5 + $0x2f0] sm:$0xff] %v2769
        %2802 = vst [vmem:[#allocation5 + $0x338] sm:$0xff] %v2770
        %2803 = vst [vmem:[#allocation5 + $0x380] sm:$0xff] %v2771
        %2804 = vst [vmem:[#allocation5 + $0x3c8] sm:$0xff] %v2772
        %2805 = vst [vmem:[#allocation5 + $0x410] sm:$0xff] %v2773
        %2806 = vst [vmem:[#allocation5 + $0x458] sm:$0xff] %v2774
        %2807 = vst [vmem:[#allocation5 + $0x4a0] sm:$0xff] %v2775
        %2808 = vst [vmem:[#allocation5 + $0x4e8] sm:$0xff] %v2776
        %2809 = vst [vmem:[#allocation5 + $0x530] sm:$0xff] %v2777
        %2810 = vst [vmem:[#allocation5 + $0x578] sm:$0xff] %v2778
        %2811 = vst [vmem:[#allocation5 + $0x5c0] sm:$0xff] %v2779
        %2812 = vst [vmem:[#allocation5 + $0x608] sm:$0xff] %v2780
        %2813 = vst [vmem:[#allocation5 + $0x650] sm:$0xff] %v2781
        %2814 = vst [vmem:[#allocation5 + $0x698] sm:$0xff] %v2782
        %2815 = vst [vmem:[#allocation5 + $0x6e0] sm:$0xff] %v2783
        %2816 = vst [vmem:[#allocation5 + $0x728] sm:$0xff] %v2784
        %2817 = vst [vmem:[#allocation5 + $0x770] sm:$0xff] %v2785
        %2818 = vst [vmem:[#allocation5 + $0x7b8] sm:$0xff] %v2786
        %2819 = vst [vmem:[#allocation5 + $0x800] sm:$0xff] %v2787
        %2820 = vst [vmem:[#allocation5 + $0x848] sm:$0xff] %v2788
        %2821 = vst [vmem:[#allocation5 + $0x890] sm:$0xff] %v2789
        %2822 = vst [vmem:[#allocation5 + $0x8d8] sm:$0xff] %v2790
        %v2823 = vld [vmem:[%s2393 + $0x2] sm:$0xff]
        %v2824 = vld [vmem:[%s2393 + $0xa] sm:$0xff]
        %v2825 = vld [vmem:[%s2393 + $0x1a] sm:$0xff]
        %v2826 = vld [vmem:[%s2393 + $0x22] sm:$0xff]
        %v2827 = vld [vmem:[%s2393 + $0x32] sm:$0xff]
        %v2828 = vld [vmem:[%s2393 + $0x3a] sm:$0xff]
        %v2829 = vld [vmem:[%s2393 + $0x4a] sm:$0xff]
        %v2830 = vld [vmem:[%s2393 + $0x52] sm:$0xff]
        %v2831 = vld [vmem:[%s2393 + $0x62] sm:$0xff]
        %v2832 = vld [vmem:[%s2393 + $0x6a] sm:$0xff]
        %v2833 = vld [vmem:[%s2393 + $0x7a] sm:$0xff]
        %v2834 = vld [vmem:[%s2393 + $0x82] sm:$0xff]
        %v2835 = vld [vmem:[%s2393 + $0x92] sm:$0xff]
        %v2836 = vld [vmem:[%s2393 + $0x9a] sm:$0xff]
        %v2837 = vld [vmem:[%s2393 + $0xaa] sm:$0xff]
        %v2838 = vld [vmem:[%s2393 + $0xb2] sm:$0xff]
        %v2839 = vld [vmem:[%s2393 + $0xc2] sm:$0xff]
        %v2840 = vld [vmem:[%s2393 + $0xca] sm:$0xff]
        %v2841 = vld [vmem:[%s2393 + $0xda] sm:$0xff]
        %v2842 = vld [vmem:[%s2393 + $0xe2] sm:$0xff]
        %v2843 = vld [vmem:[%s2393 + $0xf2] sm:$0xff]
        %v2844 = vld [vmem:[%s2393 + $0xfa] sm:$0xff]
        %v2845 = vld [vmem:[%s2393 + $0x10a] sm:$0xff]
        %v2846 = vld [vmem:[%s2393 + $0x112] sm:$0xff]
        %v2847 = vld [vmem:[%s2393 + $0x122] sm:$0xff]
        %v2848 = vld [vmem:[%s2393 + $0x12a] sm:$0xff]
        %v2849 = vld [vmem:[%s2393 + $0x13a] sm:$0xff]
        %v2850 = vld [vmem:[%s2393 + $0x142] sm:$0xff]
        %v2851 = vld [vmem:[%s2393 + $0x152] sm:$0xff]
        %v2852 = vld [vmem:[%s2393 + $0x15a] sm:$0xff]
        %v2853 = vld [vmem:[%s2393 + $0x16a] sm:$0xff]
        %v2854 = vld [vmem:[%s2393 + $0x172] sm:$0xff]
        %2855 = vst [vmem:[#allocation5 + $0x28] sm:$0xff] %v2823
        %2856 = vst [vmem:[#allocation5 + $0x70] sm:$0xff] %v2824
        %2857 = vst [vmem:[#allocation5 + $0xb8] sm:$0xff] %v2825
        %2858 = vst [vmem:[#allocation5 + $0x100] sm:$0xff] %v2826
        %2859 = vst [vmem:[#allocation5 + $0x148] sm:$0xff] %v2827
        %2860 = vst [vmem:[#allocation5 + $0x190] sm:$0xff] %v2828
        %2861 = vst [vmem:[#allocation5 + $0x1d8] sm:$0xff] %v2829
        %2862 = vst [vmem:[#allocation5 + $0x220] sm:$0xff] %v2830
        %2863 = vst [vmem:[#allocation5 + $0x268] sm:$0xff] %v2831
        %2864 = vst [vmem:[#allocation5 + $0x2b0] sm:$0xff] %v2832
        %2865 = vst [vmem:[#allocation5 + $0x2f8] sm:$0xff] %v2833
        %2866 = vst [vmem:[#allocation5 + $0x340] sm:$0xff] %v2834
        %2867 = vst [vmem:[#allocation5 + $0x388] sm:$0xff] %v2835
        %2868 = vst [vmem:[#allocation5 + $0x3d0] sm:$0xff] %v2836
        %2869 = vst [vmem:[#allocation5 + $0x418] sm:$0xff] %v2837
        %2870 = vst [vmem:[#allocation5 + $0x460] sm:$0xff] %v2838
        %2871 = vst [vmem:[#allocation5 + $0x4a8] sm:$0xff] %v2839
        %2872 = vst [vmem:[#allocation5 + $0x4f0] sm:$0xff] %v2840
        %2873 = vst [vmem:[#allocation5 + $0x538] sm:$0xff] %v2841
        %2874 = vst [vmem:[#allocation5 + $0x580] sm:$0xff] %v2842
        %2875 = vst [vmem:[#allocation5 + $0x5c8] sm:$0xff] %v2843
        %2876 = vst [vmem:[#allocation5 + $0x610] sm:$0xff] %v2844
        %2877 = vst [vmem:[#allocation5 + $0x658] sm:$0xff] %v2845
        %2878 = vst [vmem:[#allocation5 + $0x6a0] sm:$0xff] %v2846
        %2879 = vst [vmem:[#allocation5 + $0x6e8] sm:$0xff] %v2847
        %2880 = vst [vmem:[#allocation5 + $0x730] sm:$0xff] %v2848
        %2881 = vst [vmem:[#allocation5 + $0x778] sm:$0xff] %v2849
        %2882 = vst [vmem:[#allocation5 + $0x7c0] sm:$0xff] %v2850
        %2883 = vst [vmem:[#allocation5 + $0x808] sm:$0xff] %v2851
        %2884 = vst [vmem:[#allocation5 + $0x850] sm:$0xff] %v2852
        %2885 = vst [vmem:[#allocation5 + $0x898] sm:$0xff] %v2853
        %2886 = vst [vmem:[#allocation5 + $0x8e0] sm:$0xff] %v2854
        %s2887 = scalar_lea.vmem [#allocation3], 48
        %v2888 = vld [vmem:[%s2887] sm:$0xff]
        %v2889 = vld [vmem:[%s2887 + $0x8] sm:$0xff]
        %v2890 = vld [vmem:[%s2887 + $0x18] sm:$0xff]
        %v2891 = vld [vmem:[%s2887 + $0x20] sm:$0xff]
        %v2892 = vld [vmem:[%s2887 + $0x30] sm:$0xff]
        %v2893 = vld [vmem:[%s2887 + $0x38] sm:$0xff]
        %v2894 = vld [vmem:[%s2887 + $0x48] sm:$0xff]
        %v2895 = vld [vmem:[%s2887 + $0x50] sm:$0xff]
        %v2896 = vld [vmem:[%s2887 + $0x60] sm:$0xff]
        %v2897 = vld [vmem:[%s2887 + $0x68] sm:$0xff]
        %v2898 = vld [vmem:[%s2887 + $0x78] sm:$0xff]
        %v2899 = vld [vmem:[%s2887 + $0x80] sm:$0xff]
        %v2900 = vld [vmem:[%s2887 + $0x90] sm:$0xff]
        %v2901 = vld [vmem:[%s2887 + $0x98] sm:$0xff]
        %v2902 = vld [vmem:[%s2887 + $0xa8] sm:$0xff]
        %v2903 = vld [vmem:[%s2887 + $0xb0] sm:$0xff]
        %v2904 = vld [vmem:[%s2887 + $0xc0] sm:$0xff]
        %v2905 = vld [vmem:[%s2887 + $0xc8] sm:$0xff]
        %v2906 = vld [vmem:[%s2887 + $0xd8] sm:$0xff]
        %v2907 = vld [vmem:[%s2887 + $0xe0] sm:$0xff]
        %v2908 = vld [vmem:[%s2887 + $0xf0] sm:$0xff]
        %v2909 = vld [vmem:[%s2887 + $0xf8] sm:$0xff]
        %v2910 = vld [vmem:[%s2887 + $0x108] sm:$0xff]
        %v2911 = vld [vmem:[%s2887 + $0x110] sm:$0xff]
        %v2912 = vld [vmem:[%s2887 + $0x120] sm:$0xff]
        %v2913 = vld [vmem:[%s2887 + $0x128] sm:$0xff]
        %v2914 = vld [vmem:[%s2887 + $0x138] sm:$0xff]
        %v2915 = vld [vmem:[%s2887 + $0x140] sm:$0xff]
        %v2916 = vld [vmem:[%s2887 + $0x150] sm:$0xff]
        %v2917 = vld [vmem:[%s2887 + $0x158] sm:$0xff]
        %v2918 = vld [vmem:[%s2887 + $0x168] sm:$0xff]
        %v2919 = vld [vmem:[%s2887 + $0x170] sm:$0xff]
        %2920 = vst [vmem:[#allocation5 + $0x30] sm:$0xff] %v2888
        %2921 = vst [vmem:[#allocation5 + $0x78] sm:$0xff] %v2889
        %2922 = vst [vmem:[#allocation5 + $0xc0] sm:$0xff] %v2890
        %2923 = vst [vmem:[#allocation5 + $0x108] sm:$0xff] %v2891
        %2924 = vst [vmem:[#allocation5 + $0x150] sm:$0xff] %v2892
        %2925 = vst [vmem:[#allocation5 + $0x198] sm:$0xff] %v2893
        %2926 = vst [vmem:[#allocation5 + $0x1e0] sm:$0xff] %v2894
        %2927 = vst [vmem:[#allocation5 + $0x228] sm:$0xff] %v2895
        %2928 = vst [vmem:[#allocation5 + $0x270] sm:$0xff] %v2896
        %2929 = vst [vmem:[#allocation5 + $0x2b8] sm:$0xff] %v2897
        %2930 = vst [vmem:[#allocation5 + $0x300] sm:$0xff] %v2898
        %2931 = vst [vmem:[#allocation5 + $0x348] sm:$0xff] %v2899
        %2932 = vst [vmem:[#allocation5 + $0x390] sm:$0xff] %v2900
        %2933 = vst [vmem:[#allocation5 + $0x3d8] sm:$0xff] %v2901
        %2934 = vst [vmem:[#allocation5 + $0x420] sm:$0xff] %v2902
        %2935 = vst [vmem:[#allocation5 + $0x468] sm:$0xff] %v2903
        %2936 = vst [vmem:[#allocation5 + $0x4b0] sm:$0xff] %v2904
        %2937 = vst [vmem:[#allocation5 + $0x4f8] sm:$0xff] %v2905
        %2938 = vst [vmem:[#allocation5 + $0x540] sm:$0xff] %v2906
        %2939 = vst [vmem:[#allocation5 + $0x588] sm:$0xff] %v2907
        %2940 = vst [vmem:[#allocation5 + $0x5d0] sm:$0xff] %v2908
        %2941 = vst [vmem:[#allocation5 + $0x618] sm:$0xff] %v2909
        %2942 = vst [vmem:[#allocation5 + $0x660] sm:$0xff] %v2910
        %2943 = vst [vmem:[#allocation5 + $0x6a8] sm:$0xff] %v2911
        %2944 = vst [vmem:[#allocation5 + $0x6f0] sm:$0xff] %v2912
        %2945 = vst [vmem:[#allocation5 + $0x738] sm:$0xff] %v2913
        %2946 = vst [vmem:[#allocation5 + $0x780] sm:$0xff] %v2914
        %2947 = vst [vmem:[#allocation5 + $0x7c8] sm:$0xff] %v2915
        %2948 = vst [vmem:[#allocation5 + $0x810] sm:$0xff] %v2916
        %2949 = vst [vmem:[#allocation5 + $0x858] sm:$0xff] %v2917
        %2950 = vst [vmem:[#allocation5 + $0x8a0] sm:$0xff] %v2918
        %2951 = vst [vmem:[#allocation5 + $0x8e8] sm:$0xff] %v2919
        %v2952 = vld [vmem:[%s2887 + $0x1] sm:$0xff]
        %v2953 = vld [vmem:[%s2887 + $0x9] sm:$0xff]
        %v2954 = vld [vmem:[%s2887 + $0x19] sm:$0xff]
        %v2955 = vld [vmem:[%s2887 + $0x21] sm:$0xff]
        %v2956 = vld [vmem:[%s2887 + $0x31] sm:$0xff]
        %v2957 = vld [vmem:[%s2887 + $0x39] sm:$0xff]
        %v2958 = vld [vmem:[%s2887 + $0x49] sm:$0xff]
        %v2959 = vld [vmem:[%s2887 + $0x51] sm:$0xff]
        %v2960 = vld [vmem:[%s2887 + $0x61] sm:$0xff]
        %v2961 = vld [vmem:[%s2887 + $0x69] sm:$0xff]
        %v2962 = vld [vmem:[%s2887 + $0x79] sm:$0xff]
        %v2963 = vld [vmem:[%s2887 + $0x81] sm:$0xff]
        %v2964 = vld [vmem:[%s2887 + $0x91] sm:$0xff]
        %v2965 = vld [vmem:[%s2887 + $0x99] sm:$0xff]
        %v2966 = vld [vmem:[%s2887 + $0xa9] sm:$0xff]
        %v2967 = vld [vmem:[%s2887 + $0xb1] sm:$0xff]
        %v2968 = vld [vmem:[%s2887 + $0xc1] sm:$0xff]
        %v2969 = vld [vmem:[%s2887 + $0xc9] sm:$0xff]
        %v2970 = vld [vmem:[%s2887 + $0xd9] sm:$0xff]
        %v2971 = vld [vmem:[%s2887 + $0xe1] sm:$0xff]
        %v2972 = vld [vmem:[%s2887 + $0xf1] sm:$0xff]
        %v2973 = vld [vmem:[%s2887 + $0xf9] sm:$0xff]
        %v2974 = vld [vmem:[%s2887 + $0x109] sm:$0xff]
        %v2975 = vld [vmem:[%s2887 + $0x111] sm:$0xff]
        %v2976 = vld [vmem:[%s2887 + $0x121] sm:$0xff]
        %v2977 = vld [vmem:[%s2887 + $0x129] sm:$0xff]
        %v2978 = vld [vmem:[%s2887 + $0x139] sm:$0xff]
        %v2979 = vld [vmem:[%s2887 + $0x141] sm:$0xff]
        %v2980 = vld [vmem:[%s2887 + $0x151] sm:$0xff]
        %v2981 = vld [vmem:[%s2887 + $0x159] sm:$0xff]
        %v2982 = vld [vmem:[%s2887 + $0x169] sm:$0xff]
        %v2983 = vld [vmem:[%s2887 + $0x171] sm:$0xff]
        %2984 = vst [vmem:[#allocation5 + $0x38] sm:$0xff] %v2952
        %2985 = vst [vmem:[#allocation5 + $0x80] sm:$0xff] %v2953
        %2986 = vst [vmem:[#allocation5 + $0xc8] sm:$0xff] %v2954
        %2987 = vst [vmem:[#allocation5 + $0x110] sm:$0xff] %v2955
        %2988 = vst [vmem:[#allocation5 + $0x158] sm:$0xff] %v2956
        %2989 = vst [vmem:[#allocation5 + $0x1a0] sm:$0xff] %v2957
        %2990 = vst [vmem:[#allocation5 + $0x1e8] sm:$0xff] %v2958
        %2991 = vst [vmem:[#allocation5 + $0x230] sm:$0xff] %v2959
        %2992 = vst [vmem:[#allocation5 + $0x278] sm:$0xff] %v2960
        %2993 = vst [vmem:[#allocation5 + $0x2c0] sm:$0xff] %v2961
        %2994 = vst [vmem:[#allocation5 + $0x308] sm:$0xff] %v2962
        %2995 = vst [vmem:[#allocation5 + $0x350] sm:$0xff] %v2963
        %2996 = vst [vmem:[#allocation5 + $0x398] sm:$0xff] %v2964
        %2997 = vst [vmem:[#allocation5 + $0x3e0] sm:$0xff] %v2965
        %2998 = vst [vmem:[#allocation5 + $0x428] sm:$0xff] %v2966
        %2999 = vst [vmem:[#allocation5 + $0x470] sm:$0xff] %v2967
        %3000 = vst [vmem:[#allocation5 + $0x4b8] sm:$0xff] %v2968
        %3001 = vst [vmem:[#allocation5 + $0x500] sm:$0xff] %v2969
        %3002 = vst [vmem:[#allocation5 + $0x548] sm:$0xff] %v2970
        %3003 = vst [vmem:[#allocation5 + $0x590] sm:$0xff] %v2971
        %3004 = vst [vmem:[#allocation5 + $0x5d8] sm:$0xff] %v2972
        %3005 = vst [vmem:[#allocation5 + $0x620] sm:$0xff] %v2973
        %3006 = vst [vmem:[#allocation5 + $0x668] sm:$0xff] %v2974
        %3007 = vst [vmem:[#allocation5 + $0x6b0] sm:$0xff] %v2975
        %3008 = vst [vmem:[#allocation5 + $0x6f8] sm:$0xff] %v2976
        %3009 = vst [vmem:[#allocation5 + $0x740] sm:$0xff] %v2977
        %3010 = vst [vmem:[#allocation5 + $0x788] sm:$0xff] %v2978
        %3011 = vst [vmem:[#allocation5 + $0x7d0] sm:$0xff] %v2979
        %3012 = vst [vmem:[#allocation5 + $0x818] sm:$0xff] %v2980
        %3013 = vst [vmem:[#allocation5 + $0x860] sm:$0xff] %v2981
        %3014 = vst [vmem:[#allocation5 + $0x8a8] sm:$0xff] %v2982
        %3015 = vst [vmem:[#allocation5 + $0x8f0] sm:$0xff] %v2983
        %v3016 = vld [vmem:[%s2887 + $0x2] sm:$0xff]
        %v3017 = vld [vmem:[%s2887 + $0xa] sm:$0xff]
        %v3018 = vld [vmem:[%s2887 + $0x1a] sm:$0xff]
        %v3019 = vld [vmem:[%s2887 + $0x22] sm:$0xff]
        %v3020 = vld [vmem:[%s2887 + $0x32] sm:$0xff]
        %v3021 = vld [vmem:[%s2887 + $0x3a] sm:$0xff]
        %v3022 = vld [vmem:[%s2887 + $0x4a] sm:$0xff]
        %v3023 = vld [vmem:[%s2887 + $0x52] sm:$0xff]
        %v3024 = vld [vmem:[%s2887 + $0x62] sm:$0xff]
        %v3025 = vld [vmem:[%s2887 + $0x6a] sm:$0xff]
        %v3026 = vld [vmem:[%s2887 + $0x7a] sm:$0xff]
        %v3027 = vld [vmem:[%s2887 + $0x82] sm:$0xff]
        %v3028 = vld [vmem:[%s2887 + $0x92] sm:$0xff]
        %v3029 = vld [vmem:[%s2887 + $0x9a] sm:$0xff]
        %v3030 = vld [vmem:[%s2887 + $0xaa] sm:$0xff]
        %v3031 = vld [vmem:[%s2887 + $0xb2] sm:$0xff]
        %v3032 = vld [vmem:[%s2887 + $0xc2] sm:$0xff]
        %v3033 = vld [vmem:[%s2887 + $0xca] sm:$0xff]
        %v3034 = vld [vmem:[%s2887 + $0xda] sm:$0xff]
        %v3035 = vld [vmem:[%s2887 + $0xe2] sm:$0xff]
        %v3036 = vld [vmem:[%s2887 + $0xf2] sm:$0xff]
        %v3037 = vld [vmem:[%s2887 + $0xfa] sm:$0xff]
        %v3038 = vld [vmem:[%s2887 + $0x10a] sm:$0xff]
        %v3039 = vld [vmem:[%s2887 + $0x112] sm:$0xff]
        %v3040 = vld [vmem:[%s2887 + $0x122] sm:$0xff]
        %v3041 = vld [vmem:[%s2887 + $0x12a] sm:$0xff]
        %v3042 = vld [vmem:[%s2887 + $0x13a] sm:$0xff]
        %v3043 = vld [vmem:[%s2887 + $0x142] sm:$0xff]
        %v3044 = vld [vmem:[%s2887 + $0x152] sm:$0xff]
        %v3045 = vld [vmem:[%s2887 + $0x15a] sm:$0xff]
        %v3046 = vld [vmem:[%s2887 + $0x16a] sm:$0xff]
        %v3047 = vld [vmem:[%s2887 + $0x172] sm:$0xff]
        %3048 = vst [vmem:[#allocation5 + $0x40] sm:$0xff] %v3016
        %3049 = vst [vmem:[#allocation5 + $0x88] sm:$0xff] %v3017
        %3050 = vst [vmem:[#allocation5 + $0xd0] sm:$0xff] %v3018
        %3051 = vst [vmem:[#allocation5 + $0x118] sm:$0xff] %v3019
        %3052 = vst [vmem:[#allocation5 + $0x160] sm:$0xff] %v3020
        %3053 = vst [vmem:[#allocation5 + $0x1a8] sm:$0xff] %v3021
        %3054 = vst [vmem:[#allocation5 + $0x1f0] sm:$0xff] %v3022
        %3055 = vst [vmem:[#allocation5 + $0x238] sm:$0xff] %v3023
        %3056 = vst [vmem:[#allocation5 + $0x280] sm:$0xff] %v3024
        %3057 = vst [vmem:[#allocation5 + $0x2c8] sm:$0xff] %v3025
        %3058 = vst [vmem:[#allocation5 + $0x310] sm:$0xff] %v3026
        %3059 = vst [vmem:[#allocation5 + $0x358] sm:$0xff] %v3027
        %3060 = vst [vmem:[#allocation5 + $0x3a0] sm:$0xff] %v3028
        %3061 = vst [vmem:[#allocation5 + $0x3e8] sm:$0xff] %v3029
        %3062 = vst [vmem:[#allocation5 + $0x430] sm:$0xff] %v3030
        %3063 = vst [vmem:[#allocation5 + $0x478] sm:$0xff] %v3031
        %3064 = vst [vmem:[#allocation5 + $0x4c0] sm:$0xff] %v3032
        %3065 = vst [vmem:[#allocation5 + $0x508] sm:$0xff] %v3033
        %3066 = vst [vmem:[#allocation5 + $0x550] sm:$0xff] %v3034
        %3067 = vst [vmem:[#allocation5 + $0x598] sm:$0xff] %v3035
        %3068 = vst [vmem:[#allocation5 + $0x5e0] sm:$0xff] %v3036
        %3069 = vst [vmem:[#allocation5 + $0x628] sm:$0xff] %v3037
        %3070 = vst [vmem:[#allocation5 + $0x670] sm:$0xff] %v3038
        %3071 = vst [vmem:[#allocation5 + $0x6b8] sm:$0xff] %v3039
        %3072 = vst [vmem:[#allocation5 + $0x700] sm:$0xff] %v3040
        %3073 = vst [vmem:[#allocation5 + $0x748] sm:$0xff] %v3041
        %3074 = vst [vmem:[#allocation5 + $0x790] sm:$0xff] %v3042
        %3075 = vst [vmem:[#allocation5 + $0x7d8] sm:$0xff] %v3043
        %3076 = vst [vmem:[#allocation5 + $0x820] sm:$0xff] %v3044
        %3077 = vst [vmem:[#allocation5 + $0x868] sm:$0xff] %v3045
        %3078 = vst [vmem:[#allocation5 + $0x8b0] sm:$0xff] %v3046
        %3079 = vst [vmem:[#allocation5 + $0x8f8] sm:$0xff] %v3047
        %v3080 = vld [vmem:[#allocation5] sm:$0xff]
        %v3081 = vld [vmem:[#allocation5 + $0x8] sm:$0xff]
        %v3082 = vld [vmem:[#allocation5 + $0x10] sm:$0xff]
        %v3083 = vld [vmem:[#allocation5 + $0x18] sm:$0xff]
        %v3084 = vld [vmem:[#allocation5 + $0x20] sm:$0xff]
        %v3085 = vld [vmem:[#allocation5 + $0x28] sm:$0xff]
        %v3086 = vld [vmem:[#allocation5 + $0x30] sm:$0xff]
        %v3087 = vld [vmem:[#allocation5 + $0x38] sm:$0xff]
        %v3088 = vld [vmem:[#allocation5 + $0x40] sm:$0xff]
        %v3089 = vld [vmem:[#allocation5 + $0x48] sm:$0xff]
        %v3090 = vld [vmem:[#allocation5 + $0x50] sm:$0xff]
        %v3091 = vld [vmem:[#allocation5 + $0x58] sm:$0xff]
        %v3092 = vld [vmem:[#allocation5 + $0x60] sm:$0xff]
        %v3093 = vld [vmem:[#allocation5 + $0x68] sm:$0xff]
        %v3094 = vld [vmem:[#allocation5 + $0x70] sm:$0xff]
        %v3095 = vld [vmem:[#allocation5 + $0x78] sm:$0xff]
        %v3096 = vld [vmem:[#allocation5 + $0x80] sm:$0xff]
        %v3097 = vld [vmem:[#allocation5 + $0x88] sm:$0xff]
        %v3098 = vld [vmem:[#allocation5 + $0x90] sm:$0xff]
        %v3099 = vld [vmem:[#allocation5 + $0x98] sm:$0xff]
        %v3100 = vld [vmem:[#allocation5 + $0xa0] sm:$0xff]
        %v3101 = vld [vmem:[#allocation5 + $0xa8] sm:$0xff]
        %v3102 = vld [vmem:[#allocation5 + $0xb0] sm:$0xff]
        %v3103 = vld [vmem:[#allocation5 + $0xb8] sm:$0xff]
        %v3104 = vld [vmem:[#allocation5 + $0xc0] sm:$0xff]
        %v3105 = vld [vmem:[#allocation5 + $0xc8] sm:$0xff]
        %v3106 = vld [vmem:[#allocation5 + $0xd0] sm:$0xff]
        %v3107 = vld [vmem:[#allocation5 + $0xd8] sm:$0xff]
        %v3108 = vld [vmem:[#allocation5 + $0xe0] sm:$0xff]
        %v3109 = vld [vmem:[#allocation5 + $0xe8] sm:$0xff]
        %v3110 = vld [vmem:[#allocation5 + $0xf0] sm:$0xff]
        %v3111 = vld [vmem:[#allocation5 + $0xf8] sm:$0xff]
        %v3112 = vld [vmem:[#allocation5 + $0x100] sm:$0xff]
        %v3113 = vld [vmem:[#allocation5 + $0x108] sm:$0xff]
        %v3114 = vld [vmem:[#allocation5 + $0x110] sm:$0xff]
        %v3115 = vld [vmem:[#allocation5 + $0x118] sm:$0xff]
        %v3116 = vld [vmem:[#allocation5 + $0x120] sm:$0xff]
        %v3117 = vld [vmem:[#allocation5 + $0x128] sm:$0xff]
        %v3118 = vld [vmem:[#allocation5 + $0x130] sm:$0xff]
        %v3119 = vld [vmem:[#allocation5 + $0x138] sm:$0xff]
        %v3120 = vld [vmem:[#allocation5 + $0x140] sm:$0xff]
        %v3121 = vld [vmem:[#allocation5 + $0x148] sm:$0xff]
        %v3122 = vld [vmem:[#allocation5 + $0x150] sm:$0xff]
        %v3123 = vld [vmem:[#allocation5 + $0x158] sm:$0xff]
        %v3124 = vld [vmem:[#allocation5 + $0x160] sm:$0xff]
        %v3125 = vld [vmem:[#allocation5 + $0x168] sm:$0xff]
        %v3126 = vld [vmem:[#allocation5 + $0x170] sm:$0xff]
        %v3127 = vld [vmem:[#allocation5 + $0x178] sm:$0xff]
        %v3128 = vld [vmem:[#allocation5 + $0x180] sm:$0xff]
        %v3129 = vld [vmem:[#allocation5 + $0x188] sm:$0xff]
        %v3130 = vld [vmem:[#allocation5 + $0x190] sm:$0xff]
        %v3131 = vld [vmem:[#allocation5 + $0x198] sm:$0xff]
        %v3132 = vld [vmem:[#allocation5 + $0x1a0] sm:$0xff]
        %v3133 = vld [vmem:[#allocation5 + $0x1a8] sm:$0xff]
        %v3134 = vld [vmem:[#allocation5 + $0x1b0] sm:$0xff]
        %v3135 = vld [vmem:[#allocation5 + $0x1b8] sm:$0xff]
        %v3136 = vld [vmem:[#allocation5 + $0x1c0] sm:$0xff]
        %v3137 = vld [vmem:[#allocation5 + $0x1c8] sm:$0xff]
        %v3138 = vld [vmem:[#allocation5 + $0x1d0] sm:$0xff]
        %v3139 = vld [vmem:[#allocation5 + $0x1d8] sm:$0xff]
        %v3140 = vld [vmem:[#allocation5 + $0x1e0] sm:$0xff]
        %v3141 = vld [vmem:[#allocation5 + $0x1e8] sm:$0xff]
        %v3142 = vld [vmem:[#allocation5 + $0x1f0] sm:$0xff]
        %v3143 = vld [vmem:[#allocation5 + $0x1f8] sm:$0xff]
        %v3144 = vld [vmem:[#allocation5 + $0x200] sm:$0xff]
        %v3145 = vld [vmem:[#allocation5 + $0x208] sm:$0xff]
        %v3146 = vld [vmem:[#allocation5 + $0x210] sm:$0xff]
        %v3147 = vld [vmem:[#allocation5 + $0x218] sm:$0xff]
        %v3148 = vld [vmem:[#allocation5 + $0x220] sm:$0xff]
        %v3149 = vld [vmem:[#allocation5 + $0x228] sm:$0xff]
        %v3150 = vld [vmem:[#allocation5 + $0x230] sm:$0xff]
        %v3151 = vld [vmem:[#allocation5 + $0x238] sm:$0xff]
        %v3152 = vld [vmem:[#allocation5 + $0x240] sm:$0xff]
        %v3153 = vld [vmem:[#allocation5 + $0x248] sm:$0xff]
        %v3154 = vld [vmem:[#allocation5 + $0x250] sm:$0xff]
        %v3155 = vld [vmem:[#allocation5 + $0x258] sm:$0xff]
        %v3156 = vld [vmem:[#allocation5 + $0x260] sm:$0xff]
        %v3157 = vld [vmem:[#allocation5 + $0x268] sm:$0xff]
        %v3158 = vld [vmem:[#allocation5 + $0x270] sm:$0xff]
        %v3159 = vld [vmem:[#allocation5 + $0x278] sm:$0xff]
        %v3160 = vld [vmem:[#allocation5 + $0x280] sm:$0xff]
        %v3161 = vld [vmem:[#allocation5 + $0x288] sm:$0xff]
        %v3162 = vld [vmem:[#allocation5 + $0x290] sm:$0xff]
        %v3163 = vld [vmem:[#allocation5 + $0x298] sm:$0xff]
        %v3164 = vld [vmem:[#allocation5 + $0x2a0] sm:$0xff]
        %v3165 = vld [vmem:[#allocation5 + $0x2a8] sm:$0xff]
        %v3166 = vld [vmem:[#allocation5 + $0x2b0] sm:$0xff]
        %v3167 = vld [vmem:[#allocation5 + $0x2b8] sm:$0xff]
        %v3168 = vld [vmem:[#allocation5 + $0x2c0] sm:$0xff]
        %v3169 = vld [vmem:[#allocation5 + $0x2c8] sm:$0xff]
        %v3170 = vld [vmem:[#allocation5 + $0x2d0] sm:$0xff]
        %v3171 = vld [vmem:[#allocation5 + $0x2d8] sm:$0xff]
        %v3172 = vld [vmem:[#allocation5 + $0x2e0] sm:$0xff]
        %v3173 = vld [vmem:[#allocation5 + $0x2e8] sm:$0xff]
        %v3174 = vld [vmem:[#allocation5 + $0x2f0] sm:$0xff]
        %v3175 = vld [vmem:[#allocation5 + $0x2f8] sm:$0xff]
        %v3176 = vld [vmem:[#allocation5 + $0x300] sm:$0xff]
        %v3177 = vld [vmem:[#allocation5 + $0x308] sm:$0xff]
        %v3178 = vld [vmem:[#allocation5 + $0x310] sm:$0xff]
        %v3179 = vld [vmem:[#allocation5 + $0x318] sm:$0xff]
        %v3180 = vld [vmem:[#allocation5 + $0x320] sm:$0xff]
        %v3181 = vld [vmem:[#allocation5 + $0x328] sm:$0xff]
        %v3182 = vld [vmem:[#allocation5 + $0x330] sm:$0xff]
        %v3183 = vld [vmem:[#allocation5 + $0x338] sm:$0xff]
        %v3184 = vld [vmem:[#allocation5 + $0x340] sm:$0xff]
        %v3185 = vld [vmem:[#allocation5 + $0x348] sm:$0xff]
        %v3186 = vld [vmem:[#allocation5 + $0x350] sm:$0xff]
        %v3187 = vld [vmem:[#allocation5 + $0x358] sm:$0xff]
        %v3188 = vld [vmem:[#allocation5 + $0x360] sm:$0xff]
        %v3189 = vld [vmem:[#allocation5 + $0x368] sm:$0xff]
        %v3190 = vld [vmem:[#allocation5 + $0x370] sm:$0xff]
        %v3191 = vld [vmem:[#allocation5 + $0x378] sm:$0xff]
        %v3192 = vld [vmem:[#allocation5 + $0x380] sm:$0xff]
        %v3193 = vld [vmem:[#allocation5 + $0x388] sm:$0xff]
        %v3194 = vld [vmem:[#allocation5 + $0x390] sm:$0xff]
        %v3195 = vld [vmem:[#allocation5 + $0x398] sm:$0xff]
        %v3196 = vld [vmem:[#allocation5 + $0x3a0] sm:$0xff]
        %v3197 = vld [vmem:[#allocation5 + $0x3a8] sm:$0xff]
        %v3198 = vld [vmem:[#allocation5 + $0x3b0] sm:$0xff]
        %v3199 = vld [vmem:[#allocation5 + $0x3b8] sm:$0xff]
        %v3200 = vld [vmem:[#allocation5 + $0x3c0] sm:$0xff]
        %v3201 = vld [vmem:[#allocation5 + $0x3c8] sm:$0xff]
        %v3202 = vld [vmem:[#allocation5 + $0x3d0] sm:$0xff]
        %v3203 = vld [vmem:[#allocation5 + $0x3d8] sm:$0xff]
        %v3204 = vld [vmem:[#allocation5 + $0x3e0] sm:$0xff]
        %v3205 = vld [vmem:[#allocation5 + $0x3e8] sm:$0xff]
        %v3206 = vld [vmem:[#allocation5 + $0x3f0] sm:$0xff]
        %v3207 = vld [vmem:[#allocation5 + $0x3f8] sm:$0xff]
        %v3208 = vld [vmem:[#allocation5 + $0x400] sm:$0xff]
        %v3209 = vld [vmem:[#allocation5 + $0x408] sm:$0xff]
        %v3210 = vld [vmem:[#allocation5 + $0x410] sm:$0xff]
        %v3211 = vld [vmem:[#allocation5 + $0x418] sm:$0xff]
        %v3212 = vld [vmem:[#allocation5 + $0x420] sm:$0xff]
        %v3213 = vld [vmem:[#allocation5 + $0x428] sm:$0xff]
        %v3214 = vld [vmem:[#allocation5 + $0x430] sm:$0xff]
        %v3215 = vld [vmem:[#allocation5 + $0x438] sm:$0xff]
        %v3216 = vld [vmem:[#allocation5 + $0x440] sm:$0xff]
        %v3217 = vld [vmem:[#allocation5 + $0x448] sm:$0xff]
        %v3218 = vld [vmem:[#allocation5 + $0x450] sm:$0xff]
        %v3219 = vld [vmem:[#allocation5 + $0x458] sm:$0xff]
        %v3220 = vld [vmem:[#allocation5 + $0x460] sm:$0xff]
        %v3221 = vld [vmem:[#allocation5 + $0x468] sm:$0xff]
        %v3222 = vld [vmem:[#allocation5 + $0x470] sm:$0xff]
        %v3223 = vld [vmem:[#allocation5 + $0x478] sm:$0xff]
        %v3224 = vld [vmem:[#allocation5 + $0x480] sm:$0xff]
        %v3225 = vld [vmem:[#allocation5 + $0x488] sm:$0xff]
        %v3226 = vld [vmem:[#allocation5 + $0x490] sm:$0xff]
        %v3227 = vld [vmem:[#allocation5 + $0x498] sm:$0xff]
        %v3228 = vld [vmem:[#allocation5 + $0x4a0] sm:$0xff]
        %v3229 = vld [vmem:[#allocation5 + $0x4a8] sm:$0xff]
        %v3230 = vld [vmem:[#allocation5 + $0x4b0] sm:$0xff]
        %v3231 = vld [vmem:[#allocation5 + $0x4b8] sm:$0xff]
        %v3232 = vld [vmem:[#allocation5 + $0x4c0] sm:$0xff]
        %v3233 = vld [vmem:[#allocation5 + $0x4c8] sm:$0xff]
        %v3234 = vld [vmem:[#allocation5 + $0x4d0] sm:$0xff]
        %v3235 = vld [vmem:[#allocation5 + $0x4d8] sm:$0xff]
        %v3236 = vld [vmem:[#allocation5 + $0x4e0] sm:$0xff]
        %v3237 = vld [vmem:[#allocation5 + $0x4e8] sm:$0xff]
        %v3238 = vld [vmem:[#allocation5 + $0x4f0] sm:$0xff]
        %v3239 = vld [vmem:[#allocation5 + $0x4f8] sm:$0xff]
        %v3240 = vld [vmem:[#allocation5 + $0x500] sm:$0xff]
        %v3241 = vld [vmem:[#allocation5 + $0x508] sm:$0xff]
        %v3242 = vld [vmem:[#allocation5 + $0x510] sm:$0xff]
        %v3243 = vld [vmem:[#allocation5 + $0x518] sm:$0xff]
        %v3244 = vld [vmem:[#allocation5 + $0x520] sm:$0xff]
        %v3245 = vld [vmem:[#allocation5 + $0x528] sm:$0xff]
        %v3246 = vld [vmem:[#allocation5 + $0x530] sm:$0xff]
        %v3247 = vld [vmem:[#allocation5 + $0x538] sm:$0xff]
        %v3248 = vld [vmem:[#allocation5 + $0x540] sm:$0xff]
        %v3249 = vld [vmem:[#allocation5 + $0x548] sm:$0xff]
        %v3250 = vld [vmem:[#allocation5 + $0x550] sm:$0xff]
        %v3251 = vld [vmem:[#allocation5 + $0x558] sm:$0xff]
        %v3252 = vld [vmem:[#allocation5 + $0x560] sm:$0xff]
        %v3253 = vld [vmem:[#allocation5 + $0x568] sm:$0xff]
        %v3254 = vld [vmem:[#allocation5 + $0x570] sm:$0xff]
        %v3255 = vld [vmem:[#allocation5 + $0x578] sm:$0xff]
        %v3256 = vld [vmem:[#allocation5 + $0x580] sm:$0xff]
        %v3257 = vld [vmem:[#allocation5 + $0x588] sm:$0xff]
        %v3258 = vld [vmem:[#allocation5 + $0x590] sm:$0xff]
        %v3259 = vld [vmem:[#allocation5 + $0x598] sm:$0xff]
        %v3260 = vld [vmem:[#allocation5 + $0x5a0] sm:$0xff]
        %v3261 = vld [vmem:[#allocation5 + $0x5a8] sm:$0xff]
        %v3262 = vld [vmem:[#allocation5 + $0x5b0] sm:$0xff]
        %v3263 = vld [vmem:[#allocation5 + $0x5b8] sm:$0xff]
        %v3264 = vld [vmem:[#allocation5 + $0x5c0] sm:$0xff]
        %v3265 = vld [vmem:[#allocation5 + $0x5c8] sm:$0xff]
        %v3266 = vld [vmem:[#allocation5 + $0x5d0] sm:$0xff]
        %v3267 = vld [vmem:[#allocation5 + $0x5d8] sm:$0xff]
        %v3268 = vld [vmem:[#allocation5 + $0x5e0] sm:$0xff]
        %v3269 = vld [vmem:[#allocation5 + $0x5e8] sm:$0xff]
        %v3270 = vld [vmem:[#allocation5 + $0x5f0] sm:$0xff]
        %v3271 = vld [vmem:[#allocation5 + $0x5f8] sm:$0xff]
        %v3272 = vld [vmem:[#allocation5 + $0x600] sm:$0xff]
        %v3273 = vld [vmem:[#allocation5 + $0x608] sm:$0xff]
        %v3274 = vld [vmem:[#allocation5 + $0x610] sm:$0xff]
        %v3275 = vld [vmem:[#allocation5 + $0x618] sm:$0xff]
        %v3276 = vld [vmem:[#allocation5 + $0x620] sm:$0xff]
        %v3277 = vld [vmem:[#allocation5 + $0x628] sm:$0xff]
        %v3278 = vld [vmem:[#allocation5 + $0x630] sm:$0xff]
        %v3279 = vld [vmem:[#allocation5 + $0x638] sm:$0xff]
        %v3280 = vld [vmem:[#allocation5 + $0x640] sm:$0xff]
        %v3281 = vld [vmem:[#allocation5 + $0x648] sm:$0xff]
        %v3282 = vld [vmem:[#allocation5 + $0x650] sm:$0xff]
        %v3283 = vld [vmem:[#allocation5 + $0x658] sm:$0xff]
        %v3284 = vld [vmem:[#allocation5 + $0x660] sm:$0xff]
        %v3285 = vld [vmem:[#allocation5 + $0x668] sm:$0xff]
        %v3286 = vld [vmem:[#allocation5 + $0x670] sm:$0xff]
        %v3287 = vld [vmem:[#allocation5 + $0x678] sm:$0xff]
        %v3288 = vld [vmem:[#allocation5 + $0x680] sm:$0xff]
        %v3289 = vld [vmem:[#allocation5 + $0x688] sm:$0xff]
        %v3290 = vld [vmem:[#allocation5 + $0x690] sm:$0xff]
        %v3291 = vld [vmem:[#allocation5 + $0x698] sm:$0xff]
        %v3292 = vld [vmem:[#allocation5 + $0x6a0] sm:$0xff]
        %v3293 = vld [vmem:[#allocation5 + $0x6a8] sm:$0xff]
        %v3294 = vld [vmem:[#allocation5 + $0x6b0] sm:$0xff]
        %v3295 = vld [vmem:[#allocation5 + $0x6b8] sm:$0xff]
        %v3296 = vld [vmem:[#allocation5 + $0x6c0] sm:$0xff]
        %v3297 = vld [vmem:[#allocation5 + $0x6c8] sm:$0xff]
        %v3298 = vld [vmem:[#allocation5 + $0x6d0] sm:$0xff]
        %v3299 = vld [vmem:[#allocation5 + $0x6d8] sm:$0xff]
        %v3300 = vld [vmem:[#allocation5 + $0x6e0] sm:$0xff]
        %v3301 = vld [vmem:[#allocation5 + $0x6e8] sm:$0xff]
        %v3302 = vld [vmem:[#allocation5 + $0x6f0] sm:$0xff]
        %v3303 = vld [vmem:[#allocation5 + $0x6f8] sm:$0xff]
        %v3304 = vld [vmem:[#allocation5 + $0x700] sm:$0xff]
        %v3305 = vld [vmem:[#allocation5 + $0x708] sm:$0xff]
        %v3306 = vld [vmem:[#allocation5 + $0x710] sm:$0xff]
        %v3307 = vld [vmem:[#allocation5 + $0x718] sm:$0xff]
        %v3308 = vld [vmem:[#allocation5 + $0x720] sm:$0xff]
        %v3309 = vld [vmem:[#allocation5 + $0x728] sm:$0xff]
        %v3310 = vld [vmem:[#allocation5 + $0x730] sm:$0xff]
        %v3311 = vld [vmem:[#allocation5 + $0x738] sm:$0xff]
        %v3312 = vld [vmem:[#allocation5 + $0x740] sm:$0xff]
        %v3313 = vld [vmem:[#allocation5 + $0x748] sm:$0xff]
        %v3314 = vld [vmem:[#allocation5 + $0x750] sm:$0xff]
        %v3315 = vld [vmem:[#allocation5 + $0x758] sm:$0xff]
        %v3316 = vld [vmem:[#allocation5 + $0x760] sm:$0xff]
        %v3317 = vld [vmem:[#allocation5 + $0x768] sm:$0xff]
        %v3318 = vld [vmem:[#allocation5 + $0x770] sm:$0xff]
        %v3319 = vld [vmem:[#allocation5 + $0x778] sm:$0xff]
        %v3320 = vld [vmem:[#allocation5 + $0x780] sm:$0xff]
        %v3321 = vld [vmem:[#allocation5 + $0x788] sm:$0xff]
        %v3322 = vld [vmem:[#allocation5 + $0x790] sm:$0xff]
        %v3323 = vld [vmem:[#allocation5 + $0x798] sm:$0xff]
        %v3324 = vld [vmem:[#allocation5 + $0x7a0] sm:$0xff]
        %v3325 = vld [vmem:[#allocation5 + $0x7a8] sm:$0xff]
        %v3326 = vld [vmem:[#allocation5 + $0x7b0] sm:$0xff]
        %v3327 = vld [vmem:[#allocation5 + $0x7b8] sm:$0xff]
        %v3328 = vld [vmem:[#allocation5 + $0x7c0] sm:$0xff]
        %v3329 = vld [vmem:[#allocation5 + $0x7c8] sm:$0xff]
        %v3330 = vld [vmem:[#allocation5 + $0x7d0] sm:$0xff]
        %v3331 = vld [vmem:[#allocation5 + $0x7d8] sm:$0xff]
        %v3332 = vld [vmem:[#allocation5 + $0x7e0] sm:$0xff]
        %v3333 = vld [vmem:[#allocation5 + $0x7e8] sm:$0xff]
        %v3334 = vld [vmem:[#allocation5 + $0x7f0] sm:$0xff]
        %v3335 = vld [vmem:[#allocation5 + $0x7f8] sm:$0xff]
        %v3336 = vld [vmem:[#allocation5 + $0x800] sm:$0xff]
        %v3337 = vld [vmem:[#allocation5 + $0x808] sm:$0xff]
        %v3338 = vld [vmem:[#allocation5 + $0x810] sm:$0xff]
        %v3339 = vld [vmem:[#allocation5 + $0x818] sm:$0xff]
        %v3340 = vld [vmem:[#allocation5 + $0x820] sm:$0xff]
        %v3341 = vld [vmem:[#allocation5 + $0x828] sm:$0xff]
        %v3342 = vld [vmem:[#allocation5 + $0x830] sm:$0xff]
        %v3343 = vld [vmem:[#allocation5 + $0x838] sm:$0xff]
        %v3344 = vld [vmem:[#allocation5 + $0x840] sm:$0xff]
        %v3345 = vld [vmem:[#allocation5 + $0x848] sm:$0xff]
        %v3346 = vld [vmem:[#allocation5 + $0x850] sm:$0xff]
        %v3347 = vld [vmem:[#allocation5 + $0x858] sm:$0xff]
        %v3348 = vld [vmem:[#allocation5 + $0x860] sm:$0xff]
        %v3349 = vld [vmem:[#allocation5 + $0x868] sm:$0xff]
        %v3350 = vld [vmem:[#allocation5 + $0x870] sm:$0xff]
        %v3351 = vld [vmem:[#allocation5 + $0x878] sm:$0xff]
        %v3352 = vld [vmem:[#allocation5 + $0x880] sm:$0xff]
        %v3353 = vld [vmem:[#allocation5 + $0x888] sm:$0xff]
        %v3354 = vld [vmem:[#allocation5 + $0x890] sm:$0xff]
        %v3355 = vld [vmem:[#allocation5 + $0x898] sm:$0xff]
        %v3356 = vld [vmem:[#allocation5 + $0x8a0] sm:$0xff]
        %v3357 = vld [vmem:[#allocation5 + $0x8a8] sm:$0xff]
        %v3358 = vld [vmem:[#allocation5 + $0x8b0] sm:$0xff]
        %v3359 = vld [vmem:[#allocation5 + $0x8b8] sm:$0xff]
        %v3360 = vld [vmem:[#allocation5 + $0x8c0] sm:$0xff]
        %v3361 = vld [vmem:[#allocation5 + $0x8c8] sm:$0xff]
        %v3362 = vld [vmem:[#allocation5 + $0x8d0] sm:$0xff]
        %v3363 = vld [vmem:[#allocation5 + $0x8d8] sm:$0xff]
        %v3364 = vld [vmem:[#allocation5 + $0x8e0] sm:$0xff]
        %v3365 = vld [vmem:[#allocation5 + $0x8e8] sm:$0xff]
        %v3366 = vld [vmem:[#allocation5 + $0x8f0] sm:$0xff]
        %v3367 = vld [vmem:[#allocation5 + $0x8f8] sm:$0xff]
        %v3368 = vld [vmem:[#allocation6] sm:$0xff]
        %v3369 = vld [vmem:[#allocation6 + $0x8] sm:$0xff]
        %v3370 = vld [vmem:[#allocation6 + $0x10] sm:$0xff]
        %v3371 = vld [vmem:[#allocation6 + $0x18] sm:$0xff]
        %v3372 = vld [vmem:[#allocation6 + $0x20] sm:$0xff]
        %v3373 = vld [vmem:[#allocation6 + $0x28] sm:$0xff]
        %v3374 = vld [vmem:[#allocation6 + $0x30] sm:$0xff]
        %v3375 = vld [vmem:[#allocation6 + $0x38] sm:$0xff]
        %v3376 = vld [vmem:[#allocation6 + $0x40] sm:$0xff]
        %v3377 = vld [vmem:[#allocation6 + $0x48] sm:$0xff]
        %v3378 = vld [vmem:[#allocation6 + $0x50] sm:$0xff]
        %v3379 = vld [vmem:[#allocation6 + $0x58] sm:$0xff]
        %v3380 = vld [vmem:[#allocation6 + $0x60] sm:$0xff]
        %v3381 = vld [vmem:[#allocation6 + $0x68] sm:$0xff]
        %v3382 = vld [vmem:[#allocation6 + $0x70] sm:$0xff]
        %v3383 = vld [vmem:[#allocation6 + $0x78] sm:$0xff]
        %v3384 = vld [vmem:[#allocation6 + $0x80] sm:$0xff]
        %v3385 = vld [vmem:[#allocation6 + $0x88] sm:$0xff]
        %v3386 = vld [vmem:[#allocation6 + $0x90] sm:$0xff]
        %v3387 = vld [vmem:[#allocation6 + $0x98] sm:$0xff]
        %v3388 = vld [vmem:[#allocation6 + $0xa0] sm:$0xff]
        %v3389 = vld [vmem:[#allocation6 + $0xa8] sm:$0xff]
        %v3390 = vld [vmem:[#allocation6 + $0xb0] sm:$0xff]
        %v3391 = vld [vmem:[#allocation6 + $0xb8] sm:$0xff]
        %v3392 = vld [vmem:[#allocation6 + $0xc0] sm:$0xff]
        %v3393 = vld [vmem:[#allocation6 + $0xc8] sm:$0xff]
        %v3394 = vld [vmem:[#allocation6 + $0xd0] sm:$0xff]
        %v3395 = vld [vmem:[#allocation6 + $0xd8] sm:$0xff]
        %v3396 = vld [vmem:[#allocation6 + $0xe0] sm:$0xff]
        %v3397 = vld [vmem:[#allocation6 + $0xe8] sm:$0xff]
        %v3398 = vld [vmem:[#allocation6 + $0xf0] sm:$0xff]
        %v3399 = vld [vmem:[#allocation6 + $0xf8] sm:$0xff]
        %v3400 = vld [vmem:[#allocation6 + $0x100] sm:$0xff]
        %v3401 = vld [vmem:[#allocation6 + $0x108] sm:$0xff]
        %v3402 = vld [vmem:[#allocation6 + $0x110] sm:$0xff]
        %v3403 = vld [vmem:[#allocation6 + $0x118] sm:$0xff]
        %v3404 = vld [vmem:[#allocation6 + $0x120] sm:$0xff]
        %v3405 = vld [vmem:[#allocation6 + $0x128] sm:$0xff]
        %v3406 = vld [vmem:[#allocation6 + $0x130] sm:$0xff]
        %v3407 = vld [vmem:[#allocation6 + $0x138] sm:$0xff]
        %v3408 = vld [vmem:[#allocation6 + $0x140] sm:$0xff]
        %v3409 = vld [vmem:[#allocation6 + $0x148] sm:$0xff]
        %v3410 = vld [vmem:[#allocation6 + $0x150] sm:$0xff]
        %v3411 = vld [vmem:[#allocation6 + $0x158] sm:$0xff]
        %v3412 = vld [vmem:[#allocation6 + $0x160] sm:$0xff]
        %v3413 = vld [vmem:[#allocation6 + $0x168] sm:$0xff]
        %v3414 = vld [vmem:[#allocation6 + $0x170] sm:$0xff]
        %v3415 = vld [vmem:[#allocation6 + $0x178] sm:$0xff]
        %v3416 = vld [vmem:[#allocation6 + $0x180] sm:$0xff]
        %v3417 = vld [vmem:[#allocation6 + $0x188] sm:$0xff]
        %v3418 = vld [vmem:[#allocation6 + $0x190] sm:$0xff]
        %v3419 = vld [vmem:[#allocation6 + $0x198] sm:$0xff]
        %v3420 = vld [vmem:[#allocation6 + $0x1a0] sm:$0xff]
        %v3421 = vld [vmem:[#allocation6 + $0x1a8] sm:$0xff]
        %v3422 = vld [vmem:[#allocation6 + $0x1b0] sm:$0xff]
        %v3423 = vld [vmem:[#allocation6 + $0x1b8] sm:$0xff]
        %v3424 = vld [vmem:[#allocation6 + $0x1c0] sm:$0xff]
        %v3425 = vld [vmem:[#allocation6 + $0x1c8] sm:$0xff]
        %v3426 = vld [vmem:[#allocation6 + $0x1d0] sm:$0xff]
        %v3427 = vld [vmem:[#allocation6 + $0x1d8] sm:$0xff]
        %v3428 = vld [vmem:[#allocation6 + $0x1e0] sm:$0xff]
        %v3429 = vld [vmem:[#allocation6 + $0x1e8] sm:$0xff]
        %v3430 = vld [vmem:[#allocation6 + $0x1f0] sm:$0xff]
        %v3431 = vld [vmem:[#allocation6 + $0x1f8] sm:$0xff]
        %v3432 = vld [vmem:[#allocation6 + $0x200] sm:$0xff]
        %v3433 = vld [vmem:[#allocation6 + $0x208] sm:$0xff]
        %v3434 = vld [vmem:[#allocation6 + $0x210] sm:$0xff]
        %v3435 = vld [vmem:[#allocation6 + $0x218] sm:$0xff]
        %v3436 = vld [vmem:[#allocation6 + $0x220] sm:$0xff]
        %v3437 = vld [vmem:[#allocation6 + $0x228] sm:$0xff]
        %v3438 = vld [vmem:[#allocation6 + $0x230] sm:$0xff]
        %v3439 = vld [vmem:[#allocation6 + $0x238] sm:$0xff]
        %v3440 = vld [vmem:[#allocation6 + $0x240] sm:$0xff]
        %v3441 = vld [vmem:[#allocation6 + $0x248] sm:$0xff]
        %v3442 = vld [vmem:[#allocation6 + $0x250] sm:$0xff]
        %v3443 = vld [vmem:[#allocation6 + $0x258] sm:$0xff]
        %v3444 = vld [vmem:[#allocation6 + $0x260] sm:$0xff]
        %v3445 = vld [vmem:[#allocation6 + $0x268] sm:$0xff]
        %v3446 = vld [vmem:[#allocation6 + $0x270] sm:$0xff]
        %v3447 = vld [vmem:[#allocation6 + $0x278] sm:$0xff]
        %v3448 = vld [vmem:[#allocation6 + $0x280] sm:$0xff]
        %v3449 = vld [vmem:[#allocation6 + $0x288] sm:$0xff]
        %v3450 = vld [vmem:[#allocation6 + $0x290] sm:$0xff]
        %v3451 = vld [vmem:[#allocation6 + $0x298] sm:$0xff]
        %v3452 = vld [vmem:[#allocation6 + $0x2a0] sm:$0xff]
        %v3453 = vld [vmem:[#allocation6 + $0x2a8] sm:$0xff]
        %v3454 = vld [vmem:[#allocation6 + $0x2b0] sm:$0xff]
        %v3455 = vld [vmem:[#allocation6 + $0x2b8] sm:$0xff]
        %v3456 = vld [vmem:[#allocation6 + $0x2c0] sm:$0xff]
        %v3457 = vld [vmem:[#allocation6 + $0x2c8] sm:$0xff]
        %v3458 = vld [vmem:[#allocation6 + $0x2d0] sm:$0xff]
        %v3459 = vld [vmem:[#allocation6 + $0x2d8] sm:$0xff]
        %v3460 = vld [vmem:[#allocation6 + $0x2e0] sm:$0xff]
        %v3461 = vld [vmem:[#allocation6 + $0x2e8] sm:$0xff]
        %v3462 = vld [vmem:[#allocation6 + $0x2f0] sm:$0xff]
        %v3463 = vld [vmem:[#allocation6 + $0x2f8] sm:$0xff]
        %v3464 = vld [vmem:[#allocation6 + $0x300] sm:$0xff]
        %v3465 = vld [vmem:[#allocation6 + $0x308] sm:$0xff]
        %v3466 = vld [vmem:[#allocation6 + $0x310] sm:$0xff]
        %v3467 = vld [vmem:[#allocation6 + $0x318] sm:$0xff]
        %v3468 = vld [vmem:[#allocation6 + $0x320] sm:$0xff]
        %v3469 = vld [vmem:[#allocation6 + $0x328] sm:$0xff]
        %v3470 = vld [vmem:[#allocation6 + $0x330] sm:$0xff]
        %v3471 = vld [vmem:[#allocation6 + $0x338] sm:$0xff]
        %v3472 = vld [vmem:[#allocation6 + $0x340] sm:$0xff]
        %v3473 = vld [vmem:[#allocation6 + $0x348] sm:$0xff]
        %v3474 = vld [vmem:[#allocation6 + $0x350] sm:$0xff]
        %v3475 = vld [vmem:[#allocation6 + $0x358] sm:$0xff]
        %v3476 = vld [vmem:[#allocation6 + $0x360] sm:$0xff]
        %v3477 = vld [vmem:[#allocation6 + $0x368] sm:$0xff]
        %v3478 = vld [vmem:[#allocation6 + $0x370] sm:$0xff]
        %v3479 = vld [vmem:[#allocation6 + $0x378] sm:$0xff]
        %v3480 = vld [vmem:[#allocation6 + $0x380] sm:$0xff]
        %v3481 = vld [vmem:[#allocation6 + $0x388] sm:$0xff]
        %v3482 = vld [vmem:[#allocation6 + $0x390] sm:$0xff]
        %v3483 = vld [vmem:[#allocation6 + $0x398] sm:$0xff]
        %v3484 = vld [vmem:[#allocation6 + $0x3a0] sm:$0xff]
        %v3485 = vld [vmem:[#allocation6 + $0x3a8] sm:$0xff]
        %v3486 = vld [vmem:[#allocation6 + $0x3b0] sm:$0xff]
        %v3487 = vld [vmem:[#allocation6 + $0x3b8] sm:$0xff]
        %v3488 = vld [vmem:[#allocation6 + $0x3c0] sm:$0xff]
        %v3489 = vld [vmem:[#allocation6 + $0x3c8] sm:$0xff]
        %v3490 = vld [vmem:[#allocation6 + $0x3d0] sm:$0xff]
        %v3491 = vld [vmem:[#allocation6 + $0x3d8] sm:$0xff]
        %v3492 = vld [vmem:[#allocation6 + $0x3e0] sm:$0xff]
        %v3493 = vld [vmem:[#allocation6 + $0x3e8] sm:$0xff]
        %v3494 = vld [vmem:[#allocation6 + $0x3f0] sm:$0xff]
        %v3495 = vld [vmem:[#allocation6 + $0x3f8] sm:$0xff]
        %v3496 = vld [vmem:[#allocation6 + $0x400] sm:$0xff]
        %v3497 = vld [vmem:[#allocation6 + $0x408] sm:$0xff]
        %v3498 = vld [vmem:[#allocation6 + $0x410] sm:$0xff]
        %v3499 = vld [vmem:[#allocation6 + $0x418] sm:$0xff]
        %v3500 = vld [vmem:[#allocation6 + $0x420] sm:$0xff]
        %v3501 = vld [vmem:[#allocation6 + $0x428] sm:$0xff]
        %v3502 = vld [vmem:[#allocation6 + $0x430] sm:$0xff]
        %v3503 = vld [vmem:[#allocation6 + $0x438] sm:$0xff]
        %v3504 = vld [vmem:[#allocation6 + $0x440] sm:$0xff]
        %v3505 = vld [vmem:[#allocation6 + $0x448] sm:$0xff]
        %v3506 = vld [vmem:[#allocation6 + $0x450] sm:$0xff]
        %v3507 = vld [vmem:[#allocation6 + $0x458] sm:$0xff]
        %v3508 = vld [vmem:[#allocation6 + $0x460] sm:$0xff]
        %v3509 = vld [vmem:[#allocation6 + $0x468] sm:$0xff]
        %v3510 = vld [vmem:[#allocation6 + $0x470] sm:$0xff]
        %v3511 = vld [vmem:[#allocation6 + $0x478] sm:$0xff]
        %v3512 = vld [vmem:[%s4] sm:$0x1]
        %v3514 = vlaneseq
        %v3515 = vshrl.u32 %v3514, 7
        %v3516 = vsub.s32 0, %v3515
        %v3517 = vrot.slane %v3512, %v3516
        %3519 = vmatprep.subr.mxu0 0.0
        %3520 = vmatpush1.msra.mxu0 %v3368
        %3521 = vmatprep.subr.mxu0 0.0
        %3522 = vmatpush1.msra.mxu0 %v3369
        %3523 = vmatprep.subr.mxu0 0.0
        %3524 = vmatpush1.msra.mxu0 %v3370
        %3525 = vmatprep.subr.mxu0 0.0
        %3526 = vmatpush1.msra.mxu0 %v3371
        %3527 = vmatprep.subr.mxu0 0.0
        %3528 = vmatpush1.msra.mxu0 %v3372
        %3529 = vmatprep.subr.mxu0 0.0
        %3530 = vmatpush1.msra.mxu0 %v3373
        %3531 = vmatprep.subr.mxu0 0.0
        %3532 = vmatpush1.msra.mxu0 %v3374
        %3533 = vmatprep.subr.mxu0 0.0
        %3534 = vmatpush1.msra.mxu0 %v3375
        %3535 = vmatprep.subr.mxu0 0.0
        %3536 = vmatpush1.msra.mxu0 %v3376
        %3537 = vmatprep.subr.mxu0 0.0
        %3538 = vmatpush1.msra.mxu0 %v3377
        %3539 = vmatprep.subr.mxu0 0.0
        %3540 = vmatpush1.msra.mxu0 %v3378
        %3541 = vmatprep.subr.mxu0 0.0
        %3542 = vmatpush1.msra.mxu0 %v3379
        %3543 = vmatprep.subr.mxu0 0.0
        %3544 = vmatpush1.msra.mxu0 %v3380
        %3545 = vmatprep.subr.mxu0 0.0
        %3546 = vmatpush1.msra.mxu0 %v3381
        %3547 = vmatprep.subr.mxu0 0.0
        %3548 = vmatpush1.msra.mxu0 %v3382
        %3549 = vmatprep.subr.mxu0 0.0
        %3550 = vmatpush1.msra.mxu0 %v3383
        %3551 = vmatprep.subr.mxu0 0.0
        %3552 = vmatpush1.msra.mxu0 %v3384
        %3553 = vmatprep.subr.mxu0 0.0
        %3554 = vmatpush1.msra.mxu0 %v3385
        %3555 = vmatprep.subr.mxu0 0.0
        %3556 = vmatpush1.msra.mxu0 %v3386
        %3557 = vmatprep.subr.mxu0 0.0
        %3558 = vmatpush1.msra.mxu0 %v3387
        %3559 = vmatprep.subr.mxu0 0.0
        %3560 = vmatpush1.msra.mxu0 %v3388
        %3561 = vmatprep.subr.mxu0 0.0
        %3562 = vmatpush1.msra.mxu0 %v3389
        %3563 = vmatprep.subr.mxu0 0.0
        %3564 = vmatpush1.msra.mxu0 %v3390
        %3565 = vmatprep.subr.mxu0 0.0
        %3566 = vmatpush1.msra.mxu0 %v3391
        %3567 = vmatprep.subr.mxu0 0.0
        %3568 = vmatpush1.msra.mxu0 %v3392
        %3569 = vmatprep.subr.mxu0 0.0
        %3570 = vmatpush1.msra.mxu0 %v3393
        %3571 = vmatprep.subr.mxu0 0.0
        %3572 = vmatpush1.msra.mxu0 %v3394
        %3573 = vmatprep.subr.mxu0 0.0
        %3574 = vmatpush1.msra.mxu0 %v3395
        %3575 = vmatprep.subr.mxu0 0.0
        %3576 = vmatpush1.msra.mxu0 %v3396
        %3577 = vmatprep.subr.mxu0 0.0
        %3578 = vmatpush1.msra.mxu0 %v3397
        %3579 = vmatprep.subr.mxu0 0.0
        %3580 = vmatpush1.msra.mxu0 %v3398
        %3581 = vmatprep.subr.mxu0 0.0
        %3582 = vmatpush1.msra.mxu0 %v3399
        %3583 = vmatprep.mubr.f32.mxu0 %v3081
        %3584 = vmatmul.mubr.f32.gmra.mrb[0].mxu0 %v3080
        %v3585 = vpop.f32.mrb[0].mxu0
        %v3586 = vadd.f32 %v3517, %v3585
        %v3587 = vpop.f32.mrb[0].mxu0
        %3588 = vmatprep.mubr.f32.mxu0 %v3090
        %3589 = vmatmul.mubr.f32.gmra.mrb[0].mxu0 %v3089
        %v3590 = vpop.f32.mrb[0].mxu0
        %v3591 = vadd.f32 %v3517, %v3590
        %v3592 = vpop.f32.mrb[0].mxu0
        %3593 = vmatprep.mubr.f32.mxu0 %v3099
        %3594 = vmatmul.mubr.f32.gmra.mrb[0].mxu0 %v3098
        %v3595 = vpop.f32.mrb[0].mxu0
        %v3596 = vadd.f32 %v3517, %v3595
        %v3597 = vpop.f32.mrb[0].mxu0
        %3598 = vmatprep.mubr.f32.mxu0 %v3108
        %3599 = vmatmul.mubr.f32.gmra.mrb[0].mxu0 %v3107
        %v3600 = vpop.f32.mrb[0].mxu0
        %v3601 = vadd.f32 %v3517, %v3600
        %v3602 = vpop.f32.mrb[0].mxu0
        %3603 = vmatprep.mubr.f32.mxu0 %v3117
        %3604 = vmatmul.mubr.f32.gmra.mrb[0].mxu0 %v3116
        %v3605 = vpop.f32.mrb[0].mxu0
        %v3606 = vadd.f32 %v3517, %v3605
        %v3607 = vpop.f32.mrb[0].mxu0
        %3608 = vmatprep.mubr.f32.mxu0 %v3126
        %3609 = vmatmul.mubr.f32.gmra.mrb[0].mxu0 %v3125
        %v3610 = vpop.f32.mrb[0].mxu0
        %v3611 = vadd.f32 %v3517, %v3610
        %v3612 = vpop.f32.mrb[0].mxu0
        %3613 = vmatprep.mubr.f32.mxu0 %v3135
        %3614 = vmatmul.mubr.f32.gmra.mrb[0].mxu0 %v3134
        %v3615 = vpop.f32.mrb[0].mxu0
        %v3616 = vadd.f32 %v3517, %v3615
        %v3617 = vpop.f32.mrb[0].mxu0
        %3618 = vmatprep.mubr.f32.mxu0 %v3144
        %3619 = vmatmul.mubr.f32.gmra.mrb[0].mxu0 %v3143
        %v3620 = vpop.f32.mrb[0].mxu0
        %v3621 = vadd.f32 %v3517, %v3620
        %v3622 = vpop.f32.mrb[0].mxu0
        %3623 = vmatprep.mubr.f32.mxu0 %v3153
        %3624 = vmatmul.mubr.f32.gmra.mrb[0].mxu0 %v3152
        %v3625 = vpop.f32.mrb[0].mxu0
        %v3626 = vadd.f32 %v3517, %v3625
        %v3627 = vpop.f32.mrb[0].mxu0
        %3628 = vmatprep.mubr.f32.mxu0 %v3162
        %3629 = vmatmul.mubr.f32.gmra.mrb[0].mxu0 %v3161
        %v3630 = vpop.f32.mrb[0].mxu0
        %v3631 = vadd.f32 %v3517, %v3630
        %v3632 = vpop.f32.mrb[0].mxu0
        %3633 = vmatprep.mubr.f32.mxu0 %v3171
        %3634 = vmatmul.mubr.f32.gmra.mrb[0].mxu0 %v3170
        %v3635 = vpop.f32.mrb[0].mxu0
        %v3636 = vadd.f32 %v3517, %v3635
        %v3637 = vpop.f32.mrb[0].mxu0
        %3638 = vmatprep.mubr.f32.mxu0 %v3180
        %3639 = vmatmul.mubr.f32.gmra.mrb[0].mxu0 %v3179
        %v3640 = vpop.f32.mrb[0].mxu0
        %v3641 = vadd.f32 %v3517, %v3640
        %v3642 = vpop.f32.mrb[0].mxu0
        %3643 = vmatprep.mubr.f32.mxu0 %v3189
        %3644 = vmatmul.mubr.f32.gmra.mrb[0].mxu0 %v3188
        %v3645 = vpop.f32.mrb[0].mxu0
        %v3646 = vadd.f32 %v3517, %v3645
        %v3647 = vpop.f32.mrb[0].mxu0
        %3648 = vmatprep.mubr.f32.mxu0 %v3198
        %3649 = vmatmul.mubr.f32.gmra.mrb[0].mxu0 %v3197
        %v3650 = vpop.f32.mrb[0].mxu0
        %v3651 = vadd.f32 %v3517, %v3650
        %v3652 = vpop.f32.mrb[0].mxu0
        %3653 = vmatprep.mubr.f32.mxu0 %v3207
        %3654 = vmatmul.mubr.f32.gmra.mrb[0].mxu0 %v3206
        %v3655 = vpop.f32.mrb[0].mxu0
        %v3656 = vadd.f32 %v3517, %v3655
        %v3657 = vpop.f32.mrb[0].mxu0
        %3658 = vmatprep.mubr.f32.mxu0 %v3216
        %3659 = vmatmul.mubr.f32.gmra.mrb[0].mxu0 %v3215
        %v3660 = vpop.f32.mrb[0].mxu0
        %v3661 = vadd.f32 %v3517, %v3660
        %v3662 = vpop.f32.mrb[0].mxu0
        %3663 = vmatprep.mubr.f32.mxu0 %v3225
        %3664 = vmatmul.mubr.f32.gmra.mrb[0].mxu0 %v3224
        %v3665 = vpop.f32.mrb[0].mxu0
        %v3666 = vadd.f32 %v3517, %v3665
        %v3667 = vpop.f32.mrb[0].mxu0
        %3668 = vmatprep.mubr.f32.mxu0 %v3234
        %3669 = vmatmul.mubr.f32.gmra.mrb[0].mxu0 %v3233
        %v3670 = vpop.f32.mrb[0].mxu0
        %v3671 = vadd.f32 %v3517, %v3670
        %v3672 = vpop.f32.mrb[0].mxu0
        %3673 = vmatprep.mubr.f32.mxu0 %v3243
        %3674 = vmatmul.mubr.f32.gmra.mrb[0].mxu0 %v3242
        %v3675 = vpop.f32.mrb[0].mxu0
        %v3676 = vadd.f32 %v3517, %v3675
        %v3677 = vpop.f32.mrb[0].mxu0
        %3678 = vmatprep.mubr.f32.mxu0 %v3252
        %3679 = vmatmul.mubr.f32.gmra.mrb[0].mxu0 %v3251
        %v3680 = vpop.f32.mrb[0].mxu0
        %v3681 = vadd.f32 %v3517, %v3680
        %v3682 = vpop.f32.mrb[0].mxu0
        %3683 = vmatprep.mubr.f32.mxu0 %v3261
        %3684 = vmatmul.mubr.f32.gmra.mrb[0].mxu0 %v3260
        %v3685 = vpop.f32.mrb[0].mxu0
        %v3686 = vadd.f32 %v3517, %v3685
        %v3687 = vpop.f32.mrb[0].mxu0
        %3688 = vmatprep.mubr.f32.mxu0 %v3270
        %3689 = vmatmul.mubr.f32.gmra.mrb[0].mxu0 %v3269
        %v3690 = vpop.f32.mrb[0].mxu0
        %v3691 = vadd.f32 %v3517, %v3690
        %v3692 = vpop.f32.mrb[0].mxu0
        %3693 = vmatprep.mubr.f32.mxu0 %v3279
        %3694 = vmatmul.mubr.f32.gmra.mrb[0].mxu0 %v3278
        %v3695 = vpop.f32.mrb[0].mxu0
        %v3696 = vadd.f32 %v3517, %v3695
        %v3697 = vpop.f32.mrb[0].mxu0
        %3698 = vmatprep.mubr.f32.mxu0 %v3288
        %3699 = vmatmul.mubr.f32.gmra.mrb[0].mxu0 %v3287
        %v3700 = vpop.f32.mrb[0].mxu0
        %v3701 = vadd.f32 %v3517, %v3700
        %v3702 = vpop.f32.mrb[0].mxu0
        %3703 = vmatprep.mubr.f32.mxu0 %v3297
        %3704 = vmatmul.mubr.f32.gmra.mrb[0].mxu0 %v3296
        %v3705 = vpop.f32.mrb[0].mxu0
        %v3706 = vadd.f32 %v3517, %v3705
        %v3707 = vpop.f32.mrb[0].mxu0
        %3708 = vmatprep.mubr.f32.mxu0 %v3306
        %3709 = vmatmul.mubr.f32.gmra.mrb[0].mxu0 %v3305
        %v3710 = vpop.f32.mrb[0].mxu0
        %v3711 = vadd.f32 %v3517, %v3710
        %v3712 = vpop.f32.mrb[0].mxu0
        %3713 = vmatprep.mubr.f32.mxu0 %v3315
        %3714 = vmatmul.mubr.f32.gmra.mrb[0].mxu0 %v3314
        %v3715 = vpop.f32.mrb[0].mxu0
        %v3716 = vadd.f32 %v3517, %v3715
        %v3717 = vpop.f32.mrb[0].mxu0
        %3718 = vmatprep.mubr.f32.mxu0 %v3324
        %3719 = vmatmul.mubr.f32.gmra.mrb[0].mxu0 %v3323
        %v3720 = vpop.f32.mrb[0].mxu0
        %v3721 = vadd.f32 %v3517, %v3720
        %v3722 = vpop.f32.mrb[0].mxu0
        %3723 = vmatprep.mubr.f32.mxu0 %v3333
        %3724 = vmatmul.mubr.f32.gmra.mrb[0].mxu0 %v3332
        %v3725 = vpop.f32.mrb[0].mxu0
        %v3726 = vadd.f32 %v3517, %v3725
        %v3727 = vpop.f32.mrb[0].mxu0
        %3728 = vmatprep.mubr.f32.mxu0 %v3342
        %3729 = vmatmul.mubr.f32.gmra.mrb[0].mxu0 %v3341
        %v3730 = vpop.f32.mrb[0].mxu0
        %v3731 = vadd.f32 %v3517, %v3730
        %v3732 = vpop.f32.mrb[0].mxu0
        %3733 = vmatprep.mubr.f32.mxu0 %v3351
        %3734 = vmatmul.mubr.f32.gmra.mrb[0].mxu0 %v3350
        %v3735 = vpop.f32.mrb[0].mxu0
        %v3736 = vadd.f32 %v3517, %v3735
        %v3737 = vpop.f32.mrb[0].mxu0
        %3738 = vmatprep.mubr.f32.mxu0 %v3360
        %3739 = vmatmul.mubr.f32.gmra.mrb[0].mxu0 %v3359
        %v3740 = vpop.f32.mrb[0].mxu0
        %v3741 = vadd.f32 %v3517, %v3740
        %v3742 = vpop.f32.mrb[0].mxu0
        %3743 = vdwg.mxu0
        %3744 = vmatprep.subr.mxu0 0.0
        %3745 = vmatpush1.msra.mxu0 %v3400
        %3746 = vmatprep.subr.mxu0 0.0
        %3747 = vmatpush1.msra.mxu0 %v3401
        %3748 = vmatprep.subr.mxu0 0.0
        %3749 = vmatpush1.msra.mxu0 %v3402
        %3750 = vmatprep.subr.mxu0 0.0
        %3751 = vmatpush1.msra.mxu0 %v3403
        %3752 = vmatprep.subr.mxu0 0.0
        %3753 = vmatpush1.msra.mxu0 %v3404
        %3754 = vmatprep.subr.mxu0 0.0
        %3755 = vmatpush1.msra.mxu0 %v3405
        %3756 = vmatprep.subr.mxu0 0.0
        %3757 = vmatpush1.msra.mxu0 %v3406
        %3758 = vmatprep.subr.mxu0 0.0
        %3759 = vmatpush1.msra.mxu0 %v3407
        %3760 = vmatprep.subr.mxu0 0.0
        %3761 = vmatpush1.msra.mxu0 %v3408
        %3762 = vmatprep.subr.mxu0 0.0
        %3763 = vmatpush1.msra.mxu0 %v3409
        %3764 = vmatprep.subr.mxu0 0.0
        %3765 = vmatpush1.msra.mxu0 %v3410
        %3766 = vmatprep.subr.mxu0 0.0
        %3767 = vmatpush1.msra.mxu0 %v3411
        %3768 = vmatprep.subr.mxu0 0.0
        %3769 = vmatpush1.msra.mxu0 %v3412
        %3770 = vmatprep.subr.mxu0 0.0
        %3771 = vmatpush1.msra.mxu0 %v3413
        %3772 = vmatprep.subr.mxu0 0.0
        %3773 = vmatpush1.msra.mxu0 %v3414
        %3774 = vmatprep.subr.mxu0 0.0
        %3775 = vmatpush1.msra.mxu0 %v3415
        %3776 = vmatprep.subr.mxu0 0.0
        %3777 = vmatpush1.msra.mxu0 %v3416
        %3778 = vmatprep.subr.mxu0 0.0
        %3779 = vmatpush1.msra.mxu0 %v3417
        %3780 = vmatprep.subr.mxu0 0.0
        %3781 = vmatpush1.msra.mxu0 %v3418
        %3782 = vmatprep.subr.mxu0 0.0
        %3783 = vmatpush1.msra.mxu0 %v3419
        %3784 = vmatprep.subr.mxu0 0.0
        %3785 = vmatpush1.msra.mxu0 %v3420
        %3786 = vmatprep.subr.mxu0 0.0
        %3787 = vmatpush1.msra.mxu0 %v3421
        %3788 = vmatprep.subr.mxu0 0.0
        %3789 = vmatpush1.msra.mxu0 %v3422
        %3790 = vmatprep.subr.mxu0 0.0
        %3791 = vmatpush1.msra.mxu0 %v3423
        %3792 = vmatprep.subr.mxu0 0.0
        %3793 = vmatpush1.msra.mxu0 %v3424
        %3794 = vmatprep.subr.mxu0 0.0
        %3795 = vmatpush1.msra.mxu0 %v3425
        %3796 = vmatprep.subr.mxu0 0.0
        %3797 = vmatpush1.msra.mxu0 %v3426
        %3798 = vmatprep.subr.mxu0 0.0
        %3799 = vmatpush1.msra.mxu0 %v3427
        %3800 = vmatprep.subr.mxu0 0.0
        %3801 = vmatpush1.msra.mxu0 %v3428
        %3802 = vmatprep.subr.mxu0 0.0
        %3803 = vmatpush1.msra.mxu0 %v3429
        %3804 = vmatprep.subr.mxu0 0.0
        %3805 = vmatpush1.msra.mxu0 %v3430
        %3806 = vmatprep.subr.mxu0 0.0
        %3807 = vmatpush1.msra.mxu0 %v3431
        %3808 = vmatprep.mubr.f32.mxu0 %v3083
        %3809 = vmatmul.mubr.f32.gmra.mrb[0].mxu0 %v3082
        %v3810 = vpop.f32.mrb[0].mxu0
        %v3811 = vadd.f32 %v3586, %v3810
        %v3812 = vpop.f32.mrb[0].mxu0
        %3813 = vmatprep.mubr.f32.mxu0 %v3092
        %3814 = vmatmul.mubr.f32.gmra.mrb[0].mxu0 %v3091
        %v3815 = vpop.f32.mrb[0].mxu0
        %v3816 = vadd.f32 %v3591, %v3815
        %v3817 = vpop.f32.mrb[0].mxu0
        %3818 = vmatprep.mubr.f32.mxu0 %v3101
        %3819 = vmatmul.mubr.f32.gmra.mrb[0].mxu0 %v3100
        %v3820 = vpop.f32.mrb[0].mxu0
        %v3821 = vadd.f32 %v3596, %v3820
        %v3822 = vpop.f32.mrb[0].mxu0
        %3823 = vmatprep.mubr.f32.mxu0 %v3110
        %3824 = vmatmul.mubr.f32.gmra.mrb[0].mxu0 %v3109
        %v3825 = vpop.f32.mrb[0].mxu0
        %v3826 = vadd.f32 %v3601, %v3825
        %v3827 = vpop.f32.mrb[0].mxu0
        %3828 = vmatprep.mubr.f32.mxu0 %v3119
        %3829 = vmatmul.mubr.f32.gmra.mrb[0].mxu0 %v3118
        %v3830 = vpop.f32.mrb[0].mxu0
        %v3831 = vadd.f32 %v3606, %v3830
        %v3832 = vpop.f32.mrb[0].mxu0
        %3833 = vmatprep.mubr.f32.mxu0 %v3128
        %3834 = vmatmul.mubr.f32.gmra.mrb[0].mxu0 %v3127
        %v3835 = vpop.f32.mrb[0].mxu0
        %v3836 = vadd.f32 %v3611, %v3835
        %v3837 = vpop.f32.mrb[0].mxu0
        %3838 = vmatprep.mubr.f32.mxu0 %v3137
        %3839 = vmatmul.mubr.f32.gmra.mrb[0].mxu0 %v3136
        %v3840 = vpop.f32.mrb[0].mxu0
        %v3841 = vadd.f32 %v3616, %v3840
        %v3842 = vpop.f32.mrb[0].mxu0
        %3843 = vmatprep.mubr.f32.mxu0 %v3146
        %3844 = vmatmul.mubr.f32.gmra.mrb[0].mxu0 %v3145
        %v3845 = vpop.f32.mrb[0].mxu0
        %v3846 = vadd.f32 %v3621, %v3845
        %v3847 = vpop.f32.mrb[0].mxu0
        %3848 = vmatprep.mubr.f32.mxu0 %v3155
        %3849 = vmatmul.mubr.f32.gmra.mrb[0].mxu0 %v3154
        %v3850 = vpop.f32.mrb[0].mxu0
        %v3851 = vadd.f32 %v3626, %v3850
        %v3852 = vpop.f32.mrb[0].mxu0
        %3853 = vmatprep.mubr.f32.mxu0 %v3164
        %3854 = vmatmul.mubr.f32.gmra.mrb[0].mxu0 %v3163
        %v3855 = vpop.f32.mrb[0].mxu0
        %v3856 = vadd.f32 %v3631, %v3855
        %v3857 = vpop.f32.mrb[0].mxu0
        %3858 = vmatprep.mubr.f32.mxu0 %v3173
        %3859 = vmatmul.mubr.f32.gmra.mrb[0].mxu0 %v3172
        %v3860 = vpop.f32.mrb[0].mxu0
        %v3861 = vadd.f32 %v3636, %v3860
        %v3862 = vpop.f32.mrb[0].mxu0
        %3863 = vmatprep.mubr.f32.mxu0 %v3182
        %3864 = vmatmul.mubr.f32.gmra.mrb[0].mxu0 %v3181
        %v3865 = vpop.f32.mrb[0].mxu0
        %v3866 = vadd.f32 %v3641, %v3865
        %v3867 = vpop.f32.mrb[0].mxu0
        %3868 = vmatprep.mubr.f32.mxu0 %v3191
        %3869 = vmatmul.mubr.f32.gmra.mrb[0].mxu0 %v3190
        %v3870 = vpop.f32.mrb[0].mxu0
        %v3871 = vadd.f32 %v3646, %v3870
        %v3872 = vpop.f32.mrb[0].mxu0
        %3873 = vmatprep.mubr.f32.mxu0 %v3200
        %3874 = vmatmul.mubr.f32.gmra.mrb[0].mxu0 %v3199
        %v3875 = vpop.f32.mrb[0].mxu0
        %v3876 = vadd.f32 %v3651, %v3875
        %v3877 = vpop.f32.mrb[0].mxu0
        %3878 = vmatprep.mubr.f32.mxu0 %v3209
        %3879 = vmatmul.mubr.f32.gmra.mrb[0].mxu0 %v3208
        %v3880 = vpop.f32.mrb[0].mxu0
        %v3881 = vadd.f32 %v3656, %v3880
        %v3882 = vpop.f32.mrb[0].mxu0
        %3883 = vmatprep.mubr.f32.mxu0 %v3218
        %3884 = vmatmul.mubr.f32.gmra.mrb[0].mxu0 %v3217
        %v3885 = vpop.f32.mrb[0].mxu0
        %v3886 = vadd.f32 %v3661, %v3885
        %v3887 = vpop.f32.mrb[0].mxu0
        %3888 = vmatprep.mubr.f32.mxu0 %v3227
        %3889 = vmatmul.mubr.f32.gmra.mrb[0].mxu0 %v3226
        %v3890 = vpop.f32.mrb[0].mxu0
        %v3891 = vadd.f32 %v3666, %v3890
        %v3892 = vpop.f32.mrb[0].mxu0
        %3893 = vmatprep.mubr.f32.mxu0 %v3236
        %3894 = vmatmul.mubr.f32.gmra.mrb[0].mxu0 %v3235
        %v3895 = vpop.f32.mrb[0].mxu0
        %v3896 = vadd.f32 %v3671, %v3895
        %v3897 = vpop.f32.mrb[0].mxu0
        %3898 = vmatprep.mubr.f32.mxu0 %v3245
        %3899 = vmatmul.mubr.f32.gmra.mrb[0].mxu0 %v3244
        %v3900 = vpop.f32.mrb[0].mxu0
        %v3901 = vadd.f32 %v3676, %v3900
        %v3902 = vpop.f32.mrb[0].mxu0
        %3903 = vmatprep.mubr.f32.mxu0 %v3254
        %3904 = vmatmul.mubr.f32.gmra.mrb[0].mxu0 %v3253
        %v3905 = vpop.f32.mrb[0].mxu0
        %v3906 = vadd.f32 %v3681, %v3905
        %v3907 = vpop.f32.mrb[0].mxu0
        %3908 = vmatprep.mubr.f32.mxu0 %v3263
        %3909 = vmatmul.mubr.f32.gmra.mrb[0].mxu0 %v3262
        %v3910 = vpop.f32.mrb[0].mxu0
        %v3911 = vadd.f32 %v3686, %v3910
        %v3912 = vpop.f32.mrb[0].mxu0
        %3913 = vmatprep.mubr.f32.mxu0 %v3272
        %3914 = vmatmul.mubr.f32.gmra.mrb[0].mxu0 %v3271
        %v3915 = vpop.f32.mrb[0].mxu0
        %v3916 = vadd.f32 %v3691, %v3915
        %v3917 = vpop.f32.mrb[0].mxu0
        %3918 = vmatprep.mubr.f32.mxu0 %v3281
        %3919 = vmatmul.mubr.f32.gmra.mrb[0].mxu0 %v3280
        %v3920 = vpop.f32.mrb[0].mxu0
        %v3921 = vadd.f32 %v3696, %v3920
        %v3922 = vpop.f32.mrb[0].mxu0
        %3923 = vmatprep.mubr.f32.mxu0 %v3290
        %3924 = vmatmul.mubr.f32.gmra.mrb[0].mxu0 %v3289
        %v3925 = vpop.f32.mrb[0].mxu0
        %v3926 = vadd.f32 %v3701, %v3925
        %v3927 = vpop.f32.mrb[0].mxu0
        %3928 = vmatprep.mubr.f32.mxu0 %v3299
        %3929 = vmatmul.mubr.f32.gmra.mrb[0].mxu0 %v3298
        %v3930 = vpop.f32.mrb[0].mxu0
        %v3931 = vadd.f32 %v3706, %v3930
        %v3932 = vpop.f32.mrb[0].mxu0
        %3933 = vmatprep.mubr.f32.mxu0 %v3308
        %3934 = vmatmul.mubr.f32.gmra.mrb[0].mxu0 %v3307
        %v3935 = vpop.f32.mrb[0].mxu0
        %v3936 = vadd.f32 %v3711, %v3935
        %v3937 = vpop.f32.mrb[0].mxu0
        %3938 = vmatprep.mubr.f32.mxu0 %v3317
        %3939 = vmatmul.mubr.f32.gmra.mrb[0].mxu0 %v3316
        %v3940 = vpop.f32.mrb[0].mxu0
        %v3941 = vadd.f32 %v3716, %v3940
        %v3942 = vpop.f32.mrb[0].mxu0
        %3943 = vmatprep.mubr.f32.mxu0 %v3326
        %3944 = vmatmul.mubr.f32.gmra.mrb[0].mxu0 %v3325
        %v3945 = vpop.f32.mrb[0].mxu0
        %v3946 = vadd.f32 %v3721, %v3945
        %v3947 = vpop.f32.mrb[0].mxu0
        %3948 = vmatprep.mubr.f32.mxu0 %v3335
        %3949 = vmatmul.mubr.f32.gmra.mrb[0].mxu0 %v3334
        %v3950 = vpop.f32.mrb[0].mxu0
        %v3951 = vadd.f32 %v3726, %v3950
        %v3952 = vpop.f32.mrb[0].mxu0
        %3953 = vmatprep.mubr.f32.mxu0 %v3344
        %3954 = vmatmul.mubr.f32.gmra.mrb[0].mxu0 %v3343
        %v3955 = vpop.f32.mrb[0].mxu0
        %v3956 = vadd.f32 %v3731, %v3955
        %v3957 = vpop.f32.mrb[0].mxu0
        %3958 = vmatprep.mubr.f32.mxu0 %v3353
        %3959 = vmatmul.mubr.f32.gmra.mrb[0].mxu0 %v3352
        %v3960 = vpop.f32.mrb[0].mxu0
        %v3961 = vadd.f32 %v3736, %v3960
        %v3962 = vpop.f32.mrb[0].mxu0
        %3963 = vmatprep.mubr.f32.mxu0 %v3362
        %3964 = vmatmul.mubr.f32.gmra.mrb[0].mxu0 %v3361
        %v3965 = vpop.f32.mrb[0].mxu0
        %v3966 = vadd.f32 %v3741, %v3965
        %v3967 = vpop.f32.mrb[0].mxu0
        %3968 = vdwg.mxu0
        %3969 = vmatprep.subr.mxu0 0.0
        %3970 = vmatpush1.msra.mxu0 %v3432
        %3971 = vmatprep.subr.mxu0 0.0
        %3972 = vmatpush1.msra.mxu0 %v3433
        %3973 = vmatprep.subr.mxu0 0.0
        %3974 = vmatpush1.msra.mxu0 %v3434
        %3975 = vmatprep.subr.mxu0 0.0
        %3976 = vmatpush1.msra.mxu0 %v3435
        %3977 = vmatprep.subr.mxu0 0.0
        %3978 = vmatpush1.msra.mxu0 %v3436
        %3979 = vmatprep.subr.mxu0 0.0
        %3980 = vmatpush1.msra.mxu0 %v3437
        %3981 = vmatprep.subr.mxu0 0.0
        %3982 = vmatpush1.msra.mxu0 %v3438
        %3983 = vmatprep.subr.mxu0 0.0
        %3984 = vmatpush1.msra.mxu0 %v3439
        %3985 = vmatprep.subr.mxu0 0.0
        %3986 = vmatpush1.msra.mxu0 %v3440
        %3987 = vmatprep.subr.mxu0 0.0
        %3988 = vmatpush1.msra.mxu0 %v3441
        %3989 = vmatprep.subr.mxu0 0.0
        %3990 = vmatpush1.msra.mxu0 %v3442
        %3991 = vmatprep.subr.mxu0 0.0
        %3992 = vmatpush1.msra.mxu0 %v3443
        %3993 = vmatprep.subr.mxu0 0.0
        %3994 = vmatpush1.msra.mxu0 %v3444
        %3995 = vmatprep.subr.mxu0 0.0
        %3996 = vmatpush1.msra.mxu0 %v3445
        %3997 = vmatprep.subr.mxu0 0.0
        %3998 = vmatpush1.msra.mxu0 %v3446
        %3999 = vmatprep.subr.mxu0 0.0
        %4000 = vmatpush1.msra.mxu0 %v3447
        %4001 = vmatprep.subr.mxu0 0.0
        %4002 = vmatpush1.msra.mxu0 %v3448
        %4003 = vmatprep.subr.mxu0 0.0
        %4004 = vmatpush1.msra.mxu0 %v3449
        %4005 = vmatprep.subr.mxu0 0.0
        %4006 = vmatpush1.msra.mxu0 %v3450
        %4007 = vmatprep.subr.mxu0 0.0
        %4008 = vmatpush1.msra.mxu0 %v3451
        %4009 = vmatprep.subr.mxu0 0.0
        %4010 = vmatpush1.msra.mxu0 %v3452
        %4011 = vmatprep.subr.mxu0 0.0
        %4012 = vmatpush1.msra.mxu0 %v3453
        %4013 = vmatprep.subr.mxu0 0.0
        %4014 = vmatpush1.msra.mxu0 %v3454
        %4015 = vmatprep.subr.mxu0 0.0
        %4016 = vmatpush1.msra.mxu0 %v3455
        %4017 = vmatprep.subr.mxu0 0.0
        %4018 = vmatpush1.msra.mxu0 %v3456
        %4019 = vmatprep.subr.mxu0 0.0
        %4020 = vmatpush1.msra.mxu0 %v3457
        %4021 = vmatprep.subr.mxu0 0.0
        %4022 = vmatpush1.msra.mxu0 %v3458
        %4023 = vmatprep.subr.mxu0 0.0
        %4024 = vmatpush1.msra.mxu0 %v3459
        %4025 = vmatprep.subr.mxu0 0.0
        %4026 = vmatpush1.msra.mxu0 %v3460
        %4027 = vmatprep.subr.mxu0 0.0
        %4028 = vmatpush1.msra.mxu0 %v3461
        %4029 = vmatprep.subr.mxu0 0.0
        %4030 = vmatpush1.msra.mxu0 %v3462
        %4031 = vmatprep.subr.mxu0 0.0
        %4032 = vmatpush1.msra.mxu0 %v3463
        %4033 = vmatprep.mubr.f32.mxu0 %v3085
        %4034 = vmatmul.mubr.f32.gmra.mrb[0].mxu0 %v3084
        %v4035 = vpop.f32.mrb[0].mxu0
        %v4036 = vadd.f32 %v3811, %v4035
        %v4037 = vpop.f32.mrb[0].mxu0
        %4038 = vmatprep.mubr.f32.mxu0 %v3094
        %4039 = vmatmul.mubr.f32.gmra.mrb[0].mxu0 %v3093
        %v4040 = vpop.f32.mrb[0].mxu0
        %v4041 = vadd.f32 %v3816, %v4040
        %v4042 = vpop.f32.mrb[0].mxu0
        %4043 = vmatprep.mubr.f32.mxu0 %v3103
        %4044 = vmatmul.mubr.f32.gmra.mrb[0].mxu0 %v3102
        %v4045 = vpop.f32.mrb[0].mxu0
        %v4046 = vadd.f32 %v3821, %v4045
        %v4047 = vpop.f32.mrb[0].mxu0
        %4048 = vmatprep.mubr.f32.mxu0 %v3112
        %4049 = vmatmul.mubr.f32.gmra.mrb[0].mxu0 %v3111
        %v4050 = vpop.f32.mrb[0].mxu0
        %v4051 = vadd.f32 %v3826, %v4050
        %v4052 = vpop.f32.mrb[0].mxu0
        %4053 = vmatprep.mubr.f32.mxu0 %v3121
        %4054 = vmatmul.mubr.f32.gmra.mrb[0].mxu0 %v3120
        %v4055 = vpop.f32.mrb[0].mxu0
        %v4056 = vadd.f32 %v3831, %v4055
        %v4057 = vpop.f32.mrb[0].mxu0
        %4058 = vmatprep.mubr.f32.mxu0 %v3130
        %4059 = vmatmul.mubr.f32.gmra.mrb[0].mxu0 %v3129
        %v4060 = vpop.f32.mrb[0].mxu0
        %v4061 = vadd.f32 %v3836, %v4060
        %v4062 = vpop.f32.mrb[0].mxu0
        %4063 = vmatprep.mubr.f32.mxu0 %v3139
        %4064 = vmatmul.mubr.f32.gmra.mrb[0].mxu0 %v3138
        %v4065 = vpop.f32.mrb[0].mxu0
        %v4066 = vadd.f32 %v3841, %v4065
        %v4067 = vpop.f32.mrb[0].mxu0
        %4068 = vmatprep.mubr.f32.mxu0 %v3148
        %4069 = vmatmul.mubr.f32.gmra.mrb[0].mxu0 %v3147
        %v4070 = vpop.f32.mrb[0].mxu0
        %v4071 = vadd.f32 %v3846, %v4070
        %v4072 = vpop.f32.mrb[0].mxu0
        %4073 = vmatprep.mubr.f32.mxu0 %v3157
        %4074 = vmatmul.mubr.f32.gmra.mrb[0].mxu0 %v3156
        %v4075 = vpop.f32.mrb[0].mxu0
        %v4076 = vadd.f32 %v3851, %v4075
        %v4077 = vpop.f32.mrb[0].mxu0
        %4078 = vmatprep.mubr.f32.mxu0 %v3166
        %4079 = vmatmul.mubr.f32.gmra.mrb[0].mxu0 %v3165
        %v4080 = vpop.f32.mrb[0].mxu0
        %v4081 = vadd.f32 %v3856, %v4080
        %v4082 = vpop.f32.mrb[0].mxu0
        %4083 = vmatprep.mubr.f32.mxu0 %v3175
        %4084 = vmatmul.mubr.f32.gmra.mrb[0].mxu0 %v3174
        %v4085 = vpop.f32.mrb[0].mxu0
        %v4086 = vadd.f32 %v3861, %v4085
        %v4087 = vpop.f32.mrb[0].mxu0
        %4088 = vmatprep.mubr.f32.mxu0 %v3184
        %4089 = vmatmul.mubr.f32.gmra.mrb[0].mxu0 %v3183
        %v4090 = vpop.f32.mrb[0].mxu0
        %v4091 = vadd.f32 %v3866, %v4090
        %v4092 = vpop.f32.mrb[0].mxu0
        %4093 = vmatprep.mubr.f32.mxu0 %v3193
        %4094 = vmatmul.mubr.f32.gmra.mrb[0].mxu0 %v3192
        %v4095 = vpop.f32.mrb[0].mxu0
        %v4096 = vadd.f32 %v3871, %v4095
        %v4097 = vpop.f32.mrb[0].mxu0
        %4098 = vmatprep.mubr.f32.mxu0 %v3202
        %4099 = vmatmul.mubr.f32.gmra.mrb[0].mxu0 %v3201
        %v4100 = vpop.f32.mrb[0].mxu0
        %v4101 = vadd.f32 %v3876, %v4100
        %v4102 = vpop.f32.mrb[0].mxu0
        %4103 = vmatprep.mubr.f32.mxu0 %v3211
        %4104 = vmatmul.mubr.f32.gmra.mrb[0].mxu0 %v3210
        %v4105 = vpop.f32.mrb[0].mxu0
        %v4106 = vadd.f32 %v3881, %v4105
        %v4107 = vpop.f32.mrb[0].mxu0
        %4108 = vmatprep.mubr.f32.mxu0 %v3220
        %4109 = vmatmul.mubr.f32.gmra.mrb[0].mxu0 %v3219
        %v4110 = vpop.f32.mrb[0].mxu0
        %v4111 = vadd.f32 %v3886, %v4110
        %v4112 = vpop.f32.mrb[0].mxu0
        %4113 = vmatprep.mubr.f32.mxu0 %v3229
        %4114 = vmatmul.mubr.f32.gmra.mrb[0].mxu0 %v3228
        %v4115 = vpop.f32.mrb[0].mxu0
        %v4116 = vadd.f32 %v3891, %v4115
        %v4117 = vpop.f32.mrb[0].mxu0
        %4118 = vmatprep.mubr.f32.mxu0 %v3238
        %4119 = vmatmul.mubr.f32.gmra.mrb[0].mxu0 %v3237
        %v4120 = vpop.f32.mrb[0].mxu0
        %v4121 = vadd.f32 %v3896, %v4120
        %v4122 = vpop.f32.mrb[0].mxu0
        %4123 = vmatprep.mubr.f32.mxu0 %v3247
        %4124 = vmatmul.mubr.f32.gmra.mrb[0].mxu0 %v3246
        %v4125 = vpop.f32.mrb[0].mxu0
        %v4126 = vadd.f32 %v3901, %v4125
        %v4127 = vpop.f32.mrb[0].mxu0
        %4128 = vmatprep.mubr.f32.mxu0 %v3256
        %4129 = vmatmul.mubr.f32.gmra.mrb[0].mxu0 %v3255
        %v4130 = vpop.f32.mrb[0].mxu0
        %v4131 = vadd.f32 %v3906, %v4130
        %v4132 = vpop.f32.mrb[0].mxu0
        %4133 = vmatprep.mubr.f32.mxu0 %v3265
        %4134 = vmatmul.mubr.f32.gmra.mrb[0].mxu0 %v3264
        %v4135 = vpop.f32.mrb[0].mxu0
        %v4136 = vadd.f32 %v3911, %v4135
        %v4137 = vpop.f32.mrb[0].mxu0
        %4138 = vmatprep.mubr.f32.mxu0 %v3274
        %4139 = vmatmul.mubr.f32.gmra.mrb[0].mxu0 %v3273
        %v4140 = vpop.f32.mrb[0].mxu0
        %v4141 = vadd.f32 %v3916, %v4140
        %v4142 = vpop.f32.mrb[0].mxu0
        %4143 = vmatprep.mubr.f32.mxu0 %v3283
        %4144 = vmatmul.mubr.f32.gmra.mrb[0].mxu0 %v3282
        %v4145 = vpop.f32.mrb[0].mxu0
        %v4146 = vadd.f32 %v3921, %v4145
        %v4147 = vpop.f32.mrb[0].mxu0
        %4148 = vmatprep.mubr.f32.mxu0 %v3292
        %4149 = vmatmul.mubr.f32.gmra.mrb[0].mxu0 %v3291
        %v4150 = vpop.f32.mrb[0].mxu0
        %v4151 = vadd.f32 %v3926, %v4150
        %v4152 = vpop.f32.mrb[0].mxu0
        %4153 = vmatprep.mubr.f32.mxu0 %v3301
        %4154 = vmatmul.mubr.f32.gmra.mrb[0].mxu0 %v3300
        %v4155 = vpop.f32.mrb[0].mxu0
        %v4156 = vadd.f32 %v3931, %v4155
        %v4157 = vpop.f32.mrb[0].mxu0
        %4158 = vmatprep.mubr.f32.mxu0 %v3310
        %4159 = vmatmul.mubr.f32.gmra.mrb[0].mxu0 %v3309
        %v4160 = vpop.f32.mrb[0].mxu0
        %v4161 = vadd.f32 %v3936, %v4160
        %v4162 = vpop.f32.mrb[0].mxu0
        %4163 = vmatprep.mubr.f32.mxu0 %v3319
        %4164 = vmatmul.mubr.f32.gmra.mrb[0].mxu0 %v3318
        %v4165 = vpop.f32.mrb[0].mxu0
        %v4166 = vadd.f32 %v3941, %v4165
        %v4167 = vpop.f32.mrb[0].mxu0
        %4168 = vmatprep.mubr.f32.mxu0 %v3328
        %4169 = vmatmul.mubr.f32.gmra.mrb[0].mxu0 %v3327
        %v4170 = vpop.f32.mrb[0].mxu0
        %v4171 = vadd.f32 %v3946, %v4170
        %v4172 = vpop.f32.mrb[0].mxu0
        %4173 = vmatprep.mubr.f32.mxu0 %v3337
        %4174 = vmatmul.mubr.f32.gmra.mrb[0].mxu0 %v3336
        %v4175 = vpop.f32.mrb[0].mxu0
        %v4176 = vadd.f32 %v3951, %v4175
        %v4177 = vpop.f32.mrb[0].mxu0
        %4178 = vmatprep.mubr.f32.mxu0 %v3346
        %4179 = vmatmul.mubr.f32.gmra.mrb[0].mxu0 %v3345
        %v4180 = vpop.f32.mrb[0].mxu0
        %v4181 = vadd.f32 %v3956, %v4180
        %v4182 = vpop.f32.mrb[0].mxu0
        %4183 = vmatprep.mubr.f32.mxu0 %v3355
        %4184 = vmatmul.mubr.f32.gmra.mrb[0].mxu0 %v3354
        %v4185 = vpop.f32.mrb[0].mxu0
        %v4186 = vadd.f32 %v3961, %v4185
        %v4187 = vpop.f32.mrb[0].mxu0
        %4188 = vmatprep.mubr.f32.mxu0 %v3364
        %4189 = vmatmul.mubr.f32.gmra.mrb[0].mxu0 %v3363
        %v4190 = vpop.f32.mrb[0].mxu0
        %v4191 = vadd.f32 %v3966, %v4190
        %v4192 = vpop.f32.mrb[0].mxu0
        %4193 = vdwg.mxu0
        %4194 = vmatprep.subr.mxu0 0.0
        %4195 = vmatpush1.msra.mxu0 %v3464
        %4196 = vmatprep.subr.mxu0 0.0
        %4197 = vmatpush1.msra.mxu0 %v3465
        %4198 = vmatprep.subr.mxu0 0.0
        %4199 = vmatpush1.msra.mxu0 %v3466
        %4200 = vmatprep.subr.mxu0 0.0
        %4201 = vmatpush1.msra.mxu0 %v3467
        %4202 = vmatprep.subr.mxu0 0.0
        %4203 = vmatpush1.msra.mxu0 %v3468
        %4204 = vmatprep.subr.mxu0 0.0
        %4205 = vmatpush1.msra.mxu0 %v3469
        %4206 = vmatprep.subr.mxu0 0.0
        %4207 = vmatpush1.msra.mxu0 %v3470
        %4208 = vmatprep.subr.mxu0 0.0
        %4209 = vmatpush1.msra.mxu0 %v3471
        %4210 = vmatprep.subr.mxu0 0.0
        %4211 = vmatpush1.msra.mxu0 %v3472
        %4212 = vmatprep.subr.mxu0 0.0
        %4213 = vmatpush1.msra.mxu0 %v3473
        %4214 = vmatprep.subr.mxu0 0.0
        %4215 = vmatpush1.msra.mxu0 %v3474
        %4216 = vmatprep.subr.mxu0 0.0
        %4217 = vmatpush1.msra.mxu0 %v3475
        %4218 = vmatprep.subr.mxu0 0.0
        %4219 = vmatpush1.msra.mxu0 %v3476
        %4220 = vmatprep.subr.mxu0 0.0
        %4221 = vmatpush1.msra.mxu0 %v3477
        %4222 = vmatprep.subr.mxu0 0.0
        %4223 = vmatpush1.msra.mxu0 %v3478
        %4224 = vmatprep.subr.mxu0 0.0
        %4225 = vmatpush1.msra.mxu0 %v3479
        %4226 = vmatprep.subr.mxu0 0.0
        %4227 = vmatpush1.msra.mxu0 %v3480
        %4228 = vmatprep.subr.mxu0 0.0
        %4229 = vmatpush1.msra.mxu0 %v3481
        %4230 = vmatprep.subr.mxu0 0.0
        %4231 = vmatpush1.msra.mxu0 %v3482
        %4232 = vmatprep.subr.mxu0 0.0
        %4233 = vmatpush1.msra.mxu0 %v3483
        %4234 = vmatprep.subr.mxu0 0.0
        %4235 = vmatpush1.msra.mxu0 %v3484
        %4236 = vmatprep.subr.mxu0 0.0
        %4237 = vmatpush1.msra.mxu0 %v3485
        %4238 = vmatprep.subr.mxu0 0.0
        %4239 = vmatpush1.msra.mxu0 %v3486
        %4240 = vmatprep.subr.mxu0 0.0
        %4241 = vmatpush1.msra.mxu0 %v3487
        %4242 = vmatprep.subr.mxu0 0.0
        %4243 = vmatpush1.msra.mxu0 %v3488
        %4244 = vmatprep.subr.mxu0 0.0
        %4245 = vmatpush1.msra.mxu0 %v3489
        %4246 = vmatprep.subr.mxu0 0.0
        %4247 = vmatpush1.msra.mxu0 %v3490
        %4248 = vmatprep.subr.mxu0 0.0
        %4249 = vmatpush1.msra.mxu0 %v3491
        %4250 = vmatprep.subr.mxu0 0.0
        %4251 = vmatpush1.msra.mxu0 %v3492
        %4252 = vmatprep.subr.mxu0 0.0
        %4253 = vmatpush1.msra.mxu0 %v3493
        %4254 = vmatprep.subr.mxu0 0.0
        %4255 = vmatpush1.msra.mxu0 %v3494
        %4256 = vmatprep.subr.mxu0 0.0
        %4257 = vmatpush1.msra.mxu0 %v3495
        %4258 = vmatprep.mubr.f32.mxu0 %v3087
        %4259 = vmatmul.mubr.f32.gmra.mrb[0].mxu0 %v3086
        %v4260 = vpop.f32.mrb[0].mxu0
        %v4261 = vadd.f32 %v4036, %v4260
        %v4262 = vpop.f32.mrb[0].mxu0
        %4263 = vmatprep.mubr.f32.mxu0 %v3096
        %4264 = vmatmul.mubr.f32.gmra.mrb[0].mxu0 %v3095
        %v4265 = vpop.f32.mrb[0].mxu0
        %v4266 = vadd.f32 %v4041, %v4265
        %v4267 = vpop.f32.mrb[0].mxu0
        %4268 = vmatprep.mubr.f32.mxu0 %v3105
        %4269 = vmatmul.mubr.f32.gmra.mrb[0].mxu0 %v3104
        %v4270 = vpop.f32.mrb[0].mxu0
        %v4271 = vadd.f32 %v4046, %v4270
        %v4272 = vpop.f32.mrb[0].mxu0
        %4273 = vmatprep.mubr.f32.mxu0 %v3114
        %4274 = vmatmul.mubr.f32.gmra.mrb[0].mxu0 %v3113
        %v4275 = vpop.f32.mrb[0].mxu0
        %v4276 = vadd.f32 %v4051, %v4275
        %v4277 = vpop.f32.mrb[0].mxu0
        %4278 = vmatprep.mubr.f32.mxu0 %v3123
        %4279 = vmatmul.mubr.f32.gmra.mrb[0].mxu0 %v3122
        %v4280 = vpop.f32.mrb[0].mxu0
        %v4281 = vadd.f32 %v4056, %v4280
        %v4282 = vpop.f32.mrb[0].mxu0
        %4283 = vmatprep.mubr.f32.mxu0 %v3132
        %4284 = vmatmul.mubr.f32.gmra.mrb[0].mxu0 %v3131
        %v4285 = vpop.f32.mrb[0].mxu0
        %v4286 = vadd.f32 %v4061, %v4285
        %v4287 = vpop.f32.mrb[0].mxu0
        %4288 = vmatprep.mubr.f32.mxu0 %v3141
        %4289 = vmatmul.mubr.f32.gmra.mrb[0].mxu0 %v3140
        %v4290 = vpop.f32.mrb[0].mxu0
        %v4291 = vadd.f32 %v4066, %v4290
        %v4292 = vpop.f32.mrb[0].mxu0
        %4293 = vmatprep.mubr.f32.mxu0 %v3150
        %4294 = vmatmul.mubr.f32.gmra.mrb[0].mxu0 %v3149
        %v4295 = vpop.f32.mrb[0].mxu0
        %v4296 = vadd.f32 %v4071, %v4295
        %v4297 = vpop.f32.mrb[0].mxu0
        %4298 = vmatprep.mubr.f32.mxu0 %v3159
        %4299 = vmatmul.mubr.f32.gmra.mrb[0].mxu0 %v3158
        %v4300 = vpop.f32.mrb[0].mxu0
        %v4301 = vadd.f32 %v4076, %v4300
        %v4302 = vpop.f32.mrb[0].mxu0
        %4303 = vmatprep.mubr.f32.mxu0 %v3168
        %4304 = vmatmul.mubr.f32.gmra.mrb[0].mxu0 %v3167
        %v4305 = vpop.f32.mrb[0].mxu0
        %v4306 = vadd.f32 %v4081, %v4305
        %v4307 = vpop.f32.mrb[0].mxu0
        %4308 = vmatprep.mubr.f32.mxu0 %v3177
        %4309 = vmatmul.mubr.f32.gmra.mrb[0].mxu0 %v3176
        %v4310 = vpop.f32.mrb[0].mxu0
        %v4311 = vadd.f32 %v4086, %v4310
        %v4312 = vpop.f32.mrb[0].mxu0
        %4313 = vmatprep.mubr.f32.mxu0 %v3186
        %4314 = vmatmul.mubr.f32.gmra.mrb[0].mxu0 %v3185
        %v4315 = vpop.f32.mrb[0].mxu0
        %v4316 = vadd.f32 %v4091, %v4315
        %v4317 = vpop.f32.mrb[0].mxu0
        %4318 = vmatprep.mubr.f32.mxu0 %v3195
        %4319 = vmatmul.mubr.f32.gmra.mrb[0].mxu0 %v3194
        %v4320 = vpop.f32.mrb[0].mxu0
        %v4321 = vadd.f32 %v4096, %v4320
        %v4322 = vpop.f32.mrb[0].mxu0
        %4323 = vmatprep.mubr.f32.mxu0 %v3204
        %4324 = vmatmul.mubr.f32.gmra.mrb[0].mxu0 %v3203
        %v4325 = vpop.f32.mrb[0].mxu0
        %v4326 = vadd.f32 %v4101, %v4325
        %v4327 = vpop.f32.mrb[0].mxu0
        %4328 = vmatprep.mubr.f32.mxu0 %v3213
        %4329 = vmatmul.mubr.f32.gmra.mrb[0].mxu0 %v3212
        %v4330 = vpop.f32.mrb[0].mxu0
        %v4331 = vadd.f32 %v4106, %v4330
        %v4332 = vpop.f32.mrb[0].mxu0
        %4333 = vmatprep.mubr.f32.mxu0 %v3222
        %4334 = vmatmul.mubr.f32.gmra.mrb[0].mxu0 %v3221
        %v4335 = vpop.f32.mrb[0].mxu0
        %v4336 = vadd.f32 %v4111, %v4335
        %v4337 = vpop.f32.mrb[0].mxu0
        %4338 = vmatprep.mubr.f32.mxu0 %v3231
        %4339 = vmatmul.mubr.f32.gmra.mrb[0].mxu0 %v3230
        %v4340 = vpop.f32.mrb[0].mxu0
        %v4341 = vadd.f32 %v4116, %v4340
        %v4342 = vpop.f32.mrb[0].mxu0
        %4343 = vmatprep.mubr.f32.mxu0 %v3240
        %4344 = vmatmul.mubr.f32.gmra.mrb[0].mxu0 %v3239
        %v4345 = vpop.f32.mrb[0].mxu0
        %v4346 = vadd.f32 %v4121, %v4345
        %v4347 = vpop.f32.mrb[0].mxu0
        %4348 = vmatprep.mubr.f32.mxu0 %v3249
        %4349 = vmatmul.mubr.f32.gmra.mrb[0].mxu0 %v3248
        %v4350 = vpop.f32.mrb[0].mxu0
        %v4351 = vadd.f32 %v4126, %v4350
        %v4352 = vpop.f32.mrb[0].mxu0
        %4353 = vmatprep.mubr.f32.mxu0 %v3258
        %4354 = vmatmul.mubr.f32.gmra.mrb[0].mxu0 %v3257
        %v4355 = vpop.f32.mrb[0].mxu0
        %v4356 = vadd.f32 %v4131, %v4355
        %v4357 = vpop.f32.mrb[0].mxu0
        %4358 = vmatprep.mubr.f32.mxu0 %v3267
        %4359 = vmatmul.mubr.f32.gmra.mrb[0].mxu0 %v3266
        %v4360 = vpop.f32.mrb[0].mxu0
        %v4361 = vadd.f32 %v4136, %v4360
        %v4362 = vpop.f32.mrb[0].mxu0
        %4363 = vmatprep.mubr.f32.mxu0 %v3276
        %4364 = vmatmul.mubr.f32.gmra.mrb[0].mxu0 %v3275
        %v4365 = vpop.f32.mrb[0].mxu0
        %v4366 = vadd.f32 %v4141, %v4365
        %v4367 = vpop.f32.mrb[0].mxu0
        %4368 = vmatprep.mubr.f32.mxu0 %v3285
        %4369 = vmatmul.mubr.f32.gmra.mrb[0].mxu0 %v3284
        %v4370 = vpop.f32.mrb[0].mxu0
        %v4371 = vadd.f32 %v4146, %v4370
        %v4372 = vpop.f32.mrb[0].mxu0
        %4373 = vmatprep.mubr.f32.mxu0 %v3294
        %4374 = vmatmul.mubr.f32.gmra.mrb[0].mxu0 %v3293
        %v4375 = vpop.f32.mrb[0].mxu0
        %v4376 = vadd.f32 %v4151, %v4375
        %v4377 = vpop.f32.mrb[0].mxu0
        %4378 = vmatprep.mubr.f32.mxu0 %v3303
        %4379 = vmatmul.mubr.f32.gmra.mrb[0].mxu0 %v3302
        %v4380 = vpop.f32.mrb[0].mxu0
        %v4381 = vadd.f32 %v4156, %v4380
        %v4382 = vpop.f32.mrb[0].mxu0
        %4383 = vmatprep.mubr.f32.mxu0 %v3312
        %4384 = vmatmul.mubr.f32.gmra.mrb[0].mxu0 %v3311
        %v4385 = vpop.f32.mrb[0].mxu0
        %v4386 = vadd.f32 %v4161, %v4385
        %v4387 = vpop.f32.mrb[0].mxu0
        %4388 = vmatprep.mubr.f32.mxu0 %v3321
        %4389 = vmatmul.mubr.f32.gmra.mrb[0].mxu0 %v3320
        %v4390 = vpop.f32.mrb[0].mxu0
        %v4391 = vadd.f32 %v4166, %v4390
        %v4392 = vpop.f32.mrb[0].mxu0
        %4393 = vmatprep.mubr.f32.mxu0 %v3330
        %4394 = vmatmul.mubr.f32.gmra.mrb[0].mxu0 %v3329
        %v4395 = vpop.f32.mrb[0].mxu0
        %v4396 = vadd.f32 %v4171, %v4395
        %v4397 = vpop.f32.mrb[0].mxu0
        %4398 = vmatprep.mubr.f32.mxu0 %v3339
        %4399 = vmatmul.mubr.f32.gmra.mrb[0].mxu0 %v3338
        %v4400 = vpop.f32.mrb[0].mxu0
        %v4401 = vadd.f32 %v4176, %v4400
        %v4402 = vpop.f32.mrb[0].mxu0
        %4403 = vmatprep.mubr.f32.mxu0 %v3348
        %4404 = vmatmul.mubr.f32.gmra.mrb[0].mxu0 %v3347
        %v4405 = vpop.f32.mrb[0].mxu0
        %v4406 = vadd.f32 %v4181, %v4405
        %v4407 = vpop.f32.mrb[0].mxu0
        %4408 = vmatprep.mubr.f32.mxu0 %v3357
        %4409 = vmatmul.mubr.f32.gmra.mrb[0].mxu0 %v3356
        %v4410 = vpop.f32.mrb[0].mxu0
        %v4411 = vadd.f32 %v4186, %v4410
        %v4412 = vpop.f32.mrb[0].mxu0
        %4413 = vmatprep.mubr.f32.mxu0 %v3366
        %4414 = vmatmul.mubr.f32.gmra.mrb[0].mxu0 %v3365
        %v4415 = vpop.f32.mrb[0].mxu0
        %v4416 = vadd.f32 %v4191, %v4415
        %v4417 = vpop.f32.mrb[0].mxu0
        %4418 = vdwg.mxu0
        %4419 = vmatprep.subr.mxu0 0.0
        %4420 = vmatpush1.msra.mxu0 %v3496
        %4421 = vmatprep.subr.mxu0 0.0
        %4422 = vmatpush1.msra.mxu0 %v3497
        %4423 = vmatprep.subr.mxu0 0.0
        %4424 = vmatpush1.msra.mxu0 %v3498
        %4425 = vmatprep.subr.mxu0 0.0
        %4426 = vmatpush1.msra.mxu0 %v3499
        %4427 = vmatprep.subr.mxu0 0.0
        %4428 = vmatpush1.msra.mxu0 %v3500
        %4429 = vmatprep.subr.mxu0 0.0
        %4430 = vmatpush1.msra.mxu0 %v3501
        %4431 = vmatprep.subr.mxu0 0.0
        %4432 = vmatpush1.msra.mxu0 %v3502
        %4433 = vmatprep.subr.mxu0 0.0
        %4434 = vmatpush1.msra.mxu0 %v3503
        %4435 = vmatprep.subr.mxu0 0.0
        %4436 = vmatpush1.msra.mxu0 %v3504
        %4437 = vmatprep.subr.mxu0 0.0
        %4438 = vmatpush1.msra.mxu0 %v3505
        %4439 = vmatprep.subr.mxu0 0.0
        %4440 = vmatpush1.msra.mxu0 %v3506
        %4441 = vmatprep.subr.mxu0 0.0
        %4442 = vmatpush1.msra.mxu0 %v3507
        %4443 = vmatprep.subr.mxu0 0.0
        %4444 = vmatpush1.msra.mxu0 %v3508
        %4445 = vmatprep.subr.mxu0 0.0
        %4446 = vmatpush1.msra.mxu0 %v3509
        %4447 = vmatprep.subr.mxu0 0.0
        %4448 = vmatpush1.msra.mxu0 %v3510
        %4449 = vmatprep.subr.mxu0 0.0
        %4450 = vmatpush1.msra.mxu0 %v3511
        %4451 = vmatprep.subr.mxu0 0.0
        %4452 = vmatpush1.msra.mxu0 0.0
        %4453 = vmatprep.subr.mxu0 0.0
        %4454 = vmatpush1.msra.mxu0 0.0
        %4455 = vmatprep.subr.mxu0 0.0
        %4456 = vmatpush1.msra.mxu0 0.0
        %4457 = vmatprep.subr.mxu0 0.0
        %4458 = vmatpush1.msra.mxu0 0.0
        %4459 = vmatprep.subr.mxu0 0.0
        %4460 = vmatpush1.msra.mxu0 0.0
        %4461 = vmatprep.subr.mxu0 0.0
        %4462 = vmatpush1.msra.mxu0 0.0
        %4463 = vmatprep.subr.mxu0 0.0
        %4464 = vmatpush1.msra.mxu0 0.0
        %4465 = vmatprep.subr.mxu0 0.0
        %4466 = vmatpush1.msra.mxu0 0.0
        %4467 = vmatprep.subr.mxu0 0.0
        %4468 = vmatpush1.msra.mxu0 0.0
        %4469 = vmatprep.subr.mxu0 0.0
        %4470 = vmatpush1.msra.mxu0 0.0
        %4471 = vmatprep.subr.mxu0 0.0
        %4472 = vmatpush1.msra.mxu0 0.0
        %4473 = vmatprep.subr.mxu0 0.0
        %4474 = vmatpush1.msra.mxu0 0.0
        %4475 = vmatprep.subr.mxu0 0.0
        %4476 = vmatpush1.msra.mxu0 0.0
        %4477 = vmatprep.subr.mxu0 0.0
        %4478 = vmatpush1.msra.mxu0 0.0
        %4479 = vmatprep.subr.mxu0 0.0
        %4480 = vmatpush1.msra.mxu0 0.0
        %4481 = vmatprep.subr.mxu0 0.0
        %4482 = vmatpush1.msra.mxu0 0.0
        %4483 = vmatprep.mubr.f32.mxu0 0.0
        %4484 = vmatmul.mubr.f32.gmra.mrb[0].mxu0 %v3088
        %v4485 = vpop.f32.mrb[0].mxu0
        %v4486 = vadd.f32 %v4261, %v4485
        %v4487 = vpop.f32.mrb[0].mxu0
        %4488 = vmatprep.mubr.f32.mxu0 0.0
        %4489 = vmatmul.mubr.f32.gmra.mrb[0].mxu0 %v3097
        %v4490 = vpop.f32.mrb[0].mxu0
        %v4491 = vadd.f32 %v4266, %v4490
        %v4492 = vpop.f32.mrb[0].mxu0
        %4493 = vmatprep.mubr.f32.mxu0 0.0
        %4494 = vmatmul.mubr.f32.gmra.mrb[0].mxu0 %v3106
        %v4495 = vpop.f32.mrb[0].mxu0
        %v4496 = vadd.f32 %v4271, %v4495
        %v4497 = vpop.f32.mrb[0].mxu0
        %4498 = vmatprep.mubr.f32.mxu0 0.0
        %4499 = vmatmul.mubr.f32.gmra.mrb[0].mxu0 %v3115
        %v4500 = vpop.f32.mrb[0].mxu0
        %v4501 = vadd.f32 %v4276, %v4500
        %v4502 = vpop.f32.mrb[0].mxu0
        %4503 = vmatprep.mubr.f32.mxu0 0.0
        %4504 = vmatmul.mubr.f32.gmra.mrb[0].mxu0 %v3124
        %v4505 = vpop.f32.mrb[0].mxu0
        %v4506 = vadd.f32 %v4281, %v4505
        %v4507 = vpop.f32.mrb[0].mxu0
        %4508 = vmatprep.mubr.f32.mxu0 0.0
        %4509 = vmatmul.mubr.f32.gmra.mrb[0].mxu0 %v3133
        %v4510 = vpop.f32.mrb[0].mxu0
        %v4511 = vadd.f32 %v4286, %v4510
        %v4512 = vpop.f32.mrb[0].mxu0
        %4513 = vmatprep.mubr.f32.mxu0 0.0
        %4514 = vmatmul.mubr.f32.gmra.mrb[0].mxu0 %v3142
        %v4515 = vpop.f32.mrb[0].mxu0
        %v4516 = vadd.f32 %v4291, %v4515
        %v4517 = vpop.f32.mrb[0].mxu0
        %4518 = vmatprep.mubr.f32.mxu0 0.0
        %4519 = vmatmul.mubr.f32.gmra.mrb[0].mxu0 %v3151
        %v4520 = vpop.f32.mrb[0].mxu0
        %v4521 = vadd.f32 %v4296, %v4520
        %v4522 = vpop.f32.mrb[0].mxu0
        %4523 = vmatprep.mubr.f32.mxu0 0.0
        %4524 = vmatmul.mubr.f32.gmra.mrb[0].mxu0 %v3160
        %v4525 = vpop.f32.mrb[0].mxu0
        %v4526 = vadd.f32 %v4301, %v4525
        %v4527 = vpop.f32.mrb[0].mxu0
        %4528 = vmatprep.mubr.f32.mxu0 0.0
        %4529 = vmatmul.mubr.f32.gmra.mrb[0].mxu0 %v3169
        %v4530 = vpop.f32.mrb[0].mxu0
        %v4531 = vadd.f32 %v4306, %v4530
        %v4532 = vpop.f32.mrb[0].mxu0
        %4533 = vmatprep.mubr.f32.mxu0 0.0
        %4534 = vmatmul.mubr.f32.gmra.mrb[0].mxu0 %v3178
        %v4535 = vpop.f32.mrb[0].mxu0
        %v4536 = vadd.f32 %v4311, %v4535
        %v4537 = vpop.f32.mrb[0].mxu0
        %4538 = vmatprep.mubr.f32.mxu0 0.0
        %4539 = vmatmul.mubr.f32.gmra.mrb[0].mxu0 %v3187
        %v4540 = vpop.f32.mrb[0].mxu0
        %v4541 = vadd.f32 %v4316, %v4540
        %v4542 = vpop.f32.mrb[0].mxu0
        %4543 = vmatprep.mubr.f32.mxu0 0.0
        %4544 = vmatmul.mubr.f32.gmra.mrb[0].mxu0 %v3196
        %v4545 = vpop.f32.mrb[0].mxu0
        %v4546 = vadd.f32 %v4321, %v4545
        %v4547 = vpop.f32.mrb[0].mxu0
        %4548 = vmatprep.mubr.f32.mxu0 0.0
        %4549 = vmatmul.mubr.f32.gmra.mrb[0].mxu0 %v3205
        %v4550 = vpop.f32.mrb[0].mxu0
        %v4551 = vadd.f32 %v4326, %v4550
        %v4552 = vpop.f32.mrb[0].mxu0
        %4553 = vmatprep.mubr.f32.mxu0 0.0
        %4554 = vmatmul.mubr.f32.gmra.mrb[0].mxu0 %v3214
        %v4555 = vpop.f32.mrb[0].mxu0
        %v4556 = vadd.f32 %v4331, %v4555
        %v4557 = vpop.f32.mrb[0].mxu0
        %4558 = vmatprep.mubr.f32.mxu0 0.0
        %4559 = vmatmul.mubr.f32.gmra.mrb[0].mxu0 %v3223
        %v4560 = vpop.f32.mrb[0].mxu0
        %v4561 = vadd.f32 %v4336, %v4560
        %v4562 = vpop.f32.mrb[0].mxu0
        %4563 = vmatprep.mubr.f32.mxu0 0.0
        %4564 = vmatmul.mubr.f32.gmra.mrb[0].mxu0 %v3232
        %v4565 = vpop.f32.mrb[0].mxu0
        %v4566 = vadd.f32 %v4341, %v4565
        %v4567 = vpop.f32.mrb[0].mxu0
        %4568 = vmatprep.mubr.f32.mxu0 0.0
        %4569 = vmatmul.mubr.f32.gmra.mrb[0].mxu0 %v3241
        %v4570 = vpop.f32.mrb[0].mxu0
        %v4571 = vadd.f32 %v4346, %v4570
        %v4572 = vpop.f32.mrb[0].mxu0
        %4573 = vmatprep.mubr.f32.mxu0 0.0
        %4574 = vmatmul.mubr.f32.gmra.mrb[0].mxu0 %v3250
        %v4575 = vpop.f32.mrb[0].mxu0
        %v4576 = vadd.f32 %v4351, %v4575
        %v4577 = vpop.f32.mrb[0].mxu0
        %4578 = vmatprep.mubr.f32.mxu0 0.0
        %4579 = vmatmul.mubr.f32.gmra.mrb[0].mxu0 %v3259
        %v4580 = vpop.f32.mrb[0].mxu0
        %v4581 = vadd.f32 %v4356, %v4580
        %v4582 = vpop.f32.mrb[0].mxu0
        %4583 = vmatprep.mubr.f32.mxu0 0.0
        %4584 = vmatmul.mubr.f32.gmra.mrb[0].mxu0 %v3268
        %v4585 = vpop.f32.mrb[0].mxu0
        %v4586 = vadd.f32 %v4361, %v4585
        %v4587 = vpop.f32.mrb[0].mxu0
        %4588 = vmatprep.mubr.f32.mxu0 0.0
        %4589 = vmatmul.mubr.f32.gmra.mrb[0].mxu0 %v3277
        %v4590 = vpop.f32.mrb[0].mxu0
        %v4591 = vadd.f32 %v4366, %v4590
        %v4592 = vpop.f32.mrb[0].mxu0
        %4593 = vmatprep.mubr.f32.mxu0 0.0
        %4594 = vmatmul.mubr.f32.gmra.mrb[0].mxu0 %v3286
        %v4595 = vpop.f32.mrb[0].mxu0
        %v4596 = vadd.f32 %v4371, %v4595
        %v4597 = vpop.f32.mrb[0].mxu0
        %4598 = vmatprep.mubr.f32.mxu0 0.0
        %4599 = vmatmul.mubr.f32.gmra.mrb[0].mxu0 %v3295
        %v4600 = vpop.f32.mrb[0].mxu0
        %v4601 = vadd.f32 %v4376, %v4600
        %v4602 = vpop.f32.mrb[0].mxu0
        %4603 = vmatprep.mubr.f32.mxu0 0.0
        %4604 = vmatmul.mubr.f32.gmra.mrb[0].mxu0 %v3304
        %v4605 = vpop.f32.mrb[0].mxu0
        %v4606 = vadd.f32 %v4381, %v4605
        %v4607 = vpop.f32.mrb[0].mxu0
        %4608 = vmatprep.mubr.f32.mxu0 0.0
        %4609 = vmatmul.mubr.f32.gmra.mrb[0].mxu0 %v3313
        %v4610 = vpop.f32.mrb[0].mxu0
        %v4611 = vadd.f32 %v4386, %v4610
        %v4612 = vpop.f32.mrb[0].mxu0
        %4613 = vmatprep.mubr.f32.mxu0 0.0
        %4614 = vmatmul.mubr.f32.gmra.mrb[0].mxu0 %v3322
        %v4615 = vpop.f32.mrb[0].mxu0
        %v4616 = vadd.f32 %v4391, %v4615
        %v4617 = vpop.f32.mrb[0].mxu0
        %4618 = vmatprep.mubr.f32.mxu0 0.0
        %4619 = vmatmul.mubr.f32.gmra.mrb[0].mxu0 %v3331
        %v4620 = vpop.f32.mrb[0].mxu0
        %v4621 = vadd.f32 %v4396, %v4620
        %v4622 = vpop.f32.mrb[0].mxu0
        %4623 = vmatprep.mubr.f32.mxu0 0.0
        %4624 = vmatmul.mubr.f32.gmra.mrb[0].mxu0 %v3340
        %v4625 = vpop.f32.mrb[0].mxu0
        %v4626 = vadd.f32 %v4401, %v4625
        %v4627 = vpop.f32.mrb[0].mxu0
        %4628 = vmatprep.mubr.f32.mxu0 0.0
        %4629 = vmatmul.mubr.f32.gmra.mrb[0].mxu0 %v3349
        %v4630 = vpop.f32.mrb[0].mxu0
        %v4631 = vadd.f32 %v4406, %v4630
        %v4632 = vpop.f32.mrb[0].mxu0
        %4633 = vmatprep.mubr.f32.mxu0 0.0
        %4634 = vmatmul.mubr.f32.gmra.mrb[0].mxu0 %v3358
        %v4635 = vpop.f32.mrb[0].mxu0
        %v4636 = vadd.f32 %v4411, %v4635
        %v4637 = vpop.f32.mrb[0].mxu0
        %4638 = vmatprep.mubr.f32.mxu0 0.0
        %4639 = vmatmul.mubr.f32.gmra.mrb[0].mxu0 %v3367
        %v4640 = vpop.f32.mrb[0].mxu0
        %v4641 = vadd.f32 %v4416, %v4640
        %v4642 = vpop.f32.mrb[0].mxu0
        %4643 = vdwg.mxu0
        %v4644 = vmax.f32 %v4486, 0.0
        %v4645 = vmax.f32 %v4491, 0.0
        %v4646 = vmax.f32 %v4496, 0.0
        %v4647 = vmax.f32 %v4501, 0.0
        %v4648 = vmax.f32 %v4506, 0.0
        %v4649 = vmax.f32 %v4511, 0.0
        %v4650 = vmax.f32 %v4516, 0.0
        %v4651 = vmax.f32 %v4521, 0.0
        %v4652 = vmax.f32 %v4526, 0.0
        %v4653 = vmax.f32 %v4531, 0.0
        %v4654 = vmax.f32 %v4536, 0.0
        %v4655 = vmax.f32 %v4541, 0.0
        %v4656 = vmax.f32 %v4546, 0.0
        %v4657 = vmax.f32 %v4551, 0.0
        %v4658 = vmax.f32 %v4556, 0.0
        %v4659 = vmax.f32 %v4561, 0.0
        %v4660 = vmax.f32 %v4566, 0.0
        %v4661 = vmax.f32 %v4571, 0.0
        %v4662 = vmax.f32 %v4576, 0.0
        %v4663 = vmax.f32 %v4581, 0.0
        %v4664 = vmax.f32 %v4586, 0.0
        %v4665 = vmax.f32 %v4591, 0.0
        %v4666 = vmax.f32 %v4596, 0.0
        %v4667 = vmax.f32 %v4601, 0.0
        %v4668 = vmax.f32 %v4606, 0.0
        %v4669 = vmax.f32 %v4611, 0.0
        %v4670 = vmax.f32 %v4616, 0.0
        %v4671 = vmax.f32 %v4621, 0.0
        %v4672 = vmax.f32 %v4626, 0.0
        %v4673 = vmax.f32 %v4631, 0.0
        %v4674 = vmax.f32 %v4636, 0.0
        %v4675 = vmax.f32 %v4641, 0.0
        %4676 = vst [vmem:[%s232] sm:$0xff] %v4644
        %4677 = vst [vmem:[%s232 + $0x8] sm:$0xff] %v4645
        %4678 = vst [vmem:[%s232 + $0x10] sm:$0xff] %v4646
        %4679 = vst [vmem:[%s232 + $0x18] sm:$0xff] %v4647
        %4680 = vst [vmem:[%s232 + $0x20] sm:$0xff] %v4648
        %4681 = vst [vmem:[%s232 + $0x28] sm:$0xff] %v4649
        %4682 = vst [vmem:[%s232 + $0x30] sm:$0xff] %v4650
        %4683 = vst [vmem:[%s232 + $0x38] sm:$0xff] %v4651
        %4684 = vst [vmem:[%s232 + $0x40] sm:$0xff] %v4652
        %4685 = vst [vmem:[%s232 + $0x48] sm:$0xff] %v4653
        %4686 = vst [vmem:[%s232 + $0x50] sm:$0xff] %v4654
        %4687 = vst [vmem:[%s232 + $0x58] sm:$0xff] %v4655
        %4688 = vst [vmem:[%s232 + $0x60] sm:$0xff] %v4656
        %4689 = vst [vmem:[%s232 + $0x68] sm:$0xff] %v4657
        %4690 = vst [vmem:[%s232 + $0x70] sm:$0xff] %v4658
        %4691 = vst [vmem:[%s232 + $0x78] sm:$0xff] %v4659
        %4692 = vst [vmem:[%s232 + $0x80] sm:$0xff] %v4660
        %4693 = vst [vmem:[%s232 + $0x88] sm:$0xff] %v4661
        %4694 = vst [vmem:[%s232 + $0x90] sm:$0xff] %v4662
        %4695 = vst [vmem:[%s232 + $0x98] sm:$0xff] %v4663
        %4696 = vst [vmem:[%s232 + $0xa0] sm:$0xff] %v4664
        %4697 = vst [vmem:[%s232 + $0xa8] sm:$0xff] %v4665
        %4698 = vst [vmem:[%s232 + $0xb0] sm:$0xff] %v4666
        %4699 = vst [vmem:[%s232 + $0xb8] sm:$0xff] %v4667
        %4700 = vst [vmem:[%s232 + $0xc0] sm:$0xff] %v4668
        %4701 = vst [vmem:[%s232 + $0xc8] sm:$0xff] %v4669
        %4702 = vst [vmem:[%s232 + $0xd0] sm:$0xff] %v4670
        %4703 = vst [vmem:[%s232 + $0xd8] sm:$0xff] %v4671
        %4704 = vst [vmem:[%s232 + $0xe0] sm:$0xff] %v4672
        %4705 = vst [vmem:[%s232 + $0xe8] sm:$0xff] %v4673
        %4706 = vst [vmem:[%s232 + $0xf0] sm:$0xff] %v4674
        %4707 = vst [vmem:[%s232 + $0xf8] sm:$0xff] %v4675
        %s4708 = sand.u32 %s138, 1
        %s4709 = scalar_lea.sflag [#allocation8], %s4708
        %s4710 = sand.u32 %s138, 1
        %s4711 = smul.addr %s4710, 256
        %s4712 = scalar_lea.vmem [#allocation9], %s4711
        // Predicated region
        $region45: #{tpu_custom_call.1} parent=39 // pred_check
          %p4713 = pneg %p148
        $region46: #{tpu_custom_call.1} parent=39 // pred_check_branch
          %4715 = sbr.rel (%p4713) target = $region48
        $region47: #{tpu_custom_call.1} parent=39 // pred_region
          %s4717 = ssub.s32 4096, 4096
          %4718 = vsyncadd %s4709, %s4717
          %s4719 = smul.addr %s20, 32
          %s4720 = smul.addr %s4719, 128
          %s4721 = scalar_lea.hbm %s5, %s4720
          %s4722 = sshll.u32 %s4712, 4
          %s4723 = int_to_ptr.vmem [resolvable:$true] %s4722
          %4728 = dma.vmem_to_hbm [thread:$0]  %s4723, 4096, %s4721, %s4709, 128, 128, 8
        $region48: #{tpu_custom_call.1} parent=39 // pred_fallthru
          _
      $region40: #{tpu_custom_call.1} parent=5 // pred_fallthru
        _
      %p4729 = scmp.le.s32.totalorder 2, %s15
      // Predicated region
      $region49: #{tpu_custom_call.1} parent=5 // pred_check
        %p4730 = pneg %p4729
      $region50: #{tpu_custom_call.1} parent=5 // pred_check_branch
        %4732 = sbr.rel (%p4730) target = $region52
      $region51: #{tpu_custom_call.1} parent=5 // pred_region
        %s4733 = ssub.s32 %s15, 2
        // Predicated region
        $region53: #{tpu_custom_call.1} parent=51 // pred_check
          %p4734 = pneg %p154
        $region54: #{tpu_custom_call.1} parent=51 // pred_check_branch
          %4736 = sbr.rel (%p4734) target = $region56
        $region55: #{tpu_custom_call.1} parent=51 // pred_region
          %s4737 = sand.u32 %s139, 1
          %s4738 = scalar_lea.sflag [#allocation8], %s4737
          %s4739 = sand.u32 %s139, 1
          %s4740 = smul.addr %s4739, 256
          %s4741 = scalar_lea.vmem [#allocation9], %s4740
          %4742 = dma.done %s4738, 4096
        $region56: #{tpu_custom_call.1} parent=51 // pred_fallthru
          _
      $region52: #{tpu_custom_call.1} parent=5 // pred_fallthru
        _
    $region6: #{tpu_custom_call.1} parent=1 // loop_footer
      %s19 = sadd.s32 1, %s15
    $region7: #{tpu_custom_call.1} parent=1 // loop_footer_branch
      %14 = sbr.rel target = $region3
    $region8: #{tpu_custom_call.1} parent=1 // loop_exit
      _
    %4743 = vsyncpa [#allocation7], 1
    %s4744 = scalar_lea.sflag [#allocation7], 1
    %4745 = vsyncpa %s4744, 1
    %4746 = vsyncpa [#allocation8], 1
    %s4747 = scalar_lea.sflag [#allocation8], 1
    %4748 = vsyncpa %s4747, 1

</llo_original>
